<compile_context>
chip_gen: v5e
topology: v5e:2x2
jax: 0.10.0
libtpu: 0.0.40
codegen_flags: <defaults>
</compile_context>

<pallas_src>
import jax
import jax.numpy as jnp
from jax import lax
from jax.experimental import pallas as pl
from jax.experimental.pallas import tpu as pltpu


def lstm_fused_kernel(x_ref,                 # (T*Bp, D)     bf16
                      wih0_ref,              # (D, 4Hp)      bf16
                      b0_ref,                # (1, 4Hp)      f32   (b_ih0 + b_hh0)
                      wcat_ref,              # (2Hp, 8Hp)    bf16  [[whh0, wih1],[0, whh1]]
                      b1_ref,                # (1, 4Hp)      f32   (b_ih1 + b_hh1)
                      wfc_ref,               # (Hp, C)       bf16
                      bfc_ref,               # (1, C)        f32
                      out_ref,               # (Bp, C)       f32
                      xg_ref):               # scratch (T*Bp, 4Hp) f32: layer-0 input gates
    TB, _ = x_ref.shape
    Bp = out_ref.shape[0]
    T = TB // Bp
    Hp = wfc_ref.shape[0]
    G = 4 * Hp
    cdt = wcat_ref.dtype                     # matmul operand dtype (bf16)

    # ---- hoisted layer-0 input projection: one big MXU call, bias folded in ----
    xg_ref[...] = (jnp.dot(x_ref[...], wih0_ref[...],
                           preferred_element_type=jnp.float32)
                   + b0_ref[...])

    wcat = wcat_ref[...]
    b1 = b1_ref[...]

    def gates(z, c):
        # Lane-aligned full-vreg gate slices (Hp == 128); gate math in f32.
        i = jax.nn.sigmoid(z[:, 0 * Hp:1 * Hp])
        f = jax.nn.sigmoid(z[:, 1 * Hp:2 * Hp])
        g = jnp.tanh(z[:, 2 * Hp:3 * Hp])
        o = jax.nn.sigmoid(z[:, 3 * Hp:4 * Hp])
        c_new = f * c + i * g
        h_new = o * jnp.tanh(c_new)
        return h_new, c_new

    zeros = jnp.zeros((Bp, Hp), jnp.float32)

    # ---- step 0: layer 0 only (h0_init = 0 => no recurrence term) ----
    h0, c0 = gates(xg_ref[pl.ds(0, Bp), :], zeros)
    h1, c1 = zeros, zeros

    # ---- wavefront steps s = 1..T-1: layer-0 step s and layer-1 step s-1 ----
    # Single per-step MXU call: [h0_{s-1}, h1_{s-2}] @ wcat gives layer-0's recurrence
    # term (cols :G) and layer-1's full pre-activation (cols G:).
    def body(s, carry):
        h0, c0, h1, c1 = carry
        hcat = jnp.concatenate([h0, h1], axis=1).astype(cdt)            # (Bp, 2Hp)
        z = jnp.dot(hcat, wcat, preferred_element_type=jnp.float32)     # (Bp, 8Hp)
        off = pl.multiple_of(s * Bp, Bp)
        z0 = xg_ref[pl.ds(off, Bp), :] + z[:, :G]
        z1 = z[:, G:] + b1
        h0n, c0n = gates(z0, c0)    # layer-0 step s
        h1n, c1n = gates(z1, c1)    # layer-1 step s-1 (independent -> interleaves)
        return (h0n, c0n, h1n, c1n)

    h0, c0, h1, c1 = lax.fori_loop(1, T, body, (h0, c0, h1, c1), unroll=True)

    # ---- drain: layer-1 step T-1 consumes h0_{T-1} ----
    hcat = jnp.concatenate([h0, h1], axis=1).astype(cdt)
    z1 = jnp.dot(hcat, wcat[:, G:], preferred_element_type=jnp.float32) + b1
    h1_last, _ = gates(z1, c1)

    # ---- out = fc(out[:, -1, :]) ----
    out_ref[...] = (jnp.dot(h1_last.astype(cdt), wfc_ref[...],
                            preferred_element_type=jnp.float32)
                    + bfc_ref[...])


def _pad_gate_cols(w, H, Hp):
    """Pad each of the 4 gate blocks along the last axis from H to Hp columns (zeros)."""
    if Hp == H:
        return w
    pads = [(0, 0)] * (w.ndim - 1) + [(0, Hp - H)]
    return jnp.concatenate(
        [jnp.pad(w[..., k * H:(k + 1) * H], pads) for k in range(4)], axis=-1)


def _pad_rows(w, H, Hp):
    if Hp == H:
        return w
    return jnp.pad(w, ((0, Hp - H), (0, 0)))


def custom_embedding(indices, X_matrix, column_matrix):
    """CustomEmbedding is not defined in the reference source.
    # TODO(synk): assumed semantics: per feature column j, concat the value
    # embedding X_matrix[idx[..., j]] with the column embedding column_matrix[j],
    # then flatten across features -> (B, T, F*(X_emb + col_emb)).
    """
    B, T, F = indices.shape
    val_emb = jnp.take(X_matrix, indices, axis=0)                  # (B, T, F, Xe)
    col_emb = jnp.broadcast_to(column_matrix[None, None],
                               (B, T, F, column_matrix.shape[1]))  # (B, T, F, Ce)
    emb = jnp.concatenate([val_emb, col_emb], axis=-1)             # (B, T, F, Xe+Ce)
    return emb.reshape(B, T, -1).astype(jnp.float32)


def lstm_model_forward(indices, params, *, compute_dtype=jnp.bfloat16):
    x = custom_embedding(indices, params["X_matrix"], params["column_matrix"])
    B, T, D = x.shape
    H = params["whh0"].shape[0]
    C = params["wfc"].shape[1]

    LANE, SUBLANE = 128, 8
    Hp = ((H + LANE - 1) // LANE) * LANE          # hidden padded to the lane tile
    Bp = ((B + SUBLANE - 1) // SUBLANE) * SUBLANE  # batch padded to the f32 sublane tile

    # Gate-blocked column padding H -> Hp (zeros), row zero-padding for h-indexed dims.
    wih0 = _pad_gate_cols(params["wih0"], H, Hp)                        # (D,  4Hp)
    b0 = _pad_gate_cols(params["b0"], H, Hp)                            # (1,  4Hp)
    whh0 = _pad_rows(_pad_gate_cols(params["whh0"], H, Hp), H, Hp)      # (Hp, 4Hp)
    wih1 = _pad_rows(_pad_gate_cols(params["wih1"], H, Hp), H, Hp)      # (Hp, 4Hp)
    whh1 = _pad_rows(_pad_gate_cols(params["whh1"], H, Hp), H, Hp)      # (Hp, 4Hp)
    b1 = _pad_gate_cols(params["b1"], H, Hp)                            # (1,  4Hp)
    wfc = _pad_rows(params["wfc"], H, Hp)                               # (Hp, C)

    # Combined recurrence weight: [h0, h1] @ wcat -> [z0_recurrence | z1_full].
    wcat = jnp.concatenate(
        [jnp.concatenate([whh0, wih1], axis=1),
         jnp.concatenate([jnp.zeros_like(whh0), whh1], axis=1)],
        axis=0)                                                         # (2Hp, 8Hp)

    # Time-major, batch padded to Bp, flattened to 2-D; every per-step slice is
    # a sublane-aligned (Bp, 4Hp) tile.
    x_p = jnp.pad(x, ((0, Bp - B), (0, 0), (0, 0)))
    x2d = jnp.transpose(x_p, (1, 0, 2)).reshape(T * Bp, D).astype(compute_dtype)

    vmem = pl.BlockSpec(memory_space=pltpu.MemorySpace.VMEM)
    out = pl.pallas_call(
        lstm_fused_kernel,
        out_shape=jax.ShapeDtypeStruct((Bp, C), jnp.float32),
        in_specs=[vmem] * 7,
        out_specs=vmem,
        scratch_shapes=[pltpu.VMEM((T * Bp, 4 * Hp), jnp.float32)],
    )(x2d,
      wih0.astype(compute_dtype), b0,
      wcat.astype(compute_dtype), b1,
      wfc.astype(compute_dtype), params["bfc"])

    return out[:B]  # drop padded batch rows


def init_params(key, *, input_size, hidden_size, num_classes,
                n_features, X_embedding_dims, column_embedding_dim, X_max):
    ks = jax.random.split(key, 12)
    H = hidden_size
    k = 1.0 / jnp.sqrt(H)

    def u(key, shape, bound):
        return jax.random.uniform(key, shape, jnp.float32, -bound, bound)

    params = {
        # embedding tables ~ torch.rand -> U[0, 1)
        "X_matrix": jax.random.uniform(ks[0], (X_max + 1, X_embedding_dims), jnp.float32),
        "column_matrix": jax.random.uniform(ks[1], (n_features, column_embedding_dim), jnp.float32),
        # LSTM layer 0 (stored transposed: (in, 4H)); bias = b_ih + b_hh folded together
        "wih0": u(ks[2], (input_size, 4 * H), k),
        "whh0": u(ks[3], (H, 4 * H), k),
        "b0":   u(ks[4], (1, 4 * H), k) + u(ks[5], (1, 4 * H), k),
        # LSTM layer 1
        "wih1": u(ks[6], (H, 4 * H), k),
        "whh1": u(ks[7], (H, 4 * H), k),
        "b1":   u(ks[8], (1, 4 * H), k) + u(ks[9], (1, 4 * H), k),
        # fc
        "wfc": u(ks[10], (H, num_classes), 1.0 / jnp.sqrt(H)),
        "bfc": u(ks[11], (1, num_classes), 1.0 / jnp.sqrt(H)),
    }
    return params


if __name__ == "__main__":
    # Small, self-consistent config.
    B, T = 2, 8
    n_features = 4
    X_embedding_dims = 8
    column_embedding_dim = 8
    X_min, X_max = 0, 100
    input_size = n_features * (X_embedding_dims + column_embedding_dim)  # 64
    hidden_size = 32
    num_classes = 5

    key = jax.random.PRNGKey(0)
    k_param, k_idx = jax.random.split(key)

    params = init_params(
        k_param,
        input_size=input_size, hidden_size=hidden_size, num_classes=num_classes,
        n_features=n_features, X_embedding_dims=X_embedding_dims,
        column_embedding_dim=column_embedding_dim, X_max=X_max,
    )

    indices = jax.random.randint(k_idx, (B, T, n_features), X_min, X_max + 1, jnp.int32)

    out = lstm_model_forward(indices, params)
    out = jax.block_until_ready(out)
    assert out.shape == (B, num_classes), out.shape
    assert bool(jnp.all(jnp.isfinite(out))), "non-finite output"
    print("KERNEL_OK")
</pallas_src>

<mosaic_0001>
module attributes {stable_mosaic.version = 11 : i64} {
  func.func @lstm_fused_kernel(%arg0: memref<64x64xbf16, #tpu.memory_space<vmem>>, %arg1: memref<64x512xbf16, #tpu.memory_space<vmem>>, %arg2: memref<1x512xf32, #tpu.memory_space<vmem>>, %arg3: memref<256x1024xbf16, #tpu.memory_space<vmem>>, %arg4: memref<1x512xf32, #tpu.memory_space<vmem>>, %arg5: memref<128x5xbf16, #tpu.memory_space<vmem>>, %arg6: memref<1x5xf32, #tpu.memory_space<vmem>>, %arg7: memref<8x5xf32, #tpu.memory_space<vmem>>, %arg8: memref<64x512xf32, #tpu.memory_space<vmem>>) attributes {dimension_semantics = [], scalar_prefetch = 0 : i64, scratch_operands = 1 : i64, tpu.core_type = #tpu.core_type<tc>} {
    %c0 = arith.constant 0 : index
    %c0_0 = arith.constant 0 : index
    %0 = vector.load %arg0[%c0, %c0_0] : memref<64x64xbf16, #tpu.memory_space<vmem>>, vector<64x64xbf16>
    %c0_1 = arith.constant 0 : index
    %c0_2 = arith.constant 0 : index
    %1 = vector.load %arg1[%c0_1, %c0_2] : memref<64x512xbf16, #tpu.memory_space<vmem>>, vector<64x512xbf16>
    %cst = arith.constant dense<0.000000e+00> : vector<64x512xf32>
    %2 = tpu.matmul %0, %1, %cst {dimension_numbers = #tpu.dot_dimension_numbers<[1], [0], [0], [1], [0, 0, 1, 1], [], []>} : vector<64x64xbf16>, vector<64x512xbf16>, vector<64x512xf32> -> vector<64x512xf32>
    %c0_3 = arith.constant 0 : index
    %c0_4 = arith.constant 0 : index
    %3 = vector.load %arg2[%c0_3, %c0_4] : memref<1x512xf32, #tpu.memory_space<vmem>>, vector<1x512xf32>
    %4 = vector.broadcast %3 : vector<1x512xf32> to vector<64x512xf32>
    %5 = arith.addf %2, %4 : vector<64x512xf32>
    %c0_5 = arith.constant 0 : index
    %c0_6 = arith.constant 0 : index
    %6 = vector.load %arg8[%c0_5, %c0_6] : memref<64x512xf32, #tpu.memory_space<vmem>>, vector<64x512xf32>
    tpu.vector_store %arg8[%c0_5, %c0_6], %5 {strides = array<i32>} : memref<64x512xf32, #tpu.memory_space<vmem>>, vector<64x512xf32>,
    %c0_7 = arith.constant 0 : index
    %c0_8 = arith.constant 0 : index
    %7 = vector.load %arg3[%c0_7, %c0_8] : memref<256x1024xbf16, #tpu.memory_space<vmem>>, vector<256x1024xbf16>
    %c0_9 = arith.constant 0 : index
    %c0_10 = arith.constant 0 : index
    %8 = vector.load %arg4[%c0_9, %c0_10] : memref<1x512xf32, #tpu.memory_space<vmem>>, vector<1x512xf32>
    %cst_11 = arith.constant 0.000000e+00 : f32
    %9 = vector.broadcast %cst_11 : f32 to vector<8x128xf32>
    %c0_12 = arith.constant 0 : index
    %c0_13 = arith.constant 0 : index
    %10 = vector.load %arg8[%c0_12, %c0_13] : memref<64x512xf32, #tpu.memory_space<vmem>>, vector<8x512xf32>
    %11 = vector.extract_strided_slice %10 {offsets = [0, 0], sizes = [8, 128], strides = [1, 1]} : vector<8x512xf32> to vector<8x128xf32>
    %12 = arith.negf %11 : vector<8x128xf32>
    %13 = math.exp %12 : vector<8x128xf32>
    %cst_14 = arith.constant 1.000000e+00 : f32
    %14 = vector.broadcast %cst_14 : f32 to vector<8x128xf32>
    %15 = arith.addf %14, %13 : vector<8x128xf32>
    %16 = arith.divf %14, %15 : vector<8x128xf32>
    %17 = vector.extract_strided_slice %10 {offsets = [0, 128], sizes = [8, 128], strides = [1, 1]} : vector<8x512xf32> to vector<8x128xf32>
    %18 = arith.negf %17 : vector<8x128xf32>
    %19 = math.exp %18 : vector<8x128xf32>
    %cst_15 = arith.constant 1.000000e+00 : f32
    %20 = vector.broadcast %cst_15 : f32 to vector<8x128xf32>
    %21 = arith.addf %20, %19 : vector<8x128xf32>
    %22 = arith.divf %20, %21 : vector<8x128xf32>
    %23 = vector.extract_strided_slice %10 {offsets = [0, 256], sizes = [8, 128], strides = [1, 1]} : vector<8x512xf32> to vector<8x128xf32>
    %24 = math.tanh %23 : vector<8x128xf32>
    %25 = vector.extract_strided_slice %10 {offsets = [0, 384], sizes = [8, 128], strides = [1, 1]} : vector<8x512xf32> to vector<8x128xf32>
    %26 = arith.negf %25 : vector<8x128xf32>
    %27 = math.exp %26 : vector<8x128xf32>
    %cst_16 = arith.constant 1.000000e+00 : f32
    %28 = vector.broadcast %cst_16 : f32 to vector<8x128xf32>
    %29 = arith.addf %28, %27 : vector<8x128xf32>
    %30 = arith.divf %28, %29 : vector<8x128xf32>
    %31 = arith.mulf %22, %9 : vector<8x128xf32>
    %32 = arith.mulf %16, %24 : vector<8x128xf32>
    %33 = arith.addf %31, %32 : vector<8x128xf32>
    %34 = math.tanh %33 : vector<8x128xf32>
    %35 = arith.mulf %30, %34 : vector<8x128xf32>
    %c1_i32 = arith.constant 1 : i32
    %36 = tpu.concatenate %35, %9 in 1 : vector<8x128xf32>, vector<8x128xf32> -> vector<8x256xf32>
    %37 = arith.truncf %36 : vector<8x256xf32> to vector<8x256xbf16>
    %cst_17 = arith.constant dense<0.000000e+00> : vector<8x1024xf32>
    %38 = tpu.matmul %37, %7, %cst_17 {dimension_numbers = #tpu.dot_dimension_numbers<[1], [0], [0], [1], [0, 0, 1, 1], [], []>} : vector<8x256xbf16>, vector<256x1024xbf16>, vector<8x1024xf32> -> vector<8x1024xf32>
    %c8_i32 = arith.constant 8 : i32
    %39 = arith.muli %c1_i32, %c8_i32 : i32
    %40 = tpu.assume_multiple %39, 8 : i32
    %41 = arith.index_cast %40 : i32 to index
    %c0_18 = arith.constant 0 : index
    %42 = vector.load %arg8[%41, %c0_18] : memref<64x512xf32, #tpu.memory_space<vmem>>, vector<8x512xf32>
    %43 = vector.extract_strided_slice %38 {offsets = [0, 0], sizes = [8, 512], strides = [1, 1]} : vector<8x1024xf32> to vector<8x512xf32>
    %44 = arith.addf %42, %43 : vector<8x512xf32>
    %45 = vector.extract_strided_slice %38 {offsets = [0, 512], sizes = [8, 512], strides = [1, 1]} : vector<8x1024xf32> to vector<8x512xf32>
    %46 = vector.broadcast %8 : vector<1x512xf32> to vector<8x512xf32>
    %47 = arith.addf %45, %46 : vector<8x512xf32>
    %48 = vector.extract_strided_slice %44 {offsets = [0, 0], sizes = [8, 128], strides = [1, 1]} : vector<8x512xf32> to vector<8x128xf32>
    %49 = arith.negf %48 : vector<8x128xf32>
    %50 = math.exp %49 : vector<8x128xf32>
    %cst_19 = arith.constant 1.000000e+00 : f32
    %51 = vector.broadcast %cst_19 : f32 to vector<8x128xf32>
    %52 = arith.addf %51, %50 : vector<8x128xf32>
    %53 = arith.divf %51, %52 : vector<8x128xf32>
    %54 = vector.extract_strided_slice %44 {offsets = [0, 128], sizes = [8, 128], strides = [1, 1]} : vector<8x512xf32> to vector<8x128xf32>
    %55 = arith.negf %54 : vector<8x128xf32>
    %56 = math.exp %55 : vector<8x128xf32>
    %cst_20 = arith.constant 1.000000e+00 : f32
    %57 = vector.broadcast %cst_20 : f32 to vector<8x128xf32>
    %58 = arith.addf %57, %56 : vector<8x128xf32>
    %59 = arith.divf %57, %58 : vector<8x128xf32>
    %60 = vector.extract_strided_slice %44 {offsets = [0, 256], sizes = [8, 128], strides = [1, 1]} : vector<8x512xf32> to vector<8x128xf32>
    %61 = math.tanh %60 : vector<8x128xf32>
    %62 = vector.extract_strided_slice %44 {offsets = [0, 384], sizes = [8, 128], strides = [1, 1]} : vector<8x512xf32> to vector<8x128xf32>
    %63 = arith.negf %62 : vector<8x128xf32>
    %64 = math.exp %63 : vector<8x128xf32>
    %cst_21 = arith.constant 1.000000e+00 : f32
    %65 = vector.broadcast %cst_21 : f32 to vector<8x128xf32>
    %66 = arith.addf %65, %64 : vector<8x128xf32>
    %67 = arith.divf %65, %66 : vector<8x128xf32>
    %68 = arith.mulf %59, %33 : vector<8x128xf32>
    %69 = arith.mulf %53, %61 : vector<8x128xf32>
    %70 = arith.addf %68, %69 : vector<8x128xf32>
    %71 = math.tanh %70 : vector<8x128xf32>
    %72 = arith.mulf %67, %71 : vector<8x128xf32>
    %73 = vector.extract_strided_slice %47 {offsets = [0, 0], sizes = [8, 128], strides = [1, 1]} : vector<8x512xf32> to vector<8x128xf32>
    %74 = arith.negf %73 : vector<8x128xf32>
    %75 = math.exp %74 : vector<8x128xf32>
    %cst_22 = arith.constant 1.000000e+00 : f32
    %76 = vector.broadcast %cst_22 : f32 to vector<8x128xf32>
    %77 = arith.addf %76, %75 : vector<8x128xf32>
    %78 = arith.divf %76, %77 : vector<8x128xf32>
    %79 = vector.extract_strided_slice %47 {offsets = [0, 128], sizes = [8, 128], strides = [1, 1]} : vector<8x512xf32> to vector<8x128xf32>
    %80 = arith.negf %79 : vector<8x128xf32>
    %81 = math.exp %80 : vector<8x128xf32>
    %cst_23 = arith.constant 1.000000e+00 : f32
    %82 = vector.broadcast %cst_23 : f32 to vector<8x128xf32>
    %83 = arith.addf %82, %81 : vector<8x128xf32>
    %84 = arith.divf %82, %83 : vector<8x128xf32>
    %85 = vector.extract_strided_slice %47 {offsets = [0, 256], sizes = [8, 128], strides = [1, 1]} : vector<8x512xf32> to vector<8x128xf32>
    %86 = math.tanh %85 : vector<8x128xf32>
    %87 = vector.extract_strided_slice %47 {offsets = [0, 384], sizes = [8, 128], strides = [1, 1]} : vector<8x512xf32> to vector<8x128xf32>
    %88 = arith.negf %87 : vector<8x128xf32>
    %89 = math.exp %88 : vector<8x128xf32>
    %cst_24 = arith.constant 1.000000e+00 : f32
    %90 = vector.broadcast %cst_24 : f32 to vector<8x128xf32>
    %91 = arith.addf %90, %89 : vector<8x128xf32>
    %92 = arith.divf %90, %91 : vector<8x128xf32>
    %93 = arith.mulf %84, %9 : vector<8x128xf32>
    %94 = arith.mulf %78, %86 : vector<8x128xf32>
    %95 = arith.addf %93, %94 : vector<8x128xf32>
    %96 = math.tanh %95 : vector<8x128xf32>
    %97 = arith.mulf %92, %96 : vector<8x128xf32>
    %c2_i32 = arith.constant 2 : i32
    %98 = tpu.concatenate %72, %97 in 1 : vector<8x128xf32>, vector<8x128xf32> -> vector<8x256xf32>
    %99 = arith.truncf %98 : vector<8x256xf32> to vector<8x256xbf16>
    %cst_25 = arith.constant dense<0.000000e+00> : vector<8x1024xf32>
    %100 = tpu.matmul %99, %7, %cst_25 {dimension_numbers = #tpu.dot_dimension_numbers<[1], [0], [0], [1], [0, 0, 1, 1], [], []>} : vector<8x256xbf16>, vector<256x1024xbf16>, vector<8x1024xf32> -> vector<8x1024xf32>
    %c8_i32_26 = arith.constant 8 : i32
    %101 = arith.muli %c2_i32, %c8_i32_26 : i32
    %102 = tpu.assume_multiple %101, 8 : i32
    %103 = arith.index_cast %102 : i32 to index
    %c0_27 = arith.constant 0 : index
    %104 = vector.load %arg8[%103, %c0_27] : memref<64x512xf32, #tpu.memory_space<vmem>>, vector<8x512xf32>
    %105 = vector.extract_strided_slice %100 {offsets = [0, 0], sizes = [8, 512], strides = [1, 1]} : vector<8x1024xf32> to vector<8x512xf32>
    %106 = arith.addf %104, %105 : vector<8x512xf32>
    %107 = vector.extract_strided_slice %100 {offsets = [0, 512], sizes = [8, 512], strides = [1, 1]} : vector<8x1024xf32> to vector<8x512xf32>
    %108 = vector.broadcast %8 : vector<1x512xf32> to vector<8x512xf32>
    %109 = arith.addf %107, %108 : vector<8x512xf32>
    %110 = vector.extract_strided_slice %106 {offsets = [0, 0], sizes = [8, 128], strides = [1, 1]} : vector<8x512xf32> to vector<8x128xf32>
    %111 = arith.negf %110 : vector<8x128xf32>
    %112 = math.exp %111 : vector<8x128xf32>
    %cst_28 = arith.constant 1.000000e+00 : f32
    %113 = vector.broadcast %cst_28 : f32 to vector<8x128xf32>
    %114 = arith.addf %113, %112 : vector<8x128xf32>
    %115 = arith.divf %113, %114 : vector<8x128xf32>
    %116 = vector.extract_strided_slice %106 {offsets = [0, 128], sizes = [8, 128], strides = [1, 1]} : vector<8x512xf32> to vector<8x128xf32>
    %117 = arith.negf %116 : vector<8x128xf32>
    %118 = math.exp %117 : vector<8x128xf32>
    %cst_29 = arith.constant 1.000000e+00 : f32
    %119 = vector.broadcast %cst_29 : f32 to vector<8x128xf32>
    %120 = arith.addf %119, %118 : vector<8x128xf32>
    %121 = arith.divf %119, %120 : vector<8x128xf32>
    %122 = vector.extract_strided_slice %106 {offsets = [0, 256], sizes = [8, 128], strides = [1, 1]} : vector<8x512xf32> to vector<8x128xf32>
    %123 = math.tanh %122 : vector<8x128xf32>
    %124 = vector.extract_strided_slice %106 {offsets = [0, 384], sizes = [8, 128], strides = [1, 1]} : vector<8x512xf32> to vector<8x128xf32>
    %125 = arith.negf %124 : vector<8x128xf32>
    %126 = math.exp %125 : vector<8x128xf32>
    %cst_30 = arith.constant 1.000000e+00 : f32
    %127 = vector.broadcast %cst_30 : f32 to vector<8x128xf32>
    %128 = arith.addf %127, %126 : vector<8x128xf32>
    %129 = arith.divf %127, %128 : vector<8x128xf32>
    %130 = arith.mulf %121, %70 : vector<8x128xf32>
    %131 = arith.mulf %115, %123 : vector<8x128xf32>
    %132 = arith.addf %130, %131 : vector<8x128xf32>
    %133 = math.tanh %132 : vector<8x128xf32>
    %134 = arith.mulf %129, %133 : vector<8x128xf32>
    %135 = vector.extract_strided_slice %109 {offsets = [0, 0], sizes = [8, 128], strides = [1, 1]} : vector<8x512xf32> to vector<8x128xf32>
    %136 = arith.negf %135 : vector<8x128xf32>
    %137 = math.exp %136 : vector<8x128xf32>
    %cst_31 = arith.constant 1.000000e+00 : f32
    %138 = vector.broadcast %cst_31 : f32 to vector<8x128xf32>
    %139 = arith.addf %138, %137 : vector<8x128xf32>
    %140 = arith.divf %138, %139 : vector<8x128xf32>
    %141 = vector.extract_strided_slice %109 {offsets = [0, 128], sizes = [8, 128], strides = [1, 1]} : vector<8x512xf32> to vector<8x128xf32>
    %142 = arith.negf %141 : vector<8x128xf32>
    %143 = math.exp %142 : vector<8x128xf32>
    %cst_32 = arith.constant 1.000000e+00 : f32
    %144 = vector.broadcast %cst_32 : f32 to vector<8x128xf32>
    %145 = arith.addf %144, %143 : vector<8x128xf32>
    %146 = arith.divf %144, %145 : vector<8x128xf32>
    %147 = vector.extract_strided_slice %109 {offsets = [0, 256], sizes = [8, 128], strides = [1, 1]} : vector<8x512xf32> to vector<8x128xf32>
    %148 = math.tanh %147 : vector<8x128xf32>
    %149 = vector.extract_strided_slice %109 {offsets = [0, 384], sizes = [8, 128], strides = [1, 1]} : vector<8x512xf32> to vector<8x128xf32>
    %150 = arith.negf %149 : vector<8x128xf32>
    %151 = math.exp %150 : vector<8x128xf32>
    %cst_33 = arith.constant 1.000000e+00 : f32
    %152 = vector.broadcast %cst_33 : f32 to vector<8x128xf32>
    %153 = arith.addf %152, %151 : vector<8x128xf32>
    %154 = arith.divf %152, %153 : vector<8x128xf32>
    %155 = arith.mulf %146, %95 : vector<8x128xf32>
    %156 = arith.mulf %140, %148 : vector<8x128xf32>
    %157 = arith.addf %155, %156 : vector<8x128xf32>
    %158 = math.tanh %157 : vector<8x128xf32>
    %159 = arith.mulf %154, %158 : vector<8x128xf32>
    %c3_i32 = arith.constant 3 : i32
    %160 = tpu.concatenate %134, %159 in 1 : vector<8x128xf32>, vector<8x128xf32> -> vector<8x256xf32>
    %161 = arith.truncf %160 : vector<8x256xf32> to vector<8x256xbf16>
    %cst_34 = arith.constant dense<0.000000e+00> : vector<8x1024xf32>
    %162 = tpu.matmul %161, %7, %cst_34 {dimension_numbers = #tpu.dot_dimension_numbers<[1], [0], [0], [1], [0, 0, 1, 1], [], []>} : vector<8x256xbf16>, vector<256x1024xbf16>, vector<8x1024xf32> -> vector<8x1024xf32>
    %c8_i32_35 = arith.constant 8 : i32
    %163 = arith.muli %c3_i32, %c8_i32_35 : i32
    %164 = tpu.assume_multiple %163, 8 : i32
    %165 = arith.index_cast %164 : i32 to index
    %c0_36 = arith.constant 0 : index
    %166 = vector.load %arg8[%165, %c0_36] : memref<64x512xf32, #tpu.memory_space<vmem>>, vector<8x512xf32>
    %167 = vector.extract_strided_slice %162 {offsets = [0, 0], sizes = [8, 512], strides = [1, 1]} : vector<8x1024xf32> to vector<8x512xf32>
    %168 = arith.addf %166, %167 : vector<8x512xf32>
    %169 = vector.extract_strided_slice %162 {offsets = [0, 512], sizes = [8, 512], strides = [1, 1]} : vector<8x1024xf32> to vector<8x512xf32>
    %170 = vector.broadcast %8 : vector<1x512xf32> to vector<8x512xf32>
    %171 = arith.addf %169, %170 : vector<8x512xf32>
    %172 = vector.extract_strided_slice %168 {offsets = [0, 0], sizes = [8, 128], strides = [1, 1]} : vector<8x512xf32> to vector<8x128xf32>
    %173 = arith.negf %172 : vector<8x128xf32>
    %174 = math.exp %173 : vector<8x128xf32>
    %cst_37 = arith.constant 1.000000e+00 : f32
    %175 = vector.broadcast %cst_37 : f32 to vector<8x128xf32>
    %176 = arith.addf %175, %174 : vector<8x128xf32>
    %177 = arith.divf %175, %176 : vector<8x128xf32>
    %178 = vector.extract_strided_slice %168 {offsets = [0, 128], sizes = [8, 128], strides = [1, 1]} : vector<8x512xf32> to vector<8x128xf32>
    %179 = arith.negf %178 : vector<8x128xf32>
    %180 = math.exp %179 : vector<8x128xf32>
    %cst_38 = arith.constant 1.000000e+00 : f32
    %181 = vector.broadcast %cst_38 : f32 to vector<8x128xf32>
    %182 = arith.addf %181, %180 : vector<8x128xf32>
    %183 = arith.divf %181, %182 : vector<8x128xf32>
    %184 = vector.extract_strided_slice %168 {offsets = [0, 256], sizes = [8, 128], strides = [1, 1]} : vector<8x512xf32> to vector<8x128xf32>
    %185 = math.tanh %184 : vector<8x128xf32>
    %186 = vector.extract_strided_slice %168 {offsets = [0, 384], sizes = [8, 128], strides = [1, 1]} : vector<8x512xf32> to vector<8x128xf32>
    %187 = arith.negf %186 : vector<8x128xf32>
    %188 = math.exp %187 : vector<8x128xf32>
    %cst_39 = arith.constant 1.000000e+00 : f32
    %189 = vector.broadcast %cst_39 : f32 to vector<8x128xf32>
    %190 = arith.addf %189, %188 : vector<8x128xf32>
    %191 = arith.divf %189, %190 : vector<8x128xf32>
    %192 = arith.mulf %183, %132 : vector<8x128xf32>
    %193 = arith.mulf %177, %185 : vector<8x128xf32>
    %194 = arith.addf %192, %193 : vector<8x128xf32>
    %195 = math.tanh %194 : vector<8x128xf32>
    %196 = arith.mulf %191, %195 : vector<8x128xf32>
    %197 = vector.extract_strided_slice %171 {offsets = [0, 0], sizes = [8, 128], strides = [1, 1]} : vector<8x512xf32> to vector<8x128xf32>
    %198 = arith.negf %197 : vector<8x128xf32>
    %199 = math.exp %198 : vector<8x128xf32>
    %cst_40 = arith.constant 1.000000e+00 : f32
    %200 = vector.broadcast %cst_40 : f32 to vector<8x128xf32>
    %201 = arith.addf %200, %199 : vector<8x128xf32>
    %202 = arith.divf %200, %201 : vector<8x128xf32>
    %203 = vector.extract_strided_slice %171 {offsets = [0, 128], sizes = [8, 128], strides = [1, 1]} : vector<8x512xf32> to vector<8x128xf32>
    %204 = arith.negf %203 : vector<8x128xf32>
    %205 = math.exp %204 : vector<8x128xf32>
    %cst_41 = arith.constant 1.000000e+00 : f32
    %206 = vector.broadcast %cst_41 : f32 to vector<8x128xf32>
    %207 = arith.addf %206, %205 : vector<8x128xf32>
    %208 = arith.divf %206, %207 : vector<8x128xf32>
    %209 = vector.extract_strided_slice %171 {offsets = [0, 256], sizes = [8, 128], strides = [1, 1]} : vector<8x512xf32> to vector<8x128xf32>
    %210 = math.tanh %209 : vector<8x128xf32>
    %211 = vector.extract_strided_slice %171 {offsets = [0, 384], sizes = [8, 128], strides = [1, 1]} : vector<8x512xf32> to vector<8x128xf32>
    %212 = arith.negf %211 : vector<8x128xf32>
    %213 = math.exp %212 : vector<8x128xf32>
    %cst_42 = arith.constant 1.000000e+00 : f32
    %214 = vector.broadcast %cst_42 : f32 to vector<8x128xf32>
    %215 = arith.addf %214, %213 : vector<8x128xf32>
    %216 = arith.divf %214, %215 : vector<8x128xf32>
    %217 = arith.mulf %208, %157 : vector<8x128xf32>
    %218 = arith.mulf %202, %210 : vector<8x128xf32>
    %219 = arith.addf %217, %218 : vector<8x128xf32>
    %220 = math.tanh %219 : vector<8x128xf32>
    %221 = arith.mulf %216, %220 : vector<8x128xf32>
    %c4_i32 = arith.constant 4 : i32
    %222 = tpu.concatenate %196, %221 in 1 : vector<8x128xf32>, vector<8x128xf32> -> vector<8x256xf32>
    %223 = arith.truncf %222 : vector<8x256xf32> to vector<8x256xbf16>
    %cst_43 = arith.constant dense<0.000000e+00> : vector<8x1024xf32>
    %224 = tpu.matmul %223, %7, %cst_43 {dimension_numbers = #tpu.dot_dimension_numbers<[1], [0], [0], [1], [0, 0, 1, 1], [], []>} : vector<8x256xbf16>, vector<256x1024xbf16>, vector<8x1024xf32> -> vector<8x1024xf32>
    %c8_i32_44 = arith.constant 8 : i32
    %225 = arith.muli %c4_i32, %c8_i32_44 : i32
    %226 = tpu.assume_multiple %225, 8 : i32
    %227 = arith.index_cast %226 : i32 to index
    %c0_45 = arith.constant 0 : index
    %228 = vector.load %arg8[%227, %c0_45] : memref<64x512xf32, #tpu.memory_space<vmem>>, vector<8x512xf32>
    %229 = vector.extract_strided_slice %224 {offsets = [0, 0], sizes = [8, 512], strides = [1, 1]} : vector<8x1024xf32> to vector<8x512xf32>
    %230 = arith.addf %228, %229 : vector<8x512xf32>
    %231 = vector.extract_strided_slice %224 {offsets = [0, 512], sizes = [8, 512], strides = [1, 1]} : vector<8x1024xf32> to vector<8x512xf32>
    %232 = vector.broadcast %8 : vector<1x512xf32> to vector<8x512xf32>
    %233 = arith.addf %231, %232 : vector<8x512xf32>
    %234 = vector.extract_strided_slice %230 {offsets = [0, 0], sizes = [8, 128], strides = [1, 1]} : vector<8x512xf32> to vector<8x128xf32>
    %235 = arith.negf %234 : vector<8x128xf32>
    %236 = math.exp %235 : vector<8x128xf32>
    %cst_46 = arith.constant 1.000000e+00 : f32
    %237 = vector.broadcast %cst_46 : f32 to vector<8x128xf32>
    %238 = arith.addf %237, %236 : vector<8x128xf32>
    %239 = arith.divf %237, %238 : vector<8x128xf32>
    %240 = vector.extract_strided_slice %230 {offsets = [0, 128], sizes = [8, 128], strides = [1, 1]} : vector<8x512xf32> to vector<8x128xf32>
    %241 = arith.negf %240 : vector<8x128xf32>
    %242 = math.exp %241 : vector<8x128xf32>
    %cst_47 = arith.constant 1.000000e+00 : f32
    %243 = vector.broadcast %cst_47 : f32 to vector<8x128xf32>
    %244 = arith.addf %243, %242 : vector<8x128xf32>
    %245 = arith.divf %243, %244 : vector<8x128xf32>
    %246 = vector.extract_strided_slice %230 {offsets = [0, 256], sizes = [8, 128], strides = [1, 1]} : vector<8x512xf32> to vector<8x128xf32>
    %247 = math.tanh %246 : vector<8x128xf32>
    %248 = vector.extract_strided_slice %230 {offsets = [0, 384], sizes = [8, 128], strides = [1, 1]} : vector<8x512xf32> to vector<8x128xf32>
    %249 = arith.negf %248 : vector<8x128xf32>
    %250 = math.exp %249 : vector<8x128xf32>
    %cst_48 = arith.constant 1.000000e+00 : f32
    %251 = vector.broadcast %cst_48 : f32 to vector<8x128xf32>
    %252 = arith.addf %251, %250 : vector<8x128xf32>
    %253 = arith.divf %251, %252 : vector<8x128xf32>
    %254 = arith.mulf %245, %194 : vector<8x128xf32>
    %255 = arith.mulf %239, %247 : vector<8x128xf32>
    %256 = arith.addf %254, %255 : vector<8x128xf32>
    %257 = math.tanh %256 : vector<8x128xf32>
    %258 = arith.mulf %253, %257 : vector<8x128xf32>
    %259 = vector.extract_strided_slice %233 {offsets = [0, 0], sizes = [8, 128], strides = [1, 1]} : vector<8x512xf32> to vector<8x128xf32>
    %260 = arith.negf %259 : vector<8x128xf32>
    %261 = math.exp %260 : vector<8x128xf32>
    %cst_49 = arith.constant 1.000000e+00 : f32
    %262 = vector.broadcast %cst_49 : f32 to vector<8x128xf32>
    %263 = arith.addf %262, %261 : vector<8x128xf32>
    %264 = arith.divf %262, %263 : vector<8x128xf32>
    %265 = vector.extract_strided_slice %233 {offsets = [0, 128], sizes = [8, 128], strides = [1, 1]} : vector<8x512xf32> to vector<8x128xf32>
    %266 = arith.negf %265 : vector<8x128xf32>
    %267 = math.exp %266 : vector<8x128xf32>
    %cst_50 = arith.constant 1.000000e+00 : f32
    %268 = vector.broadcast %cst_50 : f32 to vector<8x128xf32>
    %269 = arith.addf %268, %267 : vector<8x128xf32>
    %270 = arith.divf %268, %269 : vector<8x128xf32>
    %271 = vector.extract_strided_slice %233 {offsets = [0, 256], sizes = [8, 128], strides = [1, 1]} : vector<8x512xf32> to vector<8x128xf32>
    %272 = math.tanh %271 : vector<8x128xf32>
    %273 = vector.extract_strided_slice %233 {offsets = [0, 384], sizes = [8, 128], strides = [1, 1]} : vector<8x512xf32> to vector<8x128xf32>
    %274 = arith.negf %273 : vector<8x128xf32>
    %275 = math.exp %274 : vector<8x128xf32>
    %cst_51 = arith.constant 1.000000e+00 : f32
    %276 = vector.broadcast %cst_51 : f32 to vector<8x128xf32>
    %277 = arith.addf %276, %275 : vector<8x128xf32>
    %278 = arith.divf %276, %277 : vector<8x128xf32>
    %279 = arith.mulf %270, %219 : vector<8x128xf32>
    %280 = arith.mulf %264, %272 : vector<8x128xf32>
    %281 = arith.addf %279, %280 : vector<8x128xf32>
    %282 = math.tanh %281 : vector<8x128xf32>
    %283 = arith.mulf %278, %282 : vector<8x128xf32>
    %c5_i32 = arith.constant 5 : i32
    %284 = tpu.concatenate %258, %283 in 1 : vector<8x128xf32>, vector<8x128xf32> -> vector<8x256xf32>
    %285 = arith.truncf %284 : vector<8x256xf32> to vector<8x256xbf16>
    %cst_52 = arith.constant dense<0.000000e+00> : vector<8x1024xf32>
    %286 = tpu.matmul %285, %7, %cst_52 {dimension_numbers = #tpu.dot_dimension_numbers<[1], [0], [0], [1], [0, 0, 1, 1], [], []>} : vector<8x256xbf16>, vector<256x1024xbf16>, vector<8x1024xf32> -> vector<8x1024xf32>
    %c8_i32_53 = arith.constant 8 : i32
    %287 = arith.muli %c5_i32, %c8_i32_53 : i32
    %288 = tpu.assume_multiple %287, 8 : i32
    %289 = arith.index_cast %288 : i32 to index
    %c0_54 = arith.constant 0 : index
    %290 = vector.load %arg8[%289, %c0_54] : memref<64x512xf32, #tpu.memory_space<vmem>>, vector<8x512xf32>
    %291 = vector.extract_strided_slice %286 {offsets = [0, 0], sizes = [8, 512], strides = [1, 1]} : vector<8x1024xf32> to vector<8x512xf32>
    %292 = arith.addf %290, %291 : vector<8x512xf32>
    %293 = vector.extract_strided_slice %286 {offsets = [0, 512], sizes = [8, 512], strides = [1, 1]} : vector<8x1024xf32> to vector<8x512xf32>
    %294 = vector.broadcast %8 : vector<1x512xf32> to vector<8x512xf32>
    %295 = arith.addf %293, %294 : vector<8x512xf32>
    %296 = vector.extract_strided_slice %292 {offsets = [0, 0], sizes = [8, 128], strides = [1, 1]} : vector<8x512xf32> to vector<8x128xf32>
    %297 = arith.negf %296 : vector<8x128xf32>
    %298 = math.exp %297 : vector<8x128xf32>
    %cst_55 = arith.constant 1.000000e+00 : f32
    %299 = vector.broadcast %cst_55 : f32 to vector<8x128xf32>
    %300 = arith.addf %299, %298 : vector<8x128xf32>
    %301 = arith.divf %299, %300 : vector<8x128xf32>
    %302 = vector.extract_strided_slice %292 {offsets = [0, 128], sizes = [8, 128], strides = [1, 1]} : vector<8x512xf32> to vector<8x128xf32>
    %303 = arith.negf %302 : vector<8x128xf32>
    %304 = math.exp %303 : vector<8x128xf32>
    %cst_56 = arith.constant 1.000000e+00 : f32
    %305 = vector.broadcast %cst_56 : f32 to vector<8x128xf32>
    %306 = arith.addf %305, %304 : vector<8x128xf32>
    %307 = arith.divf %305, %306 : vector<8x128xf32>
    %308 = vector.extract_strided_slice %292 {offsets = [0, 256], sizes = [8, 128], strides = [1, 1]} : vector<8x512xf32> to vector<8x128xf32>
    %309 = math.tanh %308 : vector<8x128xf32>
    %310 = vector.extract_strided_slice %292 {offsets = [0, 384], sizes = [8, 128], strides = [1, 1]} : vector<8x512xf32> to vector<8x128xf32>
    %311 = arith.negf %310 : vector<8x128xf32>
    %312 = math.exp %311 : vector<8x128xf32>
    %cst_57 = arith.constant 1.000000e+00 : f32
    %313 = vector.broadcast %cst_57 : f32 to vector<8x128xf32>
    %314 = arith.addf %313, %312 : vector<8x128xf32>
    %315 = arith.divf %313, %314 : vector<8x128xf32>
    %316 = arith.mulf %307, %256 : vector<8x128xf32>
    %317 = arith.mulf %301, %309 : vector<8x128xf32>
    %318 = arith.addf %316, %317 : vector<8x128xf32>
    %319 = math.tanh %318 : vector<8x128xf32>
    %320 = arith.mulf %315, %319 : vector<8x128xf32>
    %321 = vector.extract_strided_slice %295 {offsets = [0, 0], sizes = [8, 128], strides = [1, 1]} : vector<8x512xf32> to vector<8x128xf32>
    %322 = arith.negf %321 : vector<8x128xf32>
    %323 = math.exp %322 : vector<8x128xf32>
    %cst_58 = arith.constant 1.000000e+00 : f32
    %324 = vector.broadcast %cst_58 : f32 to vector<8x128xf32>
    %325 = arith.addf %324, %323 : vector<8x128xf32>
    %326 = arith.divf %324, %325 : vector<8x128xf32>
    %327 = vector.extract_strided_slice %295 {offsets = [0, 128], sizes = [8, 128], strides = [1, 1]} : vector<8x512xf32> to vector<8x128xf32>
    %328 = arith.negf %327 : vector<8x128xf32>
    %329 = math.exp %328 : vector<8x128xf32>
    %cst_59 = arith.constant 1.000000e+00 : f32
    %330 = vector.broadcast %cst_59 : f32 to vector<8x128xf32>
    %331 = arith.addf %330, %329 : vector<8x128xf32>
    %332 = arith.divf %330, %331 : vector<8x128xf32>
    %333 = vector.extract_strided_slice %295 {offsets = [0, 256], sizes = [8, 128], strides = [1, 1]} : vector<8x512xf32> to vector<8x128xf32>
    %334 = math.tanh %333 : vector<8x128xf32>
    %335 = vector.extract_strided_slice %295 {offsets = [0, 384], sizes = [8, 128], strides = [1, 1]} : vector<8x512xf32> to vector<8x128xf32>
    %336 = arith.negf %335 : vector<8x128xf32>
    %337 = math.exp %336 : vector<8x128xf32>
    %cst_60 = arith.constant 1.000000e+00 : f32
    %338 = vector.broadcast %cst_60 : f32 to vector<8x128xf32>
    %339 = arith.addf %338, %337 : vector<8x128xf32>
    %340 = arith.divf %338, %339 : vector<8x128xf32>
    %341 = arith.mulf %332, %281 : vector<8x128xf32>
    %342 = arith.mulf %326, %334 : vector<8x128xf32>
    %343 = arith.addf %341, %342 : vector<8x128xf32>
    %344 = math.tanh %343 : vector<8x128xf32>
    %345 = arith.mulf %340, %344 : vector<8x128xf32>
    %c6_i32 = arith.constant 6 : i32
    %346 = tpu.concatenate %320, %345 in 1 : vector<8x128xf32>, vector<8x128xf32> -> vector<8x256xf32>
    %347 = arith.truncf %346 : vector<8x256xf32> to vector<8x256xbf16>
    %cst_61 = arith.constant dense<0.000000e+00> : vector<8x1024xf32>
    %348 = tpu.matmul %347, %7, %cst_61 {dimension_numbers = #tpu.dot_dimension_numbers<[1], [0], [0], [1], [0, 0, 1, 1], [], []>} : vector<8x256xbf16>, vector<256x1024xbf16>, vector<8x1024xf32> -> vector<8x1024xf32>
    %c8_i32_62 = arith.constant 8 : i32
    %349 = arith.muli %c6_i32, %c8_i32_62 : i32
    %350 = tpu.assume_multiple %349, 8 : i32
    %351 = arith.index_cast %350 : i32 to index
    %c0_63 = arith.constant 0 : index
    %352 = vector.load %arg8[%351, %c0_63] : memref<64x512xf32, #tpu.memory_space<vmem>>, vector<8x512xf32>
    %353 = vector.extract_strided_slice %348 {offsets = [0, 0], sizes = [8, 512], strides = [1, 1]} : vector<8x1024xf32> to vector<8x512xf32>
    %354 = arith.addf %352, %353 : vector<8x512xf32>
    %355 = vector.extract_strided_slice %348 {offsets = [0, 512], sizes = [8, 512], strides = [1, 1]} : vector<8x1024xf32> to vector<8x512xf32>
    %356 = vector.broadcast %8 : vector<1x512xf32> to vector<8x512xf32>
    %357 = arith.addf %355, %356 : vector<8x512xf32>
    %358 = vector.extract_strided_slice %354 {offsets = [0, 0], sizes = [8, 128], strides = [1, 1]} : vector<8x512xf32> to vector<8x128xf32>
    %359 = arith.negf %358 : vector<8x128xf32>
    %360 = math.exp %359 : vector<8x128xf32>
    %cst_64 = arith.constant 1.000000e+00 : f32
    %361 = vector.broadcast %cst_64 : f32 to vector<8x128xf32>
    %362 = arith.addf %361, %360 : vector<8x128xf32>
    %363 = arith.divf %361, %362 : vector<8x128xf32>
    %364 = vector.extract_strided_slice %354 {offsets = [0, 128], sizes = [8, 128], strides = [1, 1]} : vector<8x512xf32> to vector<8x128xf32>
    %365 = arith.negf %364 : vector<8x128xf32>
    %366 = math.exp %365 : vector<8x128xf32>
    %cst_65 = arith.constant 1.000000e+00 : f32
    %367 = vector.broadcast %cst_65 : f32 to vector<8x128xf32>
    %368 = arith.addf %367, %366 : vector<8x128xf32>
    %369 = arith.divf %367, %368 : vector<8x128xf32>
    %370 = vector.extract_strided_slice %354 {offsets = [0, 256], sizes = [8, 128], strides = [1, 1]} : vector<8x512xf32> to vector<8x128xf32>
    %371 = math.tanh %370 : vector<8x128xf32>
    %372 = vector.extract_strided_slice %354 {offsets = [0, 384], sizes = [8, 128], strides = [1, 1]} : vector<8x512xf32> to vector<8x128xf32>
    %373 = arith.negf %372 : vector<8x128xf32>
    %374 = math.exp %373 : vector<8x128xf32>
    %cst_66 = arith.constant 1.000000e+00 : f32
    %375 = vector.broadcast %cst_66 : f32 to vector<8x128xf32>
    %376 = arith.addf %375, %374 : vector<8x128xf32>
    %377 = arith.divf %375, %376 : vector<8x128xf32>
    %378 = arith.mulf %369, %318 : vector<8x128xf32>
    %379 = arith.mulf %363, %371 : vector<8x128xf32>
    %380 = arith.addf %378, %379 : vector<8x128xf32>
    %381 = math.tanh %380 : vector<8x128xf32>
    %382 = arith.mulf %377, %381 : vector<8x128xf32>
    %383 = vector.extract_strided_slice %357 {offsets = [0, 0], sizes = [8, 128], strides = [1, 1]} : vector<8x512xf32> to vector<8x128xf32>
    %384 = arith.negf %383 : vector<8x128xf32>
    %385 = math.exp %384 : vector<8x128xf32>
    %cst_67 = arith.constant 1.000000e+00 : f32
    %386 = vector.broadcast %cst_67 : f32 to vector<8x128xf32>
    %387 = arith.addf %386, %385 : vector<8x128xf32>
    %388 = arith.divf %386, %387 : vector<8x128xf32>
    %389 = vector.extract_strided_slice %357 {offsets = [0, 128], sizes = [8, 128], strides = [1, 1]} : vector<8x512xf32> to vector<8x128xf32>
    %390 = arith.negf %389 : vector<8x128xf32>
    %391 = math.exp %390 : vector<8x128xf32>
    %cst_68 = arith.constant 1.000000e+00 : f32
    %392 = vector.broadcast %cst_68 : f32 to vector<8x128xf32>
    %393 = arith.addf %392, %391 : vector<8x128xf32>
    %394 = arith.divf %392, %393 : vector<8x128xf32>
    %395 = vector.extract_strided_slice %357 {offsets = [0, 256], sizes = [8, 128], strides = [1, 1]} : vector<8x512xf32> to vector<8x128xf32>
    %396 = math.tanh %395 : vector<8x128xf32>
    %397 = vector.extract_strided_slice %357 {offsets = [0, 384], sizes = [8, 128], strides = [1, 1]} : vector<8x512xf32> to vector<8x128xf32>
    %398 = arith.negf %397 : vector<8x128xf32>
    %399 = math.exp %398 : vector<8x128xf32>
    %cst_69 = arith.constant 1.000000e+00 : f32
    %400 = vector.broadcast %cst_69 : f32 to vector<8x128xf32>
    %401 = arith.addf %400, %399 : vector<8x128xf32>
    %402 = arith.divf %400, %401 : vector<8x128xf32>
    %403 = arith.mulf %394, %343 : vector<8x128xf32>
    %404 = arith.mulf %388, %396 : vector<8x128xf32>
    %405 = arith.addf %403, %404 : vector<8x128xf32>
    %406 = math.tanh %405 : vector<8x128xf32>
    %407 = arith.mulf %402, %406 : vector<8x128xf32>
    %c7_i32 = arith.constant 7 : i32
    %408 = tpu.concatenate %382, %407 in 1 : vector<8x128xf32>, vector<8x128xf32> -> vector<8x256xf32>
    %409 = arith.truncf %408 : vector<8x256xf32> to vector<8x256xbf16>
    %cst_70 = arith.constant dense<0.000000e+00> : vector<8x1024xf32>
    %410 = tpu.matmul %409, %7, %cst_70 {dimension_numbers = #tpu.dot_dimension_numbers<[1], [0], [0], [1], [0, 0, 1, 1], [], []>} : vector<8x256xbf16>, vector<256x1024xbf16>, vector<8x1024xf32> -> vector<8x1024xf32>
    %c8_i32_71 = arith.constant 8 : i32
    %411 = arith.muli %c7_i32, %c8_i32_71 : i32
    %412 = tpu.assume_multiple %411, 8 : i32
    %413 = arith.index_cast %412 : i32 to index
    %c0_72 = arith.constant 0 : index
    %414 = vector.load %arg8[%413, %c0_72] : memref<64x512xf32, #tpu.memory_space<vmem>>, vector<8x512xf32>
    %415 = vector.extract_strided_slice %410 {offsets = [0, 0], sizes = [8, 512], strides = [1, 1]} : vector<8x1024xf32> to vector<8x512xf32>
    %416 = arith.addf %414, %415 : vector<8x512xf32>
    %417 = vector.extract_strided_slice %410 {offsets = [0, 512], sizes = [8, 512], strides = [1, 1]} : vector<8x1024xf32> to vector<8x512xf32>
    %418 = vector.broadcast %8 : vector<1x512xf32> to vector<8x512xf32>
    %419 = arith.addf %417, %418 : vector<8x512xf32>
    %420 = vector.extract_strided_slice %416 {offsets = [0, 0], sizes = [8, 128], strides = [1, 1]} : vector<8x512xf32> to vector<8x128xf32>
    %421 = arith.negf %420 : vector<8x128xf32>
    %422 = math.exp %421 : vector<8x128xf32>
    %cst_73 = arith.constant 1.000000e+00 : f32
    %423 = vector.broadcast %cst_73 : f32 to vector<8x128xf32>
    %424 = arith.addf %423, %422 : vector<8x128xf32>
    %425 = arith.divf %423, %424 : vector<8x128xf32>
    %426 = vector.extract_strided_slice %416 {offsets = [0, 128], sizes = [8, 128], strides = [1, 1]} : vector<8x512xf32> to vector<8x128xf32>
    %427 = arith.negf %426 : vector<8x128xf32>
    %428 = math.exp %427 : vector<8x128xf32>
    %cst_74 = arith.constant 1.000000e+00 : f32
    %429 = vector.broadcast %cst_74 : f32 to vector<8x128xf32>
    %430 = arith.addf %429, %428 : vector<8x128xf32>
    %431 = arith.divf %429, %430 : vector<8x128xf32>
    %432 = vector.extract_strided_slice %416 {offsets = [0, 256], sizes = [8, 128], strides = [1, 1]} : vector<8x512xf32> to vector<8x128xf32>
    %433 = math.tanh %432 : vector<8x128xf32>
    %434 = vector.extract_strided_slice %416 {offsets = [0, 384], sizes = [8, 128], strides = [1, 1]} : vector<8x512xf32> to vector<8x128xf32>
    %435 = arith.negf %434 : vector<8x128xf32>
    %436 = math.exp %435 : vector<8x128xf32>
    %cst_75 = arith.constant 1.000000e+00 : f32
    %437 = vector.broadcast %cst_75 : f32 to vector<8x128xf32>
    %438 = arith.addf %437, %436 : vector<8x128xf32>
    %439 = arith.divf %437, %438 : vector<8x128xf32>
    %440 = arith.mulf %431, %380 : vector<8x128xf32>
    %441 = arith.mulf %425, %433 : vector<8x128xf32>
    %442 = arith.addf %440, %441 : vector<8x128xf32>
    %443 = math.tanh %442 : vector<8x128xf32>
    %444 = arith.mulf %439, %443 : vector<8x128xf32>
    %445 = vector.extract_strided_slice %419 {offsets = [0, 0], sizes = [8, 128], strides = [1, 1]} : vector<8x512xf32> to vector<8x128xf32>
    %446 = arith.negf %445 : vector<8x128xf32>
    %447 = math.exp %446 : vector<8x128xf32>
    %cst_76 = arith.constant 1.000000e+00 : f32
    %448 = vector.broadcast %cst_76 : f32 to vector<8x128xf32>
    %449 = arith.addf %448, %447 : vector<8x128xf32>
    %450 = arith.divf %448, %449 : vector<8x128xf32>
    %451 = vector.extract_strided_slice %419 {offsets = [0, 128], sizes = [8, 128], strides = [1, 1]} : vector<8x512xf32> to vector<8x128xf32>
    %452 = arith.negf %451 : vector<8x128xf32>
    %453 = math.exp %452 : vector<8x128xf32>
    %cst_77 = arith.constant 1.000000e+00 : f32
    %454 = vector.broadcast %cst_77 : f32 to vector<8x128xf32>
    %455 = arith.addf %454, %453 : vector<8x128xf32>
    %456 = arith.divf %454, %455 : vector<8x128xf32>
    %457 = vector.extract_strided_slice %419 {offsets = [0, 256], sizes = [8, 128], strides = [1, 1]} : vector<8x512xf32> to vector<8x128xf32>
    %458 = math.tanh %457 : vector<8x128xf32>
    %459 = vector.extract_strided_slice %419 {offsets = [0, 384], sizes = [8, 128], strides = [1, 1]} : vector<8x512xf32> to vector<8x128xf32>
    %460 = arith.negf %459 : vector<8x128xf32>
    %461 = math.exp %460 : vector<8x128xf32>
    %cst_78 = arith.constant 1.000000e+00 : f32
    %462 = vector.broadcast %cst_78 : f32 to vector<8x128xf32>
    %463 = arith.addf %462, %461 : vector<8x128xf32>
    %464 = arith.divf %462, %463 : vector<8x128xf32>
    %465 = arith.mulf %456, %405 : vector<8x128xf32>
    %466 = arith.mulf %450, %458 : vector<8x128xf32>
    %467 = arith.addf %465, %466 : vector<8x128xf32>
    %468 = math.tanh %467 : vector<8x128xf32>
    %469 = arith.mulf %464, %468 : vector<8x128xf32>
    %c7_i32_79 = arith.constant 7 : i32
    %470 = tpu.concatenate %444, %469 in 1 : vector<8x128xf32>, vector<8x128xf32> -> vector<8x256xf32>
    %471 = arith.truncf %470 : vector<8x256xf32> to vector<8x256xbf16>
    %472 = vector.extract_strided_slice %7 {offsets = [0, 512], sizes = [256, 512], strides = [1, 1]} : vector<256x1024xbf16> to vector<256x512xbf16>
    %cst_80 = arith.constant dense<0.000000e+00> : vector<8x512xf32>
    %473 = tpu.matmul %471, %472, %cst_80 {dimension_numbers = #tpu.dot_dimension_numbers<[1], [0], [0], [1], [0, 0, 1, 1], [], []>} : vector<8x256xbf16>, vector<256x512xbf16>, vector<8x512xf32> -> vector<8x512xf32>
    %474 = vector.broadcast %8 : vector<1x512xf32> to vector<8x512xf32>
    %475 = arith.addf %473, %474 : vector<8x512xf32>
    %476 = vector.extract_strided_slice %475 {offsets = [0, 0], sizes = [8, 128], strides = [1, 1]} : vector<8x512xf32> to vector<8x128xf32>
    %477 = arith.negf %476 : vector<8x128xf32>
    %478 = math.exp %477 : vector<8x128xf32>
    %cst_81 = arith.constant 1.000000e+00 : f32
    %479 = vector.broadcast %cst_81 : f32 to vector<8x128xf32>
    %480 = arith.addf %479, %478 : vector<8x128xf32>
    %481 = arith.divf %479, %480 : vector<8x128xf32>
    %482 = vector.extract_strided_slice %475 {offsets = [0, 128], sizes = [8, 128], strides = [1, 1]} : vector<8x512xf32> to vector<8x128xf32>
    %483 = arith.negf %482 : vector<8x128xf32>
    %484 = math.exp %483 : vector<8x128xf32>
    %cst_82 = arith.constant 1.000000e+00 : f32
    %485 = vector.broadcast %cst_82 : f32 to vector<8x128xf32>
    %486 = arith.addf %485, %484 : vector<8x128xf32>
    %487 = arith.divf %485, %486 : vector<8x128xf32>
    %488 = vector.extract_strided_slice %475 {offsets = [0, 256], sizes = [8, 128], strides = [1, 1]} : vector<8x512xf32> to vector<8x128xf32>
    %489 = math.tanh %488 : vector<8x128xf32>
    %490 = vector.extract_strided_slice %475 {offsets = [0, 384], sizes = [8, 128], strides = [1, 1]} : vector<8x512xf32> to vector<8x128xf32>
    %491 = arith.negf %490 : vector<8x128xf32>
    %492 = math.exp %491 : vector<8x128xf32>
    %cst_83 = arith.constant 1.000000e+00 : f32
    %493 = vector.broadcast %cst_83 : f32 to vector<8x128xf32>
    %494 = arith.addf %493, %492 : vector<8x128xf32>
    %495 = arith.divf %493, %494 : vector<8x128xf32>
    %496 = arith.mulf %487, %467 : vector<8x128xf32>
    %497 = arith.mulf %481, %489 : vector<8x128xf32>
    %498 = arith.addf %496, %497 : vector<8x128xf32>
    %499 = math.tanh %498 : vector<8x128xf32>
    %500 = arith.mulf %495, %499 : vector<8x128xf32>
    %501 = arith.truncf %500 : vector<8x128xf32> to vector<8x128xbf16>
    %c0_84 = arith.constant 0 : index
    %c0_85 = arith.constant 0 : index
    %502 = vector.load %arg5[%c0_84, %c0_85] : memref<128x5xbf16, #tpu.memory_space<vmem>>, vector<128x5xbf16>
    %cst_86 = arith.constant dense<0.000000e+00> : vector<8x5xf32>
    %503 = tpu.matmul %501, %502, %cst_86 {dimension_numbers = #tpu.dot_dimension_numbers<[1], [0], [0], [1], [0, 0, 1, 1], [], []>} : vector<8x128xbf16>, vector<128x5xbf16>, vector<8x5xf32> -> vector<8x5xf32>
    %c0_87 = arith.constant 0 : index
    %c0_88 = arith.constant 0 : index
    %504 = vector.load %arg6[%c0_87, %c0_88] : memref<1x5xf32, #tpu.memory_space<vmem>>, vector<1x5xf32>
    %505 = vector.broadcast %504 : vector<1x5xf32> to vector<8x5xf32>
    %506 = arith.addf %503, %505 : vector<8x5xf32>
    %c0_89 = arith.constant 0 : index
    %c0_90 = arith.constant 0 : index
    %507 = vector.load %arg7[%c0_89, %c0_90] : memref<8x5xf32, #tpu.memory_space<vmem>>, vector<8x5xf32>
    tpu.vector_store %arg7[%c0_89, %c0_90], %506 {strides = array<i32>} : memref<8x5xf32, #tpu.memory_space<vmem>>, vector<8x5xf32>,
    return
  }
}

</mosaic_0001>

<llo_original>
// kernel: tpu_custom_call.1
$region0: #{tpu_custom_call.1}
  #allocation0 [shape = 'u32[]', space=smem, size = 0x4, offset = 0x4, fixed_abs, tag = 'smem constant byte address 0x4 - core index']
  #allocation1 [shape = 'u32[72,128]{1,0:T(1,128)}', space=vmem, size = 0x9000, scoped, tag = 'internal scratch']
  #allocation2 [shape = 'f32[64,512]{1,0:T(8,128)}', space=vmem, size = 0x20000, scoped, tag = 'scratch operand']
  %s0 = inlined_call_operand.vmem [shape: bf16[64,64], index: 0, kind: input, shape index: {}]
  %s1 = inlined_call_operand.hbm [shape: bf16[64,512], index: 1, kind: input, shape index: {}]
  %s2 = inlined_call_operand.vmem [shape: f32[1,512], index: 2, kind: input, shape index: {}]
  %s3 = inlined_call_operand.hbm [shape: bf16[256,1024], index: 3, kind: input, shape index: {}]
  %s4 = inlined_call_operand.vmem [shape: f32[1,512], index: 4, kind: input, shape index: {}]
  %s5 = inlined_call_operand.vmem [shape: bf16[128,5], index: 5, kind: input, shape index: {}]
  %s6 = inlined_call_operand.vmem [shape: f32[1,5], index: 6, kind: input, shape index: {}]
  %s7 = inlined_call_operand.hbm [shape: f32[8,5], index: 7, kind: output, shape index: {}]
  %s8 = sld [smem:[#allocation0]]
  $region46: #{tpu_custom_call.1} parent=0
    _
  %s10 = ssub.s32 1, %s8
  %s11 = scalar_select 0, %s10, %s8
  $region1: #{tpu_custom_call.1} parent=0
    #allocation3 [shape = 'u8[65536]{0}', space=vmem, size = 0x10000, scoped, tag = 'input window, operand 1, single buffered']
    #allocation4 [shape = 's32[1]{0}', space=sflag, size = 0x4, scoped, tag = 'scoped memory for tpu_custom_call.1']
    #allocation5 [shape = 's32[1]{0}', space=sflag, size = 0x4, scoped, tag = 'scoped memory for tpu_custom_call.1']
    #allocation6 [shape = 'u8[524288]{0}', space=vmem, size = 0x80000, scoped, tag = 'input window, operand 3, single buffered']
    #allocation7 [shape = 's32[1]{0}', space=sflag, size = 0x4, scoped, tag = 'scoped memory for tpu_custom_call.1']
    #allocation8 [shape = 'u8[4096]{0}', space=vmem, size = 0x1000, scoped, tag = 'output window, operand 0, single buffered']
    %12 = vsyncpa [#allocation4], 0
    %13 = vsyncpa [#allocation7], 0
    %14 = vsyncpa [#allocation5], 0
    // Predicated region
    $region2: #{tpu_custom_call.1} parent=1 // pred_check
      _
    $region3: #{tpu_custom_call.1} parent=1 // pred_check_branch
      %16 = sbr.rel (0) target = $region5
    $region4: #{tpu_custom_call.1} parent=1 // pred_region
      _
    $region5: #{tpu_custom_call.1} parent=1 // pred_fallthru
      _
    // Predicated region
    $region6: #{tpu_custom_call.1} parent=1 // pred_check
      _
    $region7: #{tpu_custom_call.1} parent=1 // pred_check_branch
      %18 = sbr.rel (0) target = $region9
    $region8: #{tpu_custom_call.1} parent=1 // pred_region
      %20 = vsyncadd [#allocation4], 0
      %s21 = sshll.u32 %s1, 4
      %s22 = int_to_ptr.hbm [resolvable:$true] %s21
      %s23 = sshll.u32 [#allocation3], 4
      %s24 = int_to_ptr.vmem [resolvable:$true] %s23
      %29 = dma.hbm_to_vmem [thread:$0]  %s22, 2048, %s24, [#allocation4], 256, 256, 16
    $region9: #{tpu_custom_call.1} parent=1 // pred_fallthru
      _
    // Predicated region
    $region10: #{tpu_custom_call.1} parent=1 // pred_check
      _
    $region11: #{tpu_custom_call.1} parent=1 // pred_check_branch
      %31 = sbr.rel (0) target = $region13
    $region12: #{tpu_custom_call.1} parent=1 // pred_region
      _
    $region13: #{tpu_custom_call.1} parent=1 // pred_fallthru
      _
    // Predicated region
    $region14: #{tpu_custom_call.1} parent=1 // pred_check
      _
    $region15: #{tpu_custom_call.1} parent=1 // pred_check_branch
      %33 = sbr.rel (0) target = $region17
    $region16: #{tpu_custom_call.1} parent=1 // pred_region
      %35 = vsyncadd [#allocation7], 0
      %s36 = sshll.u32 %s3, 4
      %s37 = int_to_ptr.hbm [resolvable:$true] %s36
      %s38 = sshll.u32 [#allocation6], 4
      %s39 = int_to_ptr.vmem [resolvable:$true] %s38
      %44 = dma.hbm_to_vmem [thread:$0]  %s37, 16384, %s39, [#allocation7], 512, 512, 32
    $region17: #{tpu_custom_call.1} parent=1 // pred_fallthru
      _
    // Predicated region
    $region18: #{tpu_custom_call.1} parent=1 // pred_check
      _
    $region19: #{tpu_custom_call.1} parent=1 // pred_check_branch
      %46 = sbr.rel (0) target = $region21
    $region20: #{tpu_custom_call.1} parent=1 // pred_region
      _
    $region21: #{tpu_custom_call.1} parent=1 // pred_fallthru
      _
    // Predicated region
    $region22: #{tpu_custom_call.1} parent=1 // pred_check
      _
    $region23: #{tpu_custom_call.1} parent=1 // pred_check_branch
      %48 = sbr.rel (0) target = $region25
    $region24: #{tpu_custom_call.1} parent=1 // pred_region
      _
    $region25: #{tpu_custom_call.1} parent=1 // pred_fallthru
      _
    // Predicated region
    $region26: #{tpu_custom_call.1} parent=1 // pred_check
      _
    $region27: #{tpu_custom_call.1} parent=1 // pred_check_branch
      %50 = sbr.rel (0) target = $region29
    $region28: #{tpu_custom_call.1} parent=1 // pred_region
      _
    $region29: #{tpu_custom_call.1} parent=1 // pred_fallthru
      _
    // Predicated region
    $region30: #{tpu_custom_call.1} parent=1 // pred_check
      _
    $region31: #{tpu_custom_call.1} parent=1 // pred_check_branch
      %52 = sbr.rel (0) target = $region33
    $region32: #{tpu_custom_call.1} parent=1 // pred_region
      %54 = dma.done [#allocation4], 2048
    $region33: #{tpu_custom_call.1} parent=1 // pred_fallthru
      _
    // Predicated region
    $region34: #{tpu_custom_call.1} parent=1 // pred_check
      _
    $region35: #{tpu_custom_call.1} parent=1 // pred_check_branch
      %56 = sbr.rel (0) target = $region37
    $region36: #{tpu_custom_call.1} parent=1 // pred_region
      %58 = dma.done [#allocation7], 16384
    $region37: #{tpu_custom_call.1} parent=1 // pred_fallthru
      _
    %v60 = vld [vmem:[%s0] sm:$0xf]
    %v61 = vld [vmem:[%s0 + $0x4] sm:$0xf]
    %v62 = vld [vmem:[%s0 + $0x8] sm:$0xf]
    %v63 = vld [vmem:[%s0 + $0xc] sm:$0xf]
    %v64 = vld [vmem:[%s0 + $0x10] sm:$0xf]
    %v65 = vld [vmem:[%s0 + $0x14] sm:$0xf]
    %v66 = vld [vmem:[%s0 + $0x18] sm:$0xf]
    %v67 = vld [vmem:[%s0 + $0x1c] sm:$0xf]
    %v68 = vld [vmem:[#allocation3] sm:$0xff]
    %v69 = vld [vmem:[#allocation3 + $0x8] sm:$0xff]
    %v70 = vld [vmem:[#allocation3 + $0x10] sm:$0xff]
    %v71 = vld [vmem:[#allocation3 + $0x18] sm:$0xff]
    %v72 = vld [vmem:[#allocation3 + $0x20] sm:$0xff]
    %v73 = vld [vmem:[#allocation3 + $0x28] sm:$0xff]
    %v74 = vld [vmem:[#allocation3 + $0x30] sm:$0xff]
    %v75 = vld [vmem:[#allocation3 + $0x38] sm:$0xff]
    %v76 = vld [vmem:[#allocation3 + $0x40] sm:$0xff]
    %v77 = vld [vmem:[#allocation3 + $0x48] sm:$0xff]
    %v78 = vld [vmem:[#allocation3 + $0x50] sm:$0xff]
    %v79 = vld [vmem:[#allocation3 + $0x58] sm:$0xff]
    %v80 = vld [vmem:[#allocation3 + $0x60] sm:$0xff]
    %v81 = vld [vmem:[#allocation3 + $0x68] sm:$0xff]
    %v82 = vld [vmem:[#allocation3 + $0x70] sm:$0xff]
    %v83 = vld [vmem:[#allocation3 + $0x78] sm:$0xff]
    %v84 = vld [vmem:[%s2] sm:$0xf]
    %v86 = vperm.slane %v84, 0
    %v87 = vperm.slane %v84, 1
    %v88 = vperm.slane %v84, 2
    %v89 = vperm.slane %v84, 3
    %v102 = vunpack.c.l.b16 %v60
    %v103 = vunpack.c.l.b16 %v61
    %v104 = vunpack.c.l.b16 %v62
    %v105 = vunpack.c.l.b16 %v63
    %v106 = vunpack.c.l.b16 %v64
    %v107 = vunpack.c.l.b16 %v65
    %v108 = vunpack.c.l.b16 %v66
    %v109 = vunpack.c.l.b16 %v67
    %v110 = vpack.c.b16 %v103, %v102
    %v111 = vpack.c.b16 %v105, %v104
    %v112 = vpack.c.b16 %v107, %v106
    %v113 = vpack.c.b16 %v109, %v108
    %v130 = vunpack.c.l.b16 %v68
    %v131 = vunpack.c.h.b16 %v68
    %v132 = vunpack.c.l.b16 %v69
    %v133 = vunpack.c.h.b16 %v69
    %v134 = vunpack.c.l.b16 %v70
    %v135 = vunpack.c.h.b16 %v70
    %v136 = vunpack.c.l.b16 %v71
    %v137 = vunpack.c.h.b16 %v71
    %v138 = vunpack.c.l.b16 %v72
    %v139 = vunpack.c.h.b16 %v72
    %v140 = vunpack.c.l.b16 %v73
    %v141 = vunpack.c.h.b16 %v73
    %v142 = vunpack.c.l.b16 %v74
    %v143 = vunpack.c.h.b16 %v74
    %v144 = vunpack.c.l.b16 %v75
    %v145 = vunpack.c.h.b16 %v75
    %v146 = vunpack.c.l.b16 %v76
    %v147 = vunpack.c.h.b16 %v76
    %v148 = vunpack.c.l.b16 %v77
    %v149 = vunpack.c.h.b16 %v77
    %v150 = vunpack.c.l.b16 %v78
    %v151 = vunpack.c.h.b16 %v78
    %v152 = vunpack.c.l.b16 %v79
    %v153 = vunpack.c.h.b16 %v79
    %v154 = vunpack.c.l.b16 %v80
    %v155 = vunpack.c.h.b16 %v80
    %v156 = vunpack.c.l.b16 %v81
    %v157 = vunpack.c.h.b16 %v81
    %v158 = vunpack.c.l.b16 %v82
    %v159 = vunpack.c.h.b16 %v82
    %v160 = vunpack.c.l.b16 %v83
    %v161 = vunpack.c.h.b16 %v83
    %v162 = vpack.c.b16 %v134, %v130
    %v163 = vpack.c.b16 %v135, %v131
    %v164 = vpack.c.b16 %v136, %v132
    %v165 = vpack.c.b16 %v137, %v133
    %v166 = vpack.c.b16 %v142, %v138
    %v167 = vpack.c.b16 %v143, %v139
    %v168 = vpack.c.b16 %v144, %v140
    %v169 = vpack.c.b16 %v145, %v141
    %v170 = vpack.c.b16 %v150, %v146
    %v171 = vpack.c.b16 %v151, %v147
    %v172 = vpack.c.b16 %v152, %v148
    %v173 = vpack.c.b16 %v153, %v149
    %v174 = vpack.c.b16 %v158, %v154
    %v175 = vpack.c.b16 %v159, %v155
    %v176 = vpack.c.b16 %v160, %v156
    %v177 = vpack.c.b16 %v161, %v157
    %vm194 = vcmask 523264
    %v196 = vsel %vm194, %v110, 0
    %v199 = vsel %vm194, %v111, 0
    %v202 = vsel %vm194, %v112, 0
    %v205 = vsel %vm194, %v113, 0
    %207 = vmatpush.bf16.msra.mxu0 0
    %208 = vmatpush.bf16.msra.mxu0 0
    %209 = vmatpush.bf16.msra.mxu0 0
    %210 = vmatpush.bf16.msra.mxu0 0
    %211 = vmatpush.bf16.msra.mxu0 %v174
    %212 = vmatpush.bf16.msra.mxu0 %v170
    %213 = vmatpush.bf16.msra.mxu0 %v166
    %214 = vmatpush.bf16.msra.mxu0 %v162
    %215 = vmatmul.bf16.gmra.mxu0 %v196
    %v216 = vpop.f32.mrf.mxu0
    %v217 = vadd.f32 %v86, %v216
    %v218 = vpop.f32.mrf.mxu0
    %v219 = vadd.f32 %v86, %v218
    %220 = vmatmul.bf16.gmra.mxu0 %v199
    %v221 = vpop.f32.mrf.mxu0
    %v222 = vadd.f32 %v86, %v221
    %v223 = vpop.f32.mrf.mxu0
    %v224 = vadd.f32 %v86, %v223
    %225 = vmatmul.bf16.gmra.mxu0 %v202
    %v226 = vpop.f32.mrf.mxu0
    %v227 = vadd.f32 %v86, %v226
    %v228 = vpop.f32.mrf.mxu0
    %v229 = vadd.f32 %v86, %v228
    %230 = vmatmul.bf16.gmra.mxu0 %v205
    %v231 = vpop.f32.mrf.mxu0
    %v232 = vadd.f32 %v86, %v231
    %v233 = vpop.f32.mrf.mxu0
    %v234 = vadd.f32 %v86, %v233
    %235 = vdwg.mxu0
    %236 = vmatpush.bf16.msra.mxu0 0
    %237 = vmatpush.bf16.msra.mxu0 0
    %238 = vmatpush.bf16.msra.mxu0 0
    %239 = vmatpush.bf16.msra.mxu0 0
    %240 = vmatpush.bf16.msra.mxu0 %v175
    %241 = vmatpush.bf16.msra.mxu0 %v171
    %242 = vmatpush.bf16.msra.mxu0 %v167
    %243 = vmatpush.bf16.msra.mxu0 %v163
    %244 = vmatmul.bf16.gmra.mxu0 %v196
    %v245 = vpop.f32.mrf.mxu0
    %v246 = vadd.f32 %v87, %v245
    %v247 = vpop.f32.mrf.mxu0
    %v248 = vadd.f32 %v87, %v247
    %249 = vmatmul.bf16.gmra.mxu0 %v199
    %v250 = vpop.f32.mrf.mxu0
    %v251 = vadd.f32 %v87, %v250
    %v252 = vpop.f32.mrf.mxu0
    %v253 = vadd.f32 %v87, %v252
    %254 = vmatmul.bf16.gmra.mxu0 %v202
    %v255 = vpop.f32.mrf.mxu0
    %v256 = vadd.f32 %v87, %v255
    %v257 = vpop.f32.mrf.mxu0
    %v258 = vadd.f32 %v87, %v257
    %259 = vmatmul.bf16.gmra.mxu0 %v205
    %v260 = vpop.f32.mrf.mxu0
    %v261 = vadd.f32 %v87, %v260
    %v262 = vpop.f32.mrf.mxu0
    %v263 = vadd.f32 %v87, %v262
    %264 = vdwg.mxu0
    %265 = vmatpush.bf16.msra.mxu0 0
    %266 = vmatpush.bf16.msra.mxu0 0
    %267 = vmatpush.bf16.msra.mxu0 0
    %268 = vmatpush.bf16.msra.mxu0 0
    %269 = vmatpush.bf16.msra.mxu0 %v176
    %270 = vmatpush.bf16.msra.mxu0 %v172
    %271 = vmatpush.bf16.msra.mxu0 %v168
    %272 = vmatpush.bf16.msra.mxu0 %v164
    %273 = vmatmul.bf16.gmra.mxu0 %v196
    %v274 = vpop.f32.mrf.mxu0
    %v275 = vadd.f32 %v88, %v274
    %v276 = vpop.f32.mrf.mxu0
    %v277 = vadd.f32 %v88, %v276
    %278 = vmatmul.bf16.gmra.mxu0 %v199
    %v279 = vpop.f32.mrf.mxu0
    %v280 = vadd.f32 %v88, %v279
    %v281 = vpop.f32.mrf.mxu0
    %v282 = vadd.f32 %v88, %v281
    %283 = vmatmul.bf16.gmra.mxu0 %v202
    %v284 = vpop.f32.mrf.mxu0
    %v285 = vadd.f32 %v88, %v284
    %v286 = vpop.f32.mrf.mxu0
    %v287 = vadd.f32 %v88, %v286
    %288 = vmatmul.bf16.gmra.mxu0 %v205
    %v289 = vpop.f32.mrf.mxu0
    %v290 = vadd.f32 %v88, %v289
    %v291 = vpop.f32.mrf.mxu0
    %v292 = vadd.f32 %v88, %v291
    %293 = vdwg.mxu0
    %294 = vmatpush.bf16.msra.mxu0 0
    %295 = vmatpush.bf16.msra.mxu0 0
    %296 = vmatpush.bf16.msra.mxu0 0
    %297 = vmatpush.bf16.msra.mxu0 0
    %298 = vmatpush.bf16.msra.mxu0 %v177
    %299 = vmatpush.bf16.msra.mxu0 %v173
    %300 = vmatpush.bf16.msra.mxu0 %v169
    %301 = vmatpush.bf16.msra.mxu0 %v165
    %302 = vmatmul.bf16.gmra.mxu0 %v196
    %v303 = vpop.f32.mrf.mxu0
    %v304 = vadd.f32 %v89, %v303
    %v305 = vpop.f32.mrf.mxu0
    %v306 = vadd.f32 %v89, %v305
    %307 = vmatmul.bf16.gmra.mxu0 %v199
    %v308 = vpop.f32.mrf.mxu0
    %v309 = vadd.f32 %v89, %v308
    %v310 = vpop.f32.mrf.mxu0
    %v311 = vadd.f32 %v89, %v310
    %312 = vmatmul.bf16.gmra.mxu0 %v202
    %v313 = vpop.f32.mrf.mxu0
    %v314 = vadd.f32 %v89, %v313
    %v315 = vpop.f32.mrf.mxu0
    %v316 = vadd.f32 %v89, %v315
    %317 = vmatmul.bf16.gmra.mxu0 %v205
    %v318 = vpop.f32.mrf.mxu0
    %v319 = vadd.f32 %v89, %v318
    %v320 = vpop.f32.mrf.mxu0
    %v321 = vadd.f32 %v89, %v320
    %322 = vdwg.mxu0
    %323 = vst [vmem:[#allocation2] sm:$0xff] %v217
    %324 = vst [vmem:[#allocation2 + $0x8] sm:$0xff] %v246
    %325 = vst [vmem:[#allocation2 + $0x10] sm:$0xff] %v275
    %326 = vst [vmem:[#allocation2 + $0x18] sm:$0xff] %v304
    %327 = vst [vmem:[#allocation2 + $0x20] sm:$0xff] %v219
    %328 = vst [vmem:[#allocation2 + $0x28] sm:$0xff] %v248
    %329 = vst [vmem:[#allocation2 + $0x30] sm:$0xff] %v277
    %330 = vst [vmem:[#allocation2 + $0x38] sm:$0xff] %v306
    %331 = vst [vmem:[#allocation2 + $0x40] sm:$0xff] %v222
    %332 = vst [vmem:[#allocation2 + $0x48] sm:$0xff] %v251
    %333 = vst [vmem:[#allocation2 + $0x50] sm:$0xff] %v280
    %334 = vst [vmem:[#allocation2 + $0x58] sm:$0xff] %v309
    %335 = vst [vmem:[#allocation2 + $0x60] sm:$0xff] %v224
    %336 = vst [vmem:[#allocation2 + $0x68] sm:$0xff] %v253
    %337 = vst [vmem:[#allocation2 + $0x70] sm:$0xff] %v282
    %338 = vst [vmem:[#allocation2 + $0x78] sm:$0xff] %v311
    %339 = vst [vmem:[#allocation2 + $0x80] sm:$0xff] %v227
    %340 = vst [vmem:[#allocation2 + $0x88] sm:$0xff] %v256
    %341 = vst [vmem:[#allocation2 + $0x90] sm:$0xff] %v285
    %342 = vst [vmem:[#allocation2 + $0x98] sm:$0xff] %v314
    %343 = vst [vmem:[#allocation2 + $0xa0] sm:$0xff] %v229
    %344 = vst [vmem:[#allocation2 + $0xa8] sm:$0xff] %v258
    %345 = vst [vmem:[#allocation2 + $0xb0] sm:$0xff] %v287
    %346 = vst [vmem:[#allocation2 + $0xb8] sm:$0xff] %v316
    %347 = vst [vmem:[#allocation2 + $0xc0] sm:$0xff] %v232
    %348 = vst [vmem:[#allocation2 + $0xc8] sm:$0xff] %v261
    %349 = vst [vmem:[#allocation2 + $0xd0] sm:$0xff] %v290
    %350 = vst [vmem:[#allocation2 + $0xd8] sm:$0xff] %v319
    %351 = vst [vmem:[#allocation2 + $0xe0] sm:$0xff] %v234
    %352 = vst [vmem:[#allocation2 + $0xe8] sm:$0xff] %v263
    %353 = vst [vmem:[#allocation2 + $0xf0] sm:$0xff] %v292
    %354 = vst [vmem:[#allocation2 + $0xf8] sm:$0xff] %v321
    %v355 = vld [vmem:[#allocation6] sm:$0xff]
    %v356 = vld [vmem:[#allocation6 + $0x8] sm:$0xff]
    %v357 = vld [vmem:[#allocation6 + $0x10] sm:$0xff]
    %v358 = vld [vmem:[#allocation6 + $0x18] sm:$0xff]
    %v359 = vld [vmem:[#allocation6 + $0x20] sm:$0xff]
    %v360 = vld [vmem:[#allocation6 + $0x28] sm:$0xff]
    %v361 = vld [vmem:[#allocation6 + $0x30] sm:$0xff]
    %v362 = vld [vmem:[#allocation6 + $0x38] sm:$0xff]
    %v363 = vld [vmem:[#allocation6 + $0x40] sm:$0xff]
    %v364 = vld [vmem:[#allocation6 + $0x48] sm:$0xff]
    %v365 = vld [vmem:[#allocation6 + $0x50] sm:$0xff]
    %v366 = vld [vmem:[#allocation6 + $0x58] sm:$0xff]
    %v367 = vld [vmem:[#allocation6 + $0x60] sm:$0xff]
    %v368 = vld [vmem:[#allocation6 + $0x68] sm:$0xff]
    %v369 = vld [vmem:[#allocation6 + $0x70] sm:$0xff]
    %v370 = vld [vmem:[#allocation6 + $0x78] sm:$0xff]
    %v371 = vld [vmem:[#allocation6 + $0x80] sm:$0xff]
    %v372 = vld [vmem:[#allocation6 + $0x88] sm:$0xff]
    %v373 = vld [vmem:[#allocation6 + $0x90] sm:$0xff]
    %v374 = vld [vmem:[#allocation6 + $0x98] sm:$0xff]
    %v375 = vld [vmem:[#allocation6 + $0xa0] sm:$0xff]
    %v376 = vld [vmem:[#allocation6 + $0xa8] sm:$0xff]
    %v377 = vld [vmem:[#allocation6 + $0xb0] sm:$0xff]
    %v378 = vld [vmem:[#allocation6 + $0xb8] sm:$0xff]
    %v379 = vld [vmem:[#allocation6 + $0xc0] sm:$0xff]
    %v380 = vld [vmem:[#allocation6 + $0xc8] sm:$0xff]
    %v381 = vld [vmem:[#allocation6 + $0xd0] sm:$0xff]
    %v382 = vld [vmem:[#allocation6 + $0xd8] sm:$0xff]
    %v383 = vld [vmem:[#allocation6 + $0xe0] sm:$0xff]
    %v384 = vld [vmem:[#allocation6 + $0xe8] sm:$0xff]
    %v385 = vld [vmem:[#allocation6 + $0xf0] sm:$0xff]
    %v386 = vld [vmem:[#allocation6 + $0xf8] sm:$0xff]
    %v387 = vld [vmem:[#allocation6 + $0x100] sm:$0xff]
    %v388 = vld [vmem:[#allocation6 + $0x108] sm:$0xff]
    %v389 = vld [vmem:[#allocation6 + $0x110] sm:$0xff]
    %v390 = vld [vmem:[#allocation6 + $0x118] sm:$0xff]
    %v391 = vld [vmem:[#allocation6 + $0x120] sm:$0xff]
    %v392 = vld [vmem:[#allocation6 + $0x128] sm:$0xff]
    %v393 = vld [vmem:[#allocation6 + $0x130] sm:$0xff]
    %v394 = vld [vmem:[#allocation6 + $0x138] sm:$0xff]
    %v395 = vld [vmem:[#allocation6 + $0x140] sm:$0xff]
    %v396 = vld [vmem:[#allocation6 + $0x148] sm:$0xff]
    %v397 = vld [vmem:[#allocation6 + $0x150] sm:$0xff]
    %v398 = vld [vmem:[#allocation6 + $0x158] sm:$0xff]
    %v399 = vld [vmem:[#allocation6 + $0x160] sm:$0xff]
    %v400 = vld [vmem:[#allocation6 + $0x168] sm:$0xff]
    %v401 = vld [vmem:[#allocation6 + $0x170] sm:$0xff]
    %v402 = vld [vmem:[#allocation6 + $0x178] sm:$0xff]
    %v403 = vld [vmem:[#allocation6 + $0x180] sm:$0xff]
    %v404 = vld [vmem:[#allocation6 + $0x188] sm:$0xff]
    %v405 = vld [vmem:[#allocation6 + $0x190] sm:$0xff]
    %v406 = vld [vmem:[#allocation6 + $0x198] sm:$0xff]
    %v407 = vld [vmem:[#allocation6 + $0x1a0] sm:$0xff]
    %v408 = vld [vmem:[#allocation6 + $0x1a8] sm:$0xff]
    %v409 = vld [vmem:[#allocation6 + $0x1b0] sm:$0xff]
    %v410 = vld [vmem:[#allocation6 + $0x1b8] sm:$0xff]
    %v411 = vld [vmem:[#allocation6 + $0x1c0] sm:$0xff]
    %v412 = vld [vmem:[#allocation6 + $0x1c8] sm:$0xff]
    %v413 = vld [vmem:[#allocation6 + $0x1d0] sm:$0xff]
    %v414 = vld [vmem:[#allocation6 + $0x1d8] sm:$0xff]
    %v415 = vld [vmem:[#allocation6 + $0x1e0] sm:$0xff]
    %v416 = vld [vmem:[#allocation6 + $0x1e8] sm:$0xff]
    %v417 = vld [vmem:[#allocation6 + $0x1f0] sm:$0xff]
    %v418 = vld [vmem:[#allocation6 + $0x1f8] sm:$0xff]
    %v419 = vld [vmem:[#allocation6 + $0x200] sm:$0xff]
    %v420 = vld [vmem:[#allocation6 + $0x208] sm:$0xff]
    %v421 = vld [vmem:[#allocation6 + $0x210] sm:$0xff]
    %v422 = vld [vmem:[#allocation6 + $0x218] sm:$0xff]
    %v423 = vld [vmem:[#allocation6 + $0x220] sm:$0xff]
    %v424 = vld [vmem:[#allocation6 + $0x228] sm:$0xff]
    %v425 = vld [vmem:[#allocation6 + $0x230] sm:$0xff]
    %v426 = vld [vmem:[#allocation6 + $0x238] sm:$0xff]
    %v427 = vld [vmem:[#allocation6 + $0x240] sm:$0xff]
    %v428 = vld [vmem:[#allocation6 + $0x248] sm:$0xff]
    %v429 = vld [vmem:[#allocation6 + $0x250] sm:$0xff]
    %v430 = vld [vmem:[#allocation6 + $0x258] sm:$0xff]
    %v431 = vld [vmem:[#allocation6 + $0x260] sm:$0xff]
    %v432 = vld [vmem:[#allocation6 + $0x268] sm:$0xff]
    %v433 = vld [vmem:[#allocation6 + $0x270] sm:$0xff]
    %v434 = vld [vmem:[#allocation6 + $0x278] sm:$0xff]
    %v435 = vld [vmem:[#allocation6 + $0x280] sm:$0xff]
    %v436 = vld [vmem:[#allocation6 + $0x288] sm:$0xff]
    %v437 = vld [vmem:[#allocation6 + $0x290] sm:$0xff]
    %v438 = vld [vmem:[#allocation6 + $0x298] sm:$0xff]
    %v439 = vld [vmem:[#allocation6 + $0x2a0] sm:$0xff]
    %v440 = vld [vmem:[#allocation6 + $0x2a8] sm:$0xff]
    %v441 = vld [vmem:[#allocation6 + $0x2b0] sm:$0xff]
    %v442 = vld [vmem:[#allocation6 + $0x2b8] sm:$0xff]
    %v443 = vld [vmem:[#allocation6 + $0x2c0] sm:$0xff]
    %v444 = vld [vmem:[#allocation6 + $0x2c8] sm:$0xff]
    %v445 = vld [vmem:[#allocation6 + $0x2d0] sm:$0xff]
    %v446 = vld [vmem:[#allocation6 + $0x2d8] sm:$0xff]
    %v447 = vld [vmem:[#allocation6 + $0x2e0] sm:$0xff]
    %v448 = vld [vmem:[#allocation6 + $0x2e8] sm:$0xff]
    %v449 = vld [vmem:[#allocation6 + $0x2f0] sm:$0xff]
    %v450 = vld [vmem:[#allocation6 + $0x2f8] sm:$0xff]
    %v451 = vld [vmem:[#allocation6 + $0x300] sm:$0xff]
    %v452 = vld [vmem:[#allocation6 + $0x308] sm:$0xff]
    %v453 = vld [vmem:[#allocation6 + $0x310] sm:$0xff]
    %v454 = vld [vmem:[#allocation6 + $0x318] sm:$0xff]
    %v455 = vld [vmem:[#allocation6 + $0x320] sm:$0xff]
    %v456 = vld [vmem:[#allocation6 + $0x328] sm:$0xff]
    %v457 = vld [vmem:[#allocation6 + $0x330] sm:$0xff]
    %v458 = vld [vmem:[#allocation6 + $0x338] sm:$0xff]
    %v459 = vld [vmem:[#allocation6 + $0x340] sm:$0xff]
    %v460 = vld [vmem:[#allocation6 + $0x348] sm:$0xff]
    %v461 = vld [vmem:[#allocation6 + $0x350] sm:$0xff]
    %v462 = vld [vmem:[#allocation6 + $0x358] sm:$0xff]
    %v463 = vld [vmem:[#allocation6 + $0x360] sm:$0xff]
    %v464 = vld [vmem:[#allocation6 + $0x368] sm:$0xff]
    %v465 = vld [vmem:[#allocation6 + $0x370] sm:$0xff]
    %v466 = vld [vmem:[#allocation6 + $0x378] sm:$0xff]
    %v467 = vld [vmem:[#allocation6 + $0x380] sm:$0xff]
    %v468 = vld [vmem:[#allocation6 + $0x388] sm:$0xff]
    %v469 = vld [vmem:[#allocation6 + $0x390] sm:$0xff]
    %v470 = vld [vmem:[#allocation6 + $0x398] sm:$0xff]
    %v471 = vld [vmem:[#allocation6 + $0x3a0] sm:$0xff]
    %v472 = vld [vmem:[#allocation6 + $0x3a8] sm:$0xff]
    %v473 = vld [vmem:[#allocation6 + $0x3b0] sm:$0xff]
    %v474 = vld [vmem:[#allocation6 + $0x3b8] sm:$0xff]
    %v475 = vld [vmem:[#allocation6 + $0x3c0] sm:$0xff]
    %v476 = vld [vmem:[#allocation6 + $0x3c8] sm:$0xff]
    %v477 = vld [vmem:[#allocation6 + $0x3d0] sm:$0xff]
    %v478 = vld [vmem:[#allocation6 + $0x3d8] sm:$0xff]
    %v479 = vld [vmem:[#allocation6 + $0x3e0] sm:$0xff]
    %v480 = vld [vmem:[#allocation6 + $0x3e8] sm:$0xff]
    %v481 = vld [vmem:[#allocation6 + $0x3f0] sm:$0xff]
    %v482 = vld [vmem:[#allocation6 + $0x3f8] sm:$0xff]
    %v483 = vld [vmem:[%s4] sm:$0xf]
    %v484 = vld [vmem:[#allocation2] sm:$0xff]
    %v485 = vld [vmem:[#allocation2 + $0x8] sm:$0xff]
    %v486 = vld [vmem:[#allocation2 + $0x10] sm:$0xff]
    %v487 = vld [vmem:[#allocation2 + $0x18] sm:$0xff]
    %v488 = vxor.u32 %v484, 2147483648
    %v489 = vmul.f32 %v488, 1.442695
    %v490 = vpow.pop %v489
    %v491 = vadd.f32 %v490, 1.0
    %v492 = vrcp.pop %v491
    %v493 = vmul.f32 %v491, %v492
    %v494 = vsub.f32 1.0, %v493
    %v495 = vmul.f32 %v492, %v494
    %v496 = vadd.f32 %v492, %v495
    %vm497 = vweird.f32 %v491
    %vm498 = vweird.f32 %v492
    %vm499 = vmor %vm497, %vm498
    %v500 = vsel %vm499, %v492, %v496
    %v501 = vand.u32 2147483647, %v491
    %vm502 = vcmp.eq.f32.partialorder %v501, 8.507059e+37
    %v503 = vand.u32 %v491, 2147483648
    %v504 = vor.u32 1.1754944e-38, %v503
    %v505 = vsel %vm502, %v504, %v500
    %v506 = vmul.f32 1.0, %v505
    %v507 = vxor.u32 %v485, 2147483648
    %v508 = vmul.f32 %v507, 1.442695
    %v509 = vpow.pop %v508
    %v510 = vadd.f32 %v509, 1.0
    %v511 = vrcp.pop %v510
    %v512 = vmul.f32 %v510, %v511
    %v513 = vsub.f32 1.0, %v512
    %v514 = vmul.f32 %v511, %v513
    %v515 = vadd.f32 %v511, %v514
    %vm516 = vweird.f32 %v510
    %vm517 = vweird.f32 %v511
    %vm518 = vmor %vm516, %vm517
    %v519 = vsel %vm518, %v511, %v515
    %v520 = vand.u32 2147483647, %v510
    %vm521 = vcmp.eq.f32.partialorder %v520, 8.507059e+37
    %v522 = vand.u32 %v510, 2147483648
    %v523 = vor.u32 1.1754944e-38, %v522
    %v524 = vsel %vm521, %v523, %v519
    %v525 = vmul.f32 1.0, %v524
    %v526 = vtanh.pop %v486
    %v527 = vxor.u32 %v487, 2147483648
    %v528 = vmul.f32 %v527, 1.442695
    %v529 = vpow.pop %v528
    %v530 = vadd.f32 %v529, 1.0
    %v531 = vrcp.pop %v530
    %v532 = vmul.f32 %v530, %v531
    %v533 = vsub.f32 1.0, %v532
    %v534 = vmul.f32 %v531, %v533
    %v535 = vadd.f32 %v531, %v534
    %vm536 = vweird.f32 %v530
    %vm537 = vweird.f32 %v531
    %vm538 = vmor %vm536, %vm537
    %v539 = vsel %vm538, %v531, %v535
    %v540 = vand.u32 2147483647, %v530
    %vm541 = vcmp.eq.f32.partialorder %v540, 8.507059e+37
    %v542 = vand.u32 %v530, 2147483648
    %v543 = vor.u32 1.1754944e-38, %v542
    %v544 = vsel %vm541, %v543, %v539
    %v545 = vmul.f32 1.0, %v544
    %v546 = vmul.f32 %v525, 0.0
    %v547 = vmul.f32 %v506, %v526
    %v548 = vadd.f32 %v546, %v547
    %v549 = vtanh.pop %v548
    %v550 = vmul.f32 %v545, %v549
    %v551 = vpack.c.bf16 %v550, %v550
    %v552 = vpack.c.bf16 0.0, 0.0
    %v681 = vunpack.c.l.b16 %v355
    %v682 = vunpack.c.h.b16 %v355
    %v683 = vunpack.c.l.b16 %v356
    %v684 = vunpack.c.h.b16 %v356
    %v685 = vunpack.c.l.b16 %v357
    %v686 = vunpack.c.h.b16 %v357
    %v687 = vunpack.c.l.b16 %v358
    %v688 = vunpack.c.h.b16 %v358
    %v689 = vunpack.c.l.b16 %v359
    %v690 = vunpack.c.h.b16 %v359
    %v691 = vunpack.c.l.b16 %v360
    %v692 = vunpack.c.h.b16 %v360
    %v693 = vunpack.c.l.b16 %v361
    %v694 = vunpack.c.h.b16 %v361
    %v695 = vunpack.c.l.b16 %v362
    %v696 = vunpack.c.h.b16 %v362
    %v697 = vunpack.c.l.b16 %v363
    %v698 = vunpack.c.h.b16 %v363
    %v699 = vunpack.c.l.b16 %v364
    %v700 = vunpack.c.h.b16 %v364
    %v701 = vunpack.c.l.b16 %v365
    %v702 = vunpack.c.h.b16 %v365
    %v703 = vunpack.c.l.b16 %v366
    %v704 = vunpack.c.h.b16 %v366
    %v705 = vunpack.c.l.b16 %v367
    %v706 = vunpack.c.h.b16 %v367
    %v707 = vunpack.c.l.b16 %v368
    %v708 = vunpack.c.h.b16 %v368
    %v709 = vunpack.c.l.b16 %v369
    %v710 = vunpack.c.h.b16 %v369
    %v711 = vunpack.c.l.b16 %v370
    %v712 = vunpack.c.h.b16 %v370
    %v713 = vunpack.c.l.b16 %v371
    %v714 = vunpack.c.h.b16 %v371
    %v715 = vunpack.c.l.b16 %v372
    %v716 = vunpack.c.h.b16 %v372
    %v717 = vunpack.c.l.b16 %v373
    %v718 = vunpack.c.h.b16 %v373
    %v719 = vunpack.c.l.b16 %v374
    %v720 = vunpack.c.h.b16 %v374
    %v721 = vunpack.c.l.b16 %v375
    %v722 = vunpack.c.h.b16 %v375
    %v723 = vunpack.c.l.b16 %v376
    %v724 = vunpack.c.h.b16 %v376
    %v725 = vunpack.c.l.b16 %v377
    %v726 = vunpack.c.h.b16 %v377
    %v727 = vunpack.c.l.b16 %v378
    %v728 = vunpack.c.h.b16 %v378
    %v729 = vunpack.c.l.b16 %v379
    %v730 = vunpack.c.h.b16 %v379
    %v731 = vunpack.c.l.b16 %v380
    %v732 = vunpack.c.h.b16 %v380
    %v733 = vunpack.c.l.b16 %v381
    %v734 = vunpack.c.h.b16 %v381
    %v735 = vunpack.c.l.b16 %v382
    %v736 = vunpack.c.h.b16 %v382
    %v737 = vunpack.c.l.b16 %v383
    %v738 = vunpack.c.h.b16 %v383
    %v739 = vunpack.c.l.b16 %v384
    %v740 = vunpack.c.h.b16 %v384
    %v741 = vunpack.c.l.b16 %v385
    %v742 = vunpack.c.h.b16 %v385
    %v743 = vunpack.c.l.b16 %v386
    %v744 = vunpack.c.h.b16 %v386
    %v745 = vunpack.c.l.b16 %v387
    %v746 = vunpack.c.h.b16 %v387
    %v747 = vunpack.c.l.b16 %v388
    %v748 = vunpack.c.h.b16 %v388
    %v749 = vunpack.c.l.b16 %v389
    %v750 = vunpack.c.h.b16 %v389
    %v751 = vunpack.c.l.b16 %v390
    %v752 = vunpack.c.h.b16 %v390
    %v753 = vunpack.c.l.b16 %v391
    %v754 = vunpack.c.h.b16 %v391
    %v755 = vunpack.c.l.b16 %v392
    %v756 = vunpack.c.h.b16 %v392
    %v757 = vunpack.c.l.b16 %v393
    %v758 = vunpack.c.h.b16 %v393
    %v759 = vunpack.c.l.b16 %v394
    %v760 = vunpack.c.h.b16 %v394
    %v761 = vunpack.c.l.b16 %v395
    %v762 = vunpack.c.h.b16 %v395
    %v763 = vunpack.c.l.b16 %v396
    %v764 = vunpack.c.h.b16 %v396
    %v765 = vunpack.c.l.b16 %v397
    %v766 = vunpack.c.h.b16 %v397
    %v767 = vunpack.c.l.b16 %v398
    %v768 = vunpack.c.h.b16 %v398
    %v769 = vunpack.c.l.b16 %v399
    %v770 = vunpack.c.h.b16 %v399
    %v771 = vunpack.c.l.b16 %v400
    %v772 = vunpack.c.h.b16 %v400
    %v773 = vunpack.c.l.b16 %v401
    %v774 = vunpack.c.h.b16 %v401
    %v775 = vunpack.c.l.b16 %v402
    %v776 = vunpack.c.h.b16 %v402
    %v777 = vunpack.c.l.b16 %v403
    %v778 = vunpack.c.h.b16 %v403
    %v779 = vunpack.c.l.b16 %v404
    %v780 = vunpack.c.h.b16 %v404
    %v781 = vunpack.c.l.b16 %v405
    %v782 = vunpack.c.h.b16 %v405
    %v783 = vunpack.c.l.b16 %v406
    %v784 = vunpack.c.h.b16 %v406
    %v785 = vunpack.c.l.b16 %v407
    %v786 = vunpack.c.h.b16 %v407
    %v787 = vunpack.c.l.b16 %v408
    %v788 = vunpack.c.h.b16 %v408
    %v789 = vunpack.c.l.b16 %v409
    %v790 = vunpack.c.h.b16 %v409
    %v791 = vunpack.c.l.b16 %v410
    %v792 = vunpack.c.h.b16 %v410
    %v793 = vunpack.c.l.b16 %v411
    %v794 = vunpack.c.h.b16 %v411
    %v795 = vunpack.c.l.b16 %v412
    %v796 = vunpack.c.h.b16 %v412
    %v797 = vunpack.c.l.b16 %v413
    %v798 = vunpack.c.h.b16 %v413
    %v799 = vunpack.c.l.b16 %v414
    %v800 = vunpack.c.h.b16 %v414
    %v801 = vunpack.c.l.b16 %v415
    %v802 = vunpack.c.h.b16 %v415
    %v803 = vunpack.c.l.b16 %v416
    %v804 = vunpack.c.h.b16 %v416
    %v805 = vunpack.c.l.b16 %v417
    %v806 = vunpack.c.h.b16 %v417
    %v807 = vunpack.c.l.b16 %v418
    %v808 = vunpack.c.h.b16 %v418
    %v809 = vunpack.c.l.b16 %v419
    %v810 = vunpack.c.h.b16 %v419
    %v811 = vunpack.c.l.b16 %v420
    %v812 = vunpack.c.h.b16 %v420
    %v813 = vunpack.c.l.b16 %v421
    %v814 = vunpack.c.h.b16 %v421
    %v815 = vunpack.c.l.b16 %v422
    %v816 = vunpack.c.h.b16 %v422
    %v817 = vunpack.c.l.b16 %v423
    %v818 = vunpack.c.h.b16 %v423
    %v819 = vunpack.c.l.b16 %v424
    %v820 = vunpack.c.h.b16 %v424
    %v821 = vunpack.c.l.b16 %v425
    %v822 = vunpack.c.h.b16 %v425
    %v823 = vunpack.c.l.b16 %v426
    %v824 = vunpack.c.h.b16 %v426
    %v825 = vunpack.c.l.b16 %v427
    %v826 = vunpack.c.h.b16 %v427
    %v827 = vunpack.c.l.b16 %v428
    %v828 = vunpack.c.h.b16 %v428
    %v829 = vunpack.c.l.b16 %v429
    %v830 = vunpack.c.h.b16 %v429
    %v831 = vunpack.c.l.b16 %v430
    %v832 = vunpack.c.h.b16 %v430
    %v833 = vunpack.c.l.b16 %v431
    %v834 = vunpack.c.h.b16 %v431
    %v835 = vunpack.c.l.b16 %v432
    %v836 = vunpack.c.h.b16 %v432
    %v837 = vunpack.c.l.b16 %v433
    %v838 = vunpack.c.h.b16 %v433
    %v839 = vunpack.c.l.b16 %v434
    %v840 = vunpack.c.h.b16 %v434
    %v841 = vunpack.c.l.b16 %v435
    %v842 = vunpack.c.h.b16 %v435
    %v843 = vunpack.c.l.b16 %v436
    %v844 = vunpack.c.h.b16 %v436
    %v845 = vunpack.c.l.b16 %v437
    %v846 = vunpack.c.h.b16 %v437
    %v847 = vunpack.c.l.b16 %v438
    %v848 = vunpack.c.h.b16 %v438
    %v849 = vunpack.c.l.b16 %v439
    %v850 = vunpack.c.h.b16 %v439
    %v851 = vunpack.c.l.b16 %v440
    %v852 = vunpack.c.h.b16 %v440
    %v853 = vunpack.c.l.b16 %v441
    %v854 = vunpack.c.h.b16 %v441
    %v855 = vunpack.c.l.b16 %v442
    %v856 = vunpack.c.h.b16 %v442
    %v857 = vunpack.c.l.b16 %v443
    %v858 = vunpack.c.h.b16 %v443
    %v859 = vunpack.c.l.b16 %v444
    %v860 = vunpack.c.h.b16 %v444
    %v861 = vunpack.c.l.b16 %v445
    %v862 = vunpack.c.h.b16 %v445
    %v863 = vunpack.c.l.b16 %v446
    %v864 = vunpack.c.h.b16 %v446
    %v865 = vunpack.c.l.b16 %v447
    %v866 = vunpack.c.h.b16 %v447
    %v867 = vunpack.c.l.b16 %v448
    %v868 = vunpack.c.h.b16 %v448
    %v869 = vunpack.c.l.b16 %v449
    %v870 = vunpack.c.h.b16 %v449
    %v871 = vunpack.c.l.b16 %v450
    %v872 = vunpack.c.h.b16 %v450
    %v873 = vunpack.c.l.b16 %v451
    %v874 = vunpack.c.h.b16 %v451
    %v875 = vunpack.c.l.b16 %v452
    %v876 = vunpack.c.h.b16 %v452
    %v877 = vunpack.c.l.b16 %v453
    %v878 = vunpack.c.h.b16 %v453
    %v879 = vunpack.c.l.b16 %v454
    %v880 = vunpack.c.h.b16 %v454
    %v881 = vunpack.c.l.b16 %v455
    %v882 = vunpack.c.h.b16 %v455
    %v883 = vunpack.c.l.b16 %v456
    %v884 = vunpack.c.h.b16 %v456
    %v885 = vunpack.c.l.b16 %v457
    %v886 = vunpack.c.h.b16 %v457
    %v887 = vunpack.c.l.b16 %v458
    %v888 = vunpack.c.h.b16 %v458
    %v889 = vunpack.c.l.b16 %v459
    %v890 = vunpack.c.h.b16 %v459
    %v891 = vunpack.c.l.b16 %v460
    %v892 = vunpack.c.h.b16 %v460
    %v893 = vunpack.c.l.b16 %v461
    %v894 = vunpack.c.h.b16 %v461
    %v895 = vunpack.c.l.b16 %v462
    %v896 = vunpack.c.h.b16 %v462
    %v897 = vunpack.c.l.b16 %v463
    %v898 = vunpack.c.h.b16 %v463
    %v899 = vunpack.c.l.b16 %v464
    %v900 = vunpack.c.h.b16 %v464
    %v901 = vunpack.c.l.b16 %v465
    %v902 = vunpack.c.h.b16 %v465
    %v903 = vunpack.c.l.b16 %v466
    %v904 = vunpack.c.h.b16 %v466
    %v905 = vunpack.c.l.b16 %v467
    %v906 = vunpack.c.h.b16 %v467
    %v907 = vunpack.c.l.b16 %v468
    %v908 = vunpack.c.h.b16 %v468
    %v909 = vunpack.c.l.b16 %v469
    %v910 = vunpack.c.h.b16 %v469
    %v911 = vunpack.c.l.b16 %v470
    %v912 = vunpack.c.h.b16 %v470
    %v913 = vunpack.c.l.b16 %v471
    %v914 = vunpack.c.h.b16 %v471
    %v915 = vunpack.c.l.b16 %v472
    %v916 = vunpack.c.h.b16 %v472
    %v917 = vunpack.c.l.b16 %v473
    %v918 = vunpack.c.h.b16 %v473
    %v919 = vunpack.c.l.b16 %v474
    %v920 = vunpack.c.h.b16 %v474
    %v921 = vunpack.c.l.b16 %v475
    %v922 = vunpack.c.h.b16 %v475
    %v923 = vunpack.c.l.b16 %v476
    %v924 = vunpack.c.h.b16 %v476
    %v925 = vunpack.c.l.b16 %v477
    %v926 = vunpack.c.h.b16 %v477
    %v927 = vunpack.c.l.b16 %v478
    %v928 = vunpack.c.h.b16 %v478
    %v929 = vunpack.c.l.b16 %v479
    %v930 = vunpack.c.h.b16 %v479
    %v931 = vunpack.c.l.b16 %v480
    %v932 = vunpack.c.h.b16 %v480
    %v933 = vunpack.c.l.b16 %v481
    %v934 = vunpack.c.h.b16 %v481
    %v935 = vunpack.c.l.b16 %v482
    %v936 = vunpack.c.h.b16 %v482
    %v937 = vpack.c.b16 %v689, %v681
    %v938 = vpack.c.b16 %v690, %v682
    %v939 = vpack.c.b16 %v691, %v683
    %v940 = vpack.c.b16 %v692, %v684
    %v941 = vpack.c.b16 %v693, %v685
    %v942 = vpack.c.b16 %v694, %v686
    %v943 = vpack.c.b16 %v695, %v687
    %v944 = vpack.c.b16 %v696, %v688
    %v945 = vpack.c.b16 %v705, %v697
    %v946 = vpack.c.b16 %v706, %v698
    %v947 = vpack.c.b16 %v707, %v699
    %v948 = vpack.c.b16 %v708, %v700
    %v949 = vpack.c.b16 %v709, %v701
    %v950 = vpack.c.b16 %v710, %v702
    %v951 = vpack.c.b16 %v711, %v703
    %v952 = vpack.c.b16 %v712, %v704
    %v953 = vpack.c.b16 %v721, %v713
    %v954 = vpack.c.b16 %v722, %v714
    %v955 = vpack.c.b16 %v723, %v715
    %v956 = vpack.c.b16 %v724, %v716
    %v957 = vpack.c.b16 %v725, %v717
    %v958 = vpack.c.b16 %v726, %v718
    %v959 = vpack.c.b16 %v727, %v719
    %v960 = vpack.c.b16 %v728, %v720
    %v961 = vpack.c.b16 %v737, %v729
    %v962 = vpack.c.b16 %v738, %v730
    %v963 = vpack.c.b16 %v739, %v731
    %v964 = vpack.c.b16 %v740, %v732
    %v965 = vpack.c.b16 %v741, %v733
    %v966 = vpack.c.b16 %v742, %v734
    %v967 = vpack.c.b16 %v743, %v735
    %v968 = vpack.c.b16 %v744, %v736
    %v969 = vpack.c.b16 %v753, %v745
    %v970 = vpack.c.b16 %v754, %v746
    %v971 = vpack.c.b16 %v755, %v747
    %v972 = vpack.c.b16 %v756, %v748
    %v973 = vpack.c.b16 %v757, %v749
    %v974 = vpack.c.b16 %v758, %v750
    %v975 = vpack.c.b16 %v759, %v751
    %v976 = vpack.c.b16 %v760, %v752
    %v977 = vpack.c.b16 %v769, %v761
    %v978 = vpack.c.b16 %v770, %v762
    %v979 = vpack.c.b16 %v771, %v763
    %v980 = vpack.c.b16 %v772, %v764
    %v981 = vpack.c.b16 %v773, %v765
    %v982 = vpack.c.b16 %v774, %v766
    %v983 = vpack.c.b16 %v775, %v767
    %v984 = vpack.c.b16 %v776, %v768
    %v985 = vpack.c.b16 %v785, %v777
    %v986 = vpack.c.b16 %v786, %v778
    %v987 = vpack.c.b16 %v787, %v779
    %v988 = vpack.c.b16 %v788, %v780
    %v989 = vpack.c.b16 %v789, %v781
    %v990 = vpack.c.b16 %v790, %v782
    %v991 = vpack.c.b16 %v791, %v783
    %v992 = vpack.c.b16 %v792, %v784
    %v993 = vpack.c.b16 %v801, %v793
    %v994 = vpack.c.b16 %v802, %v794
    %v995 = vpack.c.b16 %v803, %v795
    %v996 = vpack.c.b16 %v804, %v796
    %v997 = vpack.c.b16 %v805, %v797
    %v998 = vpack.c.b16 %v806, %v798
    %v999 = vpack.c.b16 %v807, %v799
    %v1000 = vpack.c.b16 %v808, %v800
    %v1001 = vpack.c.b16 %v817, %v809
    %v1002 = vpack.c.b16 %v818, %v810
    %v1003 = vpack.c.b16 %v819, %v811
    %v1004 = vpack.c.b16 %v820, %v812
    %v1005 = vpack.c.b16 %v821, %v813
    %v1006 = vpack.c.b16 %v822, %v814
    %v1007 = vpack.c.b16 %v823, %v815
    %v1008 = vpack.c.b16 %v824, %v816
    %v1009 = vpack.c.b16 %v833, %v825
    %v1010 = vpack.c.b16 %v834, %v826
    %v1011 = vpack.c.b16 %v835, %v827
    %v1012 = vpack.c.b16 %v836, %v828
    %v1013 = vpack.c.b16 %v837, %v829
    %v1014 = vpack.c.b16 %v838, %v830
    %v1015 = vpack.c.b16 %v839, %v831
    %v1016 = vpack.c.b16 %v840, %v832
    %v1017 = vpack.c.b16 %v849, %v841
    %v1018 = vpack.c.b16 %v850, %v842
    %v1019 = vpack.c.b16 %v851, %v843
    %v1020 = vpack.c.b16 %v852, %v844
    %v1021 = vpack.c.b16 %v853, %v845
    %v1022 = vpack.c.b16 %v854, %v846
    %v1023 = vpack.c.b16 %v855, %v847
    %v1024 = vpack.c.b16 %v856, %v848
    %v1025 = vpack.c.b16 %v865, %v857
    %v1026 = vpack.c.b16 %v866, %v858
    %v1027 = vpack.c.b16 %v867, %v859
    %v1028 = vpack.c.b16 %v868, %v860
    %v1029 = vpack.c.b16 %v869, %v861
    %v1030 = vpack.c.b16 %v870, %v862
    %v1031 = vpack.c.b16 %v871, %v863
    %v1032 = vpack.c.b16 %v872, %v864
    %v1033 = vpack.c.b16 %v881, %v873
    %v1034 = vpack.c.b16 %v882, %v874
    %v1035 = vpack.c.b16 %v883, %v875
    %v1036 = vpack.c.b16 %v884, %v876
    %v1037 = vpack.c.b16 %v885, %v877
    %v1038 = vpack.c.b16 %v886, %v878
    %v1039 = vpack.c.b16 %v887, %v879
    %v1040 = vpack.c.b16 %v888, %v880
    %v1041 = vpack.c.b16 %v897, %v889
    %v1042 = vpack.c.b16 %v898, %v890
    %v1043 = vpack.c.b16 %v899, %v891
    %v1044 = vpack.c.b16 %v900, %v892
    %v1045 = vpack.c.b16 %v901, %v893
    %v1046 = vpack.c.b16 %v902, %v894
    %v1047 = vpack.c.b16 %v903, %v895
    %v1048 = vpack.c.b16 %v904, %v896
    %v1049 = vpack.c.b16 %v913, %v905
    %v1050 = vpack.c.b16 %v914, %v906
    %v1051 = vpack.c.b16 %v915, %v907
    %v1052 = vpack.c.b16 %v916, %v908
    %v1053 = vpack.c.b16 %v917, %v909
    %v1054 = vpack.c.b16 %v918, %v910
    %v1055 = vpack.c.b16 %v919, %v911
    %v1056 = vpack.c.b16 %v920, %v912
    %v1057 = vpack.c.b16 %v929, %v921
    %v1058 = vpack.c.b16 %v930, %v922
    %v1059 = vpack.c.b16 %v931, %v923
    %v1060 = vpack.c.b16 %v932, %v924
    %v1061 = vpack.c.b16 %v933, %v925
    %v1062 = vpack.c.b16 %v934, %v926
    %v1063 = vpack.c.b16 %v935, %v927
    %v1064 = vpack.c.b16 %v936, %v928
    %1193 = vmatpush.bf16.msra.mxu0 %v993
    %1194 = vmatpush.bf16.msra.mxu0 %v985
    %1195 = vmatpush.bf16.msra.mxu0 %v977
    %1196 = vmatpush.bf16.msra.mxu0 %v969
    %1197 = vmatpush.bf16.msra.mxu0 %v961
    %1198 = vmatpush.bf16.msra.mxu0 %v953
    %1199 = vmatpush.bf16.msra.mxu0 %v945
    %1200 = vmatpush.bf16.msra.mxu0 %v937
    %1201 = vmatmul.bf16.gmra.mxu0 %v551
    %v1202 = vpop.f32.mrf.mxu0
    %v1203 = vadd.f32 0.0, %v1202
    %v1204 = vpop.f32.mrf.mxu0
    %1205 = vdwg.mxu0
    %1206 = vmatpush.bf16.msra.mxu0 %v1057
    %1207 = vmatpush.bf16.msra.mxu0 %v1049
    %1208 = vmatpush.bf16.msra.mxu0 %v1041
    %1209 = vmatpush.bf16.msra.mxu0 %v1033
    %1210 = vmatpush.bf16.msra.mxu0 %v1025
    %1211 = vmatpush.bf16.msra.mxu0 %v1017
    %1212 = vmatpush.bf16.msra.mxu0 %v1009
    %1213 = vmatpush.bf16.msra.mxu0 %v1001
    %1214 = vmatmul.bf16.gmra.mxu0 %v552
    %v1215 = vpop.f32.mrf.mxu0
    %v1216 = vadd.f32 %v1203, %v1215
    %v1217 = vpop.f32.mrf.mxu0
    %1218 = vdwg.mxu0
    %1219 = vmatpush.bf16.msra.mxu0 %v994
    %1220 = vmatpush.bf16.msra.mxu0 %v986
    %1221 = vmatpush.bf16.msra.mxu0 %v978
    %1222 = vmatpush.bf16.msra.mxu0 %v970
    %1223 = vmatpush.bf16.msra.mxu0 %v962
    %1224 = vmatpush.bf16.msra.mxu0 %v954
    %1225 = vmatpush.bf16.msra.mxu0 %v946
    %1226 = vmatpush.bf16.msra.mxu0 %v938
    %1227 = vmatmul.bf16.gmra.mxu0 %v551
    %v1228 = vpop.f32.mrf.mxu0
    %v1229 = vadd.f32 0.0, %v1228
    %v1230 = vpop.f32.mrf.mxu0
    %1231 = vdwg.mxu0
    %1232 = vmatpush.bf16.msra.mxu0 %v1058
    %1233 = vmatpush.bf16.msra.mxu0 %v1050
    %1234 = vmatpush.bf16.msra.mxu0 %v1042
    %1235 = vmatpush.bf16.msra.mxu0 %v1034
    %1236 = vmatpush.bf16.msra.mxu0 %v1026
    %1237 = vmatpush.bf16.msra.mxu0 %v1018
    %1238 = vmatpush.bf16.msra.mxu0 %v1010
    %1239 = vmatpush.bf16.msra.mxu0 %v1002
    %1240 = vmatmul.bf16.gmra.mxu0 %v552
    %v1241 = vpop.f32.mrf.mxu0
    %v1242 = vadd.f32 %v1229, %v1241
    %v1243 = vpop.f32.mrf.mxu0
    %1244 = vdwg.mxu0
    %1245 = vmatpush.bf16.msra.mxu0 %v995
    %1246 = vmatpush.bf16.msra.mxu0 %v987
    %1247 = vmatpush.bf16.msra.mxu0 %v979
    %1248 = vmatpush.bf16.msra.mxu0 %v971
    %1249 = vmatpush.bf16.msra.mxu0 %v963
    %1250 = vmatpush.bf16.msra.mxu0 %v955
    %1251 = vmatpush.bf16.msra.mxu0 %v947
    %1252 = vmatpush.bf16.msra.mxu0 %v939
    %1253 = vmatmul.bf16.gmra.mxu0 %v551
    %v1254 = vpop.f32.mrf.mxu0
    %v1255 = vadd.f32 0.0, %v1254
    %v1256 = vpop.f32.mrf.mxu0
    %1257 = vdwg.mxu0
    %1258 = vmatpush.bf16.msra.mxu0 %v1059
    %1259 = vmatpush.bf16.msra.mxu0 %v1051
    %1260 = vmatpush.bf16.msra.mxu0 %v1043
    %1261 = vmatpush.bf16.msra.mxu0 %v1035
    %1262 = vmatpush.bf16.msra.mxu0 %v1027
    %1263 = vmatpush.bf16.msra.mxu0 %v1019
    %1264 = vmatpush.bf16.msra.mxu0 %v1011
    %1265 = vmatpush.bf16.msra.mxu0 %v1003
    %1266 = vmatmul.bf16.gmra.mxu0 %v552
    %v1267 = vpop.f32.mrf.mxu0
    %v1268 = vadd.f32 %v1255, %v1267
    %v1269 = vpop.f32.mrf.mxu0
    %1270 = vdwg.mxu0
    %1271 = vmatpush.bf16.msra.mxu0 %v996
    %1272 = vmatpush.bf16.msra.mxu0 %v988
    %1273 = vmatpush.bf16.msra.mxu0 %v980
    %1274 = vmatpush.bf16.msra.mxu0 %v972
    %1275 = vmatpush.bf16.msra.mxu0 %v964
    %1276 = vmatpush.bf16.msra.mxu0 %v956
    %1277 = vmatpush.bf16.msra.mxu0 %v948
    %1278 = vmatpush.bf16.msra.mxu0 %v940
    %1279 = vmatmul.bf16.gmra.mxu0 %v551
    %v1280 = vpop.f32.mrf.mxu0
    %v1281 = vadd.f32 0.0, %v1280
    %v1282 = vpop.f32.mrf.mxu0
    %1283 = vdwg.mxu0
    %1284 = vmatpush.bf16.msra.mxu0 %v1060
    %1285 = vmatpush.bf16.msra.mxu0 %v1052
    %1286 = vmatpush.bf16.msra.mxu0 %v1044
    %1287 = vmatpush.bf16.msra.mxu0 %v1036
    %1288 = vmatpush.bf16.msra.mxu0 %v1028
    %1289 = vmatpush.bf16.msra.mxu0 %v1020
    %1290 = vmatpush.bf16.msra.mxu0 %v1012
    %1291 = vmatpush.bf16.msra.mxu0 %v1004
    %1292 = vmatmul.bf16.gmra.mxu0 %v552
    %v1293 = vpop.f32.mrf.mxu0
    %v1294 = vadd.f32 %v1281, %v1293
    %v1295 = vpop.f32.mrf.mxu0
    %1296 = vdwg.mxu0
    %1297 = vmatpush.bf16.msra.mxu0 %v997
    %1298 = vmatpush.bf16.msra.mxu0 %v989
    %1299 = vmatpush.bf16.msra.mxu0 %v981
    %1300 = vmatpush.bf16.msra.mxu0 %v973
    %1301 = vmatpush.bf16.msra.mxu0 %v965
    %1302 = vmatpush.bf16.msra.mxu0 %v957
    %1303 = vmatpush.bf16.msra.mxu0 %v949
    %1304 = vmatpush.bf16.msra.mxu0 %v941
    %1305 = vmatmul.bf16.gmra.mxu0 %v551
    %v1306 = vpop.f32.mrf.mxu0
    %v1307 = vadd.f32 0.0, %v1306
    %v1308 = vpop.f32.mrf.mxu0
    %1309 = vdwg.mxu0
    %1310 = vmatpush.bf16.msra.mxu0 %v1061
    %1311 = vmatpush.bf16.msra.mxu0 %v1053
    %1312 = vmatpush.bf16.msra.mxu0 %v1045
    %1313 = vmatpush.bf16.msra.mxu0 %v1037
    %1314 = vmatpush.bf16.msra.mxu0 %v1029
    %1315 = vmatpush.bf16.msra.mxu0 %v1021
    %1316 = vmatpush.bf16.msra.mxu0 %v1013
    %1317 = vmatpush.bf16.msra.mxu0 %v1005
    %1318 = vmatmul.bf16.gmra.mxu0 %v552
    %v1319 = vpop.f32.mrf.mxu0
    %v1320 = vadd.f32 %v1307, %v1319
    %v1321 = vpop.f32.mrf.mxu0
    %1322 = vdwg.mxu0
    %1323 = vmatpush.bf16.msra.mxu0 %v998
    %1324 = vmatpush.bf16.msra.mxu0 %v990
    %1325 = vmatpush.bf16.msra.mxu0 %v982
    %1326 = vmatpush.bf16.msra.mxu0 %v974
    %1327 = vmatpush.bf16.msra.mxu0 %v966
    %1328 = vmatpush.bf16.msra.mxu0 %v958
    %1329 = vmatpush.bf16.msra.mxu0 %v950
    %1330 = vmatpush.bf16.msra.mxu0 %v942
    %1331 = vmatmul.bf16.gmra.mxu0 %v551
    %v1332 = vpop.f32.mrf.mxu0
    %v1333 = vadd.f32 0.0, %v1332
    %v1334 = vpop.f32.mrf.mxu0
    %1335 = vdwg.mxu0
    %1336 = vmatpush.bf16.msra.mxu0 %v1062
    %1337 = vmatpush.bf16.msra.mxu0 %v1054
    %1338 = vmatpush.bf16.msra.mxu0 %v1046
    %1339 = vmatpush.bf16.msra.mxu0 %v1038
    %1340 = vmatpush.bf16.msra.mxu0 %v1030
    %1341 = vmatpush.bf16.msra.mxu0 %v1022
    %1342 = vmatpush.bf16.msra.mxu0 %v1014
    %1343 = vmatpush.bf16.msra.mxu0 %v1006
    %1344 = vmatmul.bf16.gmra.mxu0 %v552
    %v1345 = vpop.f32.mrf.mxu0
    %v1346 = vadd.f32 %v1333, %v1345
    %v1347 = vpop.f32.mrf.mxu0
    %1348 = vdwg.mxu0
    %1349 = vmatpush.bf16.msra.mxu0 %v999
    %1350 = vmatpush.bf16.msra.mxu0 %v991
    %1351 = vmatpush.bf16.msra.mxu0 %v983
    %1352 = vmatpush.bf16.msra.mxu0 %v975
    %1353 = vmatpush.bf16.msra.mxu0 %v967
    %1354 = vmatpush.bf16.msra.mxu0 %v959
    %1355 = vmatpush.bf16.msra.mxu0 %v951
    %1356 = vmatpush.bf16.msra.mxu0 %v943
    %1357 = vmatmul.bf16.gmra.mxu0 %v551
    %v1358 = vpop.f32.mrf.mxu0
    %v1359 = vadd.f32 0.0, %v1358
    %v1360 = vpop.f32.mrf.mxu0
    %1361 = vdwg.mxu0
    %1362 = vmatpush.bf16.msra.mxu0 %v1063
    %1363 = vmatpush.bf16.msra.mxu0 %v1055
    %1364 = vmatpush.bf16.msra.mxu0 %v1047
    %1365 = vmatpush.bf16.msra.mxu0 %v1039
    %1366 = vmatpush.bf16.msra.mxu0 %v1031
    %1367 = vmatpush.bf16.msra.mxu0 %v1023
    %1368 = vmatpush.bf16.msra.mxu0 %v1015
    %1369 = vmatpush.bf16.msra.mxu0 %v1007
    %1370 = vmatmul.bf16.gmra.mxu0 %v552
    %v1371 = vpop.f32.mrf.mxu0
    %v1372 = vadd.f32 %v1359, %v1371
    %v1373 = vpop.f32.mrf.mxu0
    %1374 = vdwg.mxu0
    %1375 = vmatpush.bf16.msra.mxu0 %v1000
    %1376 = vmatpush.bf16.msra.mxu0 %v992
    %1377 = vmatpush.bf16.msra.mxu0 %v984
    %1378 = vmatpush.bf16.msra.mxu0 %v976
    %1379 = vmatpush.bf16.msra.mxu0 %v968
    %1380 = vmatpush.bf16.msra.mxu0 %v960
    %1381 = vmatpush.bf16.msra.mxu0 %v952
    %1382 = vmatpush.bf16.msra.mxu0 %v944
    %1383 = vmatmul.bf16.gmra.mxu0 %v551
    %v1384 = vpop.f32.mrf.mxu0
    %v1385 = vadd.f32 0.0, %v1384
    %v1386 = vpop.f32.mrf.mxu0
    %1387 = vdwg.mxu0
    %1388 = vmatpush.bf16.msra.mxu0 %v1064
    %1389 = vmatpush.bf16.msra.mxu0 %v1056
    %1390 = vmatpush.bf16.msra.mxu0 %v1048
    %1391 = vmatpush.bf16.msra.mxu0 %v1040
    %1392 = vmatpush.bf16.msra.mxu0 %v1032
    %1393 = vmatpush.bf16.msra.mxu0 %v1024
    %1394 = vmatpush.bf16.msra.mxu0 %v1016
    %1395 = vmatpush.bf16.msra.mxu0 %v1008
    %1396 = vmatmul.bf16.gmra.mxu0 %v552
    %v1397 = vpop.f32.mrf.mxu0
    %v1398 = vadd.f32 %v1385, %v1397
    %v1399 = vpop.f32.mrf.mxu0
    %1400 = vdwg.mxu0
    %s1401 = smul.u32 1, 4
    %s1402 = smul.addr %s1401, 8
    %s1403 = scalar_lea.vmem [#allocation2], %s1402
    %v1404 = vld [vmem:[%s1403] sm:$0xff]
    %v1405 = vld [vmem:[%s1403 + $0x8] sm:$0xff]
    %v1406 = vld [vmem:[%s1403 + $0x10] sm:$0xff]
    %v1407 = vld [vmem:[%s1403 + $0x18] sm:$0xff]
    %v1408 = vadd.f32 %v1404, %v1216
    %v1409 = vadd.f32 %v1405, %v1242
    %v1410 = vadd.f32 %v1406, %v1268
    %v1411 = vadd.f32 %v1407, %v1294
    %v1413 = vperm.slane %v483, 0
    %v1414 = vperm.slane %v483, 1
    %v1415 = vperm.slane %v483, 2
    %v1416 = vperm.slane %v483, 3
    %v1421 = vadd.f32 %v1320, %v1413
    %v1422 = vadd.f32 %v1346, %v1414
    %v1423 = vadd.f32 %v1372, %v1415
    %v1424 = vadd.f32 %v1398, %v1416
    %v1425 = vxor.u32 %v1408, 2147483648
    %v1426 = vmul.f32 %v1425, 1.442695
    %v1427 = vpow.pop %v1426
    %v1428 = vadd.f32 %v1427, 1.0
    %v1429 = vrcp.pop %v1428
    %v1430 = vmul.f32 %v1428, %v1429
    %v1431 = vsub.f32 1.0, %v1430
    %v1432 = vmul.f32 %v1429, %v1431
    %v1433 = vadd.f32 %v1429, %v1432
    %vm1434 = vweird.f32 %v1428
    %vm1435 = vweird.f32 %v1429
    %vm1436 = vmor %vm1434, %vm1435
    %v1437 = vsel %vm1436, %v1429, %v1433
    %v1438 = vand.u32 2147483647, %v1428
    %vm1439 = vcmp.eq.f32.partialorder %v1438, 8.507059e+37
    %v1440 = vand.u32 %v1428, 2147483648
    %v1441 = vor.u32 1.1754944e-38, %v1440
    %v1442 = vsel %vm1439, %v1441, %v1437
    %v1443 = vmul.f32 1.0, %v1442
    %v1444 = vxor.u32 %v1409, 2147483648
    %v1445 = vmul.f32 %v1444, 1.442695
    %v1446 = vpow.pop %v1445
    %v1447 = vadd.f32 %v1446, 1.0
    %v1448 = vrcp.pop %v1447
    %v1449 = vmul.f32 %v1447, %v1448
    %v1450 = vsub.f32 1.0, %v1449
    %v1451 = vmul.f32 %v1448, %v1450
    %v1452 = vadd.f32 %v1448, %v1451
    %vm1453 = vweird.f32 %v1447
    %vm1454 = vweird.f32 %v1448
    %vm1455 = vmor %vm1453, %vm1454
    %v1456 = vsel %vm1455, %v1448, %v1452
    %v1457 = vand.u32 2147483647, %v1447
    %vm1458 = vcmp.eq.f32.partialorder %v1457, 8.507059e+37
    %v1459 = vand.u32 %v1447, 2147483648
    %v1460 = vor.u32 1.1754944e-38, %v1459
    %v1461 = vsel %vm1458, %v1460, %v1456
    %v1462 = vmul.f32 1.0, %v1461
    %v1463 = vtanh.pop %v1410
    %v1464 = vxor.u32 %v1411, 2147483648
    %v1465 = vmul.f32 %v1464, 1.442695
    %v1466 = vpow.pop %v1465
    %v1467 = vadd.f32 %v1466, 1.0
    %v1468 = vrcp.pop %v1467
    %v1469 = vmul.f32 %v1467, %v1468
    %v1470 = vsub.f32 1.0, %v1469
    %v1471 = vmul.f32 %v1468, %v1470
    %v1472 = vadd.f32 %v1468, %v1471
    %vm1473 = vweird.f32 %v1467
    %vm1474 = vweird.f32 %v1468
    %vm1475 = vmor %vm1473, %vm1474
    %v1476 = vsel %vm1475, %v1468, %v1472
    %v1477 = vand.u32 2147483647, %v1467
    %vm1478 = vcmp.eq.f32.partialorder %v1477, 8.507059e+37
    %v1479 = vand.u32 %v1467, 2147483648
    %v1480 = vor.u32 1.1754944e-38, %v1479
    %v1481 = vsel %vm1478, %v1480, %v1476
    %v1482 = vmul.f32 1.0, %v1481
    %v1483 = vmul.f32 %v1462, %v548
    %v1484 = vmul.f32 %v1443, %v1463
    %v1485 = vadd.f32 %v1483, %v1484
    %v1486 = vtanh.pop %v1485
    %v1487 = vmul.f32 %v1482, %v1486
    %v1488 = vxor.u32 %v1421, 2147483648
    %v1489 = vmul.f32 %v1488, 1.442695
    %v1490 = vpow.pop %v1489
    %v1491 = vadd.f32 %v1490, 1.0
    %v1492 = vrcp.pop %v1491
    %v1493 = vmul.f32 %v1491, %v1492
    %v1494 = vsub.f32 1.0, %v1493
    %v1495 = vmul.f32 %v1492, %v1494
    %v1496 = vadd.f32 %v1492, %v1495
    %vm1497 = vweird.f32 %v1491
    %vm1498 = vweird.f32 %v1492
    %vm1499 = vmor %vm1497, %vm1498
    %v1500 = vsel %vm1499, %v1492, %v1496
    %v1501 = vand.u32 2147483647, %v1491
    %vm1502 = vcmp.eq.f32.partialorder %v1501, 8.507059e+37
    %v1503 = vand.u32 %v1491, 2147483648
    %v1504 = vor.u32 1.1754944e-38, %v1503
    %v1505 = vsel %vm1502, %v1504, %v1500
    %v1506 = vmul.f32 1.0, %v1505
    %v1507 = vxor.u32 %v1422, 2147483648
    %v1508 = vmul.f32 %v1507, 1.442695
    %v1509 = vpow.pop %v1508
    %v1510 = vadd.f32 %v1509, 1.0
    %v1511 = vrcp.pop %v1510
    %v1512 = vmul.f32 %v1510, %v1511
    %v1513 = vsub.f32 1.0, %v1512
    %v1514 = vmul.f32 %v1511, %v1513
    %v1515 = vadd.f32 %v1511, %v1514
    %vm1516 = vweird.f32 %v1510
    %vm1517 = vweird.f32 %v1511
    %vm1518 = vmor %vm1516, %vm1517
    %v1519 = vsel %vm1518, %v1511, %v1515
    %v1520 = vand.u32 2147483647, %v1510
    %vm1521 = vcmp.eq.f32.partialorder %v1520, 8.507059e+37
    %v1522 = vand.u32 %v1510, 2147483648
    %v1523 = vor.u32 1.1754944e-38, %v1522
    %v1524 = vsel %vm1521, %v1523, %v1519
    %v1525 = vmul.f32 1.0, %v1524
    %v1526 = vtanh.pop %v1423
    %v1527 = vxor.u32 %v1424, 2147483648
    %v1528 = vmul.f32 %v1527, 1.442695
    %v1529 = vpow.pop %v1528
    %v1530 = vadd.f32 %v1529, 1.0
    %v1531 = vrcp.pop %v1530
    %v1532 = vmul.f32 %v1530, %v1531
    %v1533 = vsub.f32 1.0, %v1532
    %v1534 = vmul.f32 %v1531, %v1533
    %v1535 = vadd.f32 %v1531, %v1534
    %vm1536 = vweird.f32 %v1530
    %vm1537 = vweird.f32 %v1531
    %vm1538 = vmor %vm1536, %vm1537
    %v1539 = vsel %vm1538, %v1531, %v1535
    %v1540 = vand.u32 2147483647, %v1530
    %vm1541 = vcmp.eq.f32.partialorder %v1540, 8.507059e+37
    %v1542 = vand.u32 %v1530, 2147483648
    %v1543 = vor.u32 1.1754944e-38, %v1542
    %v1544 = vsel %vm1541, %v1543, %v1539
    %v1545 = vmul.f32 1.0, %v1544
    %v1546 = vmul.f32 %v1525, 0.0
    %v1547 = vmul.f32 %v1506, %v1526
    %v1548 = vadd.f32 %v1546, %v1547
    %v1549 = vtanh.pop %v1548
    %v1550 = vmul.f32 %v1545, %v1549
    %v1551 = vpack.c.bf16 %v1487, %v1487
    %v1552 = vpack.c.bf16 %v1550, %v1550
    %1553 = vmatpush.bf16.msra.mxu0 %v993
    %1554 = vmatpush.bf16.msra.mxu0 %v985
    %1555 = vmatpush.bf16.msra.mxu0 %v977
    %1556 = vmatpush.bf16.msra.mxu0 %v969
    %1557 = vmatpush.bf16.msra.mxu0 %v961
    %1558 = vmatpush.bf16.msra.mxu0 %v953
    %1559 = vmatpush.bf16.msra.mxu0 %v945
    %1560 = vmatpush.bf16.msra.mxu0 %v937
    %1561 = vmatmul.bf16.gmra.mxu0 %v1551
    %v1562 = vpop.f32.mrf.mxu0
    %v1563 = vadd.f32 0.0, %v1562
    %v1564 = vpop.f32.mrf.mxu0
    %1565 = vdwg.mxu0
    %1566 = vmatpush.bf16.msra.mxu0 %v1057
    %1567 = vmatpush.bf16.msra.mxu0 %v1049
    %1568 = vmatpush.bf16.msra.mxu0 %v1041
    %1569 = vmatpush.bf16.msra.mxu0 %v1033
    %1570 = vmatpush.bf16.msra.mxu0 %v1025
    %1571 = vmatpush.bf16.msra.mxu0 %v1017
    %1572 = vmatpush.bf16.msra.mxu0 %v1009
    %1573 = vmatpush.bf16.msra.mxu0 %v1001
    %1574 = vmatmul.bf16.gmra.mxu0 %v1552
    %v1575 = vpop.f32.mrf.mxu0
    %v1576 = vadd.f32 %v1563, %v1575
    %v1577 = vpop.f32.mrf.mxu0
    %1578 = vdwg.mxu0
    %1579 = vmatpush.bf16.msra.mxu0 %v994
    %1580 = vmatpush.bf16.msra.mxu0 %v986
    %1581 = vmatpush.bf16.msra.mxu0 %v978
    %1582 = vmatpush.bf16.msra.mxu0 %v970
    %1583 = vmatpush.bf16.msra.mxu0 %v962
    %1584 = vmatpush.bf16.msra.mxu0 %v954
    %1585 = vmatpush.bf16.msra.mxu0 %v946
    %1586 = vmatpush.bf16.msra.mxu0 %v938
    %1587 = vmatmul.bf16.gmra.mxu0 %v1551
    %v1588 = vpop.f32.mrf.mxu0
    %v1589 = vadd.f32 0.0, %v1588
    %v1590 = vpop.f32.mrf.mxu0
    %1591 = vdwg.mxu0
    %1592 = vmatpush.bf16.msra.mxu0 %v1058
    %1593 = vmatpush.bf16.msra.mxu0 %v1050
    %1594 = vmatpush.bf16.msra.mxu0 %v1042
    %1595 = vmatpush.bf16.msra.mxu0 %v1034
    %1596 = vmatpush.bf16.msra.mxu0 %v1026
    %1597 = vmatpush.bf16.msra.mxu0 %v1018
    %1598 = vmatpush.bf16.msra.mxu0 %v1010
    %1599 = vmatpush.bf16.msra.mxu0 %v1002
    %1600 = vmatmul.bf16.gmra.mxu0 %v1552
    %v1601 = vpop.f32.mrf.mxu0
    %v1602 = vadd.f32 %v1589, %v1601
    %v1603 = vpop.f32.mrf.mxu0
    %1604 = vdwg.mxu0
    %1605 = vmatpush.bf16.msra.mxu0 %v995
    %1606 = vmatpush.bf16.msra.mxu0 %v987
    %1607 = vmatpush.bf16.msra.mxu0 %v979
    %1608 = vmatpush.bf16.msra.mxu0 %v971
    %1609 = vmatpush.bf16.msra.mxu0 %v963
    %1610 = vmatpush.bf16.msra.mxu0 %v955
    %1611 = vmatpush.bf16.msra.mxu0 %v947
    %1612 = vmatpush.bf16.msra.mxu0 %v939
    %1613 = vmatmul.bf16.gmra.mxu0 %v1551
    %v1614 = vpop.f32.mrf.mxu0
    %v1615 = vadd.f32 0.0, %v1614
    %v1616 = vpop.f32.mrf.mxu0
    %1617 = vdwg.mxu0
    %1618 = vmatpush.bf16.msra.mxu0 %v1059
    %1619 = vmatpush.bf16.msra.mxu0 %v1051
    %1620 = vmatpush.bf16.msra.mxu0 %v1043
    %1621 = vmatpush.bf16.msra.mxu0 %v1035
    %1622 = vmatpush.bf16.msra.mxu0 %v1027
    %1623 = vmatpush.bf16.msra.mxu0 %v1019
    %1624 = vmatpush.bf16.msra.mxu0 %v1011
    %1625 = vmatpush.bf16.msra.mxu0 %v1003
    %1626 = vmatmul.bf16.gmra.mxu0 %v1552
    %v1627 = vpop.f32.mrf.mxu0
    %v1628 = vadd.f32 %v1615, %v1627
    %v1629 = vpop.f32.mrf.mxu0
    %1630 = vdwg.mxu0
    %1631 = vmatpush.bf16.msra.mxu0 %v996
    %1632 = vmatpush.bf16.msra.mxu0 %v988
    %1633 = vmatpush.bf16.msra.mxu0 %v980
    %1634 = vmatpush.bf16.msra.mxu0 %v972
    %1635 = vmatpush.bf16.msra.mxu0 %v964
    %1636 = vmatpush.bf16.msra.mxu0 %v956
    %1637 = vmatpush.bf16.msra.mxu0 %v948
    %1638 = vmatpush.bf16.msra.mxu0 %v940
    %1639 = vmatmul.bf16.gmra.mxu0 %v1551
    %v1640 = vpop.f32.mrf.mxu0
    %v1641 = vadd.f32 0.0, %v1640
    %v1642 = vpop.f32.mrf.mxu0
    %1643 = vdwg.mxu0
    %1644 = vmatpush.bf16.msra.mxu0 %v1060
    %1645 = vmatpush.bf16.msra.mxu0 %v1052
    %1646 = vmatpush.bf16.msra.mxu0 %v1044
    %1647 = vmatpush.bf16.msra.mxu0 %v1036
    %1648 = vmatpush.bf16.msra.mxu0 %v1028
    %1649 = vmatpush.bf16.msra.mxu0 %v1020
    %1650 = vmatpush.bf16.msra.mxu0 %v1012
    %1651 = vmatpush.bf16.msra.mxu0 %v1004
    %1652 = vmatmul.bf16.gmra.mxu0 %v1552
    %v1653 = vpop.f32.mrf.mxu0
    %v1654 = vadd.f32 %v1641, %v1653
    %v1655 = vpop.f32.mrf.mxu0
    %1656 = vdwg.mxu0
    %1657 = vmatpush.bf16.msra.mxu0 %v997
    %1658 = vmatpush.bf16.msra.mxu0 %v989
    %1659 = vmatpush.bf16.msra.mxu0 %v981
    %1660 = vmatpush.bf16.msra.mxu0 %v973
    %1661 = vmatpush.bf16.msra.mxu0 %v965
    %1662 = vmatpush.bf16.msra.mxu0 %v957
    %1663 = vmatpush.bf16.msra.mxu0 %v949
    %1664 = vmatpush.bf16.msra.mxu0 %v941
    %1665 = vmatmul.bf16.gmra.mxu0 %v1551
    %v1666 = vpop.f32.mrf.mxu0
    %v1667 = vadd.f32 0.0, %v1666
    %v1668 = vpop.f32.mrf.mxu0
    %1669 = vdwg.mxu0
    %1670 = vmatpush.bf16.msra.mxu0 %v1061
    %1671 = vmatpush.bf16.msra.mxu0 %v1053
    %1672 = vmatpush.bf16.msra.mxu0 %v1045
    %1673 = vmatpush.bf16.msra.mxu0 %v1037
    %1674 = vmatpush.bf16.msra.mxu0 %v1029
    %1675 = vmatpush.bf16.msra.mxu0 %v1021
    %1676 = vmatpush.bf16.msra.mxu0 %v1013
    %1677 = vmatpush.bf16.msra.mxu0 %v1005
    %1678 = vmatmul.bf16.gmra.mxu0 %v1552
    %v1679 = vpop.f32.mrf.mxu0
    %v1680 = vadd.f32 %v1667, %v1679
    %v1681 = vpop.f32.mrf.mxu0
    %1682 = vdwg.mxu0
    %1683 = vmatpush.bf16.msra.mxu0 %v998
    %1684 = vmatpush.bf16.msra.mxu0 %v990
    %1685 = vmatpush.bf16.msra.mxu0 %v982
    %1686 = vmatpush.bf16.msra.mxu0 %v974
    %1687 = vmatpush.bf16.msra.mxu0 %v966
    %1688 = vmatpush.bf16.msra.mxu0 %v958
    %1689 = vmatpush.bf16.msra.mxu0 %v950
    %1690 = vmatpush.bf16.msra.mxu0 %v942
    %1691 = vmatmul.bf16.gmra.mxu0 %v1551
    %v1692 = vpop.f32.mrf.mxu0
    %v1693 = vadd.f32 0.0, %v1692
    %v1694 = vpop.f32.mrf.mxu0
    %1695 = vdwg.mxu0
    %1696 = vmatpush.bf16.msra.mxu0 %v1062
    %1697 = vmatpush.bf16.msra.mxu0 %v1054
    %1698 = vmatpush.bf16.msra.mxu0 %v1046
    %1699 = vmatpush.bf16.msra.mxu0 %v1038
    %1700 = vmatpush.bf16.msra.mxu0 %v1030
    %1701 = vmatpush.bf16.msra.mxu0 %v1022
    %1702 = vmatpush.bf16.msra.mxu0 %v1014
    %1703 = vmatpush.bf16.msra.mxu0 %v1006
    %1704 = vmatmul.bf16.gmra.mxu0 %v1552
    %v1705 = vpop.f32.mrf.mxu0
    %v1706 = vadd.f32 %v1693, %v1705
    %v1707 = vpop.f32.mrf.mxu0
    %1708 = vdwg.mxu0
    %1709 = vmatpush.bf16.msra.mxu0 %v999
    %1710 = vmatpush.bf16.msra.mxu0 %v991
    %1711 = vmatpush.bf16.msra.mxu0 %v983
    %1712 = vmatpush.bf16.msra.mxu0 %v975
    %1713 = vmatpush.bf16.msra.mxu0 %v967
    %1714 = vmatpush.bf16.msra.mxu0 %v959
    %1715 = vmatpush.bf16.msra.mxu0 %v951
    %1716 = vmatpush.bf16.msra.mxu0 %v943
    %1717 = vmatmul.bf16.gmra.mxu0 %v1551
    %v1718 = vpop.f32.mrf.mxu0
    %v1719 = vadd.f32 0.0, %v1718
    %v1720 = vpop.f32.mrf.mxu0
    %1721 = vdwg.mxu0
    %1722 = vmatpush.bf16.msra.mxu0 %v1063
    %1723 = vmatpush.bf16.msra.mxu0 %v1055
    %1724 = vmatpush.bf16.msra.mxu0 %v1047
    %1725 = vmatpush.bf16.msra.mxu0 %v1039
    %1726 = vmatpush.bf16.msra.mxu0 %v1031
    %1727 = vmatpush.bf16.msra.mxu0 %v1023
    %1728 = vmatpush.bf16.msra.mxu0 %v1015
    %1729 = vmatpush.bf16.msra.mxu0 %v1007
    %1730 = vmatmul.bf16.gmra.mxu0 %v1552
    %v1731 = vpop.f32.mrf.mxu0
    %v1732 = vadd.f32 %v1719, %v1731
    %v1733 = vpop.f32.mrf.mxu0
    %1734 = vdwg.mxu0
    %1735 = vmatpush.bf16.msra.mxu0 %v1000
    %1736 = vmatpush.bf16.msra.mxu0 %v992
    %1737 = vmatpush.bf16.msra.mxu0 %v984
    %1738 = vmatpush.bf16.msra.mxu0 %v976
    %1739 = vmatpush.bf16.msra.mxu0 %v968
    %1740 = vmatpush.bf16.msra.mxu0 %v960
    %1741 = vmatpush.bf16.msra.mxu0 %v952
    %1742 = vmatpush.bf16.msra.mxu0 %v944
    %1743 = vmatmul.bf16.gmra.mxu0 %v1551
    %v1744 = vpop.f32.mrf.mxu0
    %v1745 = vadd.f32 0.0, %v1744
    %v1746 = vpop.f32.mrf.mxu0
    %1747 = vdwg.mxu0
    %1748 = vmatpush.bf16.msra.mxu0 %v1064
    %1749 = vmatpush.bf16.msra.mxu0 %v1056
    %1750 = vmatpush.bf16.msra.mxu0 %v1048
    %1751 = vmatpush.bf16.msra.mxu0 %v1040
    %1752 = vmatpush.bf16.msra.mxu0 %v1032
    %1753 = vmatpush.bf16.msra.mxu0 %v1024
    %1754 = vmatpush.bf16.msra.mxu0 %v1016
    %1755 = vmatpush.bf16.msra.mxu0 %v1008
    %1756 = vmatmul.bf16.gmra.mxu0 %v1552
    %v1757 = vpop.f32.mrf.mxu0
    %v1758 = vadd.f32 %v1745, %v1757
    %v1759 = vpop.f32.mrf.mxu0
    %1760 = vdwg.mxu0
    %s1761 = smul.u32 2, 4
    %s1762 = smul.addr %s1761, 8
    %s1763 = scalar_lea.vmem [#allocation2], %s1762
    %v1764 = vld [vmem:[%s1763] sm:$0xff]
    %v1765 = vld [vmem:[%s1763 + $0x8] sm:$0xff]
    %v1766 = vld [vmem:[%s1763 + $0x10] sm:$0xff]
    %v1767 = vld [vmem:[%s1763 + $0x18] sm:$0xff]
    %v1768 = vadd.f32 %v1764, %v1576
    %v1769 = vadd.f32 %v1765, %v1602
    %v1770 = vadd.f32 %v1766, %v1628
    %v1771 = vadd.f32 %v1767, %v1654
    %v1772 = vadd.f32 %v1680, %v1413
    %v1773 = vadd.f32 %v1706, %v1414
    %v1774 = vadd.f32 %v1732, %v1415
    %v1775 = vadd.f32 %v1758, %v1416
    %v1776 = vxor.u32 %v1768, 2147483648
    %v1777 = vmul.f32 %v1776, 1.442695
    %v1778 = vpow.pop %v1777
    %v1779 = vadd.f32 %v1778, 1.0
    %v1780 = vrcp.pop %v1779
    %v1781 = vmul.f32 %v1779, %v1780
    %v1782 = vsub.f32 1.0, %v1781
    %v1783 = vmul.f32 %v1780, %v1782
    %v1784 = vadd.f32 %v1780, %v1783
    %vm1785 = vweird.f32 %v1779
    %vm1786 = vweird.f32 %v1780
    %vm1787 = vmor %vm1785, %vm1786
    %v1788 = vsel %vm1787, %v1780, %v1784
    %v1789 = vand.u32 2147483647, %v1779
    %vm1790 = vcmp.eq.f32.partialorder %v1789, 8.507059e+37
    %v1791 = vand.u32 %v1779, 2147483648
    %v1792 = vor.u32 1.1754944e-38, %v1791
    %v1793 = vsel %vm1790, %v1792, %v1788
    %v1794 = vmul.f32 1.0, %v1793
    %v1795 = vxor.u32 %v1769, 2147483648
    %v1796 = vmul.f32 %v1795, 1.442695
    %v1797 = vpow.pop %v1796
    %v1798 = vadd.f32 %v1797, 1.0
    %v1799 = vrcp.pop %v1798
    %v1800 = vmul.f32 %v1798, %v1799
    %v1801 = vsub.f32 1.0, %v1800
    %v1802 = vmul.f32 %v1799, %v1801
    %v1803 = vadd.f32 %v1799, %v1802
    %vm1804 = vweird.f32 %v1798
    %vm1805 = vweird.f32 %v1799
    %vm1806 = vmor %vm1804, %vm1805
    %v1807 = vsel %vm1806, %v1799, %v1803
    %v1808 = vand.u32 2147483647, %v1798
    %vm1809 = vcmp.eq.f32.partialorder %v1808, 8.507059e+37
    %v1810 = vand.u32 %v1798, 2147483648
    %v1811 = vor.u32 1.1754944e-38, %v1810
    %v1812 = vsel %vm1809, %v1811, %v1807
    %v1813 = vmul.f32 1.0, %v1812
    %v1814 = vtanh.pop %v1770
    %v1815 = vxor.u32 %v1771, 2147483648
    %v1816 = vmul.f32 %v1815, 1.442695
    %v1817 = vpow.pop %v1816
    %v1818 = vadd.f32 %v1817, 1.0
    %v1819 = vrcp.pop %v1818
    %v1820 = vmul.f32 %v1818, %v1819
    %v1821 = vsub.f32 1.0, %v1820
    %v1822 = vmul.f32 %v1819, %v1821
    %v1823 = vadd.f32 %v1819, %v1822
    %vm1824 = vweird.f32 %v1818
    %vm1825 = vweird.f32 %v1819
    %vm1826 = vmor %vm1824, %vm1825
    %v1827 = vsel %vm1826, %v1819, %v1823
    %v1828 = vand.u32 2147483647, %v1818
    %vm1829 = vcmp.eq.f32.partialorder %v1828, 8.507059e+37
    %v1830 = vand.u32 %v1818, 2147483648
    %v1831 = vor.u32 1.1754944e-38, %v1830
    %v1832 = vsel %vm1829, %v1831, %v1827
    %v1833 = vmul.f32 1.0, %v1832
    %v1834 = vmul.f32 %v1813, %v1485
    %v1835 = vmul.f32 %v1794, %v1814
    %v1836 = vadd.f32 %v1834, %v1835
    %v1837 = vtanh.pop %v1836
    %v1838 = vmul.f32 %v1833, %v1837
    %v1839 = vxor.u32 %v1772, 2147483648
    %v1840 = vmul.f32 %v1839, 1.442695
    %v1841 = vpow.pop %v1840
    %v1842 = vadd.f32 %v1841, 1.0
    %v1843 = vrcp.pop %v1842
    %v1844 = vmul.f32 %v1842, %v1843
    %v1845 = vsub.f32 1.0, %v1844
    %v1846 = vmul.f32 %v1843, %v1845
    %v1847 = vadd.f32 %v1843, %v1846
    %vm1848 = vweird.f32 %v1842
    %vm1849 = vweird.f32 %v1843
    %vm1850 = vmor %vm1848, %vm1849
    %v1851 = vsel %vm1850, %v1843, %v1847
    %v1852 = vand.u32 2147483647, %v1842
    %vm1853 = vcmp.eq.f32.partialorder %v1852, 8.507059e+37
    %v1854 = vand.u32 %v1842, 2147483648
    %v1855 = vor.u32 1.1754944e-38, %v1854
    %v1856 = vsel %vm1853, %v1855, %v1851
    %v1857 = vmul.f32 1.0, %v1856
    %v1858 = vxor.u32 %v1773, 2147483648
    %v1859 = vmul.f32 %v1858, 1.442695
    %v1860 = vpow.pop %v1859
    %v1861 = vadd.f32 %v1860, 1.0
    %v1862 = vrcp.pop %v1861
    %v1863 = vmul.f32 %v1861, %v1862
    %v1864 = vsub.f32 1.0, %v1863
    %v1865 = vmul.f32 %v1862, %v1864
    %v1866 = vadd.f32 %v1862, %v1865
    %vm1867 = vweird.f32 %v1861
    %vm1868 = vweird.f32 %v1862
    %vm1869 = vmor %vm1867, %vm1868
    %v1870 = vsel %vm1869, %v1862, %v1866
    %v1871 = vand.u32 2147483647, %v1861
    %vm1872 = vcmp.eq.f32.partialorder %v1871, 8.507059e+37
    %v1873 = vand.u32 %v1861, 2147483648
    %v1874 = vor.u32 1.1754944e-38, %v1873
    %v1875 = vsel %vm1872, %v1874, %v1870
    %v1876 = vmul.f32 1.0, %v1875
    %v1877 = vtanh.pop %v1774
    %v1878 = vxor.u32 %v1775, 2147483648
    %v1879 = vmul.f32 %v1878, 1.442695
    %v1880 = vpow.pop %v1879
    %v1881 = vadd.f32 %v1880, 1.0
    %v1882 = vrcp.pop %v1881
    %v1883 = vmul.f32 %v1881, %v1882
    %v1884 = vsub.f32 1.0, %v1883
    %v1885 = vmul.f32 %v1882, %v1884
    %v1886 = vadd.f32 %v1882, %v1885
    %vm1887 = vweird.f32 %v1881
    %vm1888 = vweird.f32 %v1882
    %vm1889 = vmor %vm1887, %vm1888
    %v1890 = vsel %vm1889, %v1882, %v1886
    %v1891 = vand.u32 2147483647, %v1881
    %vm1892 = vcmp.eq.f32.partialorder %v1891, 8.507059e+37
    %v1893 = vand.u32 %v1881, 2147483648
    %v1894 = vor.u32 1.1754944e-38, %v1893
    %v1895 = vsel %vm1892, %v1894, %v1890
    %v1896 = vmul.f32 1.0, %v1895
    %v1897 = vmul.f32 %v1876, %v1548
    %v1898 = vmul.f32 %v1857, %v1877
    %v1899 = vadd.f32 %v1897, %v1898
    %v1900 = vtanh.pop %v1899
    %v1901 = vmul.f32 %v1896, %v1900
    %v1902 = vpack.c.bf16 %v1838, %v1838
    %v1903 = vpack.c.bf16 %v1901, %v1901
    %1904 = vmatpush.bf16.msra.mxu0 %v993
    %1905 = vmatpush.bf16.msra.mxu0 %v985
    %1906 = vmatpush.bf16.msra.mxu0 %v977
    %1907 = vmatpush.bf16.msra.mxu0 %v969
    %1908 = vmatpush.bf16.msra.mxu0 %v961
    %1909 = vmatpush.bf16.msra.mxu0 %v953
    %1910 = vmatpush.bf16.msra.mxu0 %v945
    %1911 = vmatpush.bf16.msra.mxu0 %v937
    %1912 = vmatmul.bf16.gmra.mxu0 %v1902
    %v1913 = vpop.f32.mrf.mxu0
    %v1914 = vadd.f32 0.0, %v1913
    %v1915 = vpop.f32.mrf.mxu0
    %1916 = vdwg.mxu0
    %1917 = vmatpush.bf16.msra.mxu0 %v1057
    %1918 = vmatpush.bf16.msra.mxu0 %v1049
    %1919 = vmatpush.bf16.msra.mxu0 %v1041
    %1920 = vmatpush.bf16.msra.mxu0 %v1033
    %1921 = vmatpush.bf16.msra.mxu0 %v1025
    %1922 = vmatpush.bf16.msra.mxu0 %v1017
    %1923 = vmatpush.bf16.msra.mxu0 %v1009
    %1924 = vmatpush.bf16.msra.mxu0 %v1001
    %1925 = vmatmul.bf16.gmra.mxu0 %v1903
    %v1926 = vpop.f32.mrf.mxu0
    %v1927 = vadd.f32 %v1914, %v1926
    %v1928 = vpop.f32.mrf.mxu0
    %1929 = vdwg.mxu0
    %1930 = vmatpush.bf16.msra.mxu0 %v994
    %1931 = vmatpush.bf16.msra.mxu0 %v986
    %1932 = vmatpush.bf16.msra.mxu0 %v978
    %1933 = vmatpush.bf16.msra.mxu0 %v970
    %1934 = vmatpush.bf16.msra.mxu0 %v962
    %1935 = vmatpush.bf16.msra.mxu0 %v954
    %1936 = vmatpush.bf16.msra.mxu0 %v946
    %1937 = vmatpush.bf16.msra.mxu0 %v938
    %1938 = vmatmul.bf16.gmra.mxu0 %v1902
    %v1939 = vpop.f32.mrf.mxu0
    %v1940 = vadd.f32 0.0, %v1939
    %v1941 = vpop.f32.mrf.mxu0
    %1942 = vdwg.mxu0
    %1943 = vmatpush.bf16.msra.mxu0 %v1058
    %1944 = vmatpush.bf16.msra.mxu0 %v1050
    %1945 = vmatpush.bf16.msra.mxu0 %v1042
    %1946 = vmatpush.bf16.msra.mxu0 %v1034
    %1947 = vmatpush.bf16.msra.mxu0 %v1026
    %1948 = vmatpush.bf16.msra.mxu0 %v1018
    %1949 = vmatpush.bf16.msra.mxu0 %v1010
    %1950 = vmatpush.bf16.msra.mxu0 %v1002
    %1951 = vmatmul.bf16.gmra.mxu0 %v1903
    %v1952 = vpop.f32.mrf.mxu0
    %v1953 = vadd.f32 %v1940, %v1952
    %v1954 = vpop.f32.mrf.mxu0
    %1955 = vdwg.mxu0
    %1956 = vmatpush.bf16.msra.mxu0 %v995
    %1957 = vmatpush.bf16.msra.mxu0 %v987
    %1958 = vmatpush.bf16.msra.mxu0 %v979
    %1959 = vmatpush.bf16.msra.mxu0 %v971
    %1960 = vmatpush.bf16.msra.mxu0 %v963
    %1961 = vmatpush.bf16.msra.mxu0 %v955
    %1962 = vmatpush.bf16.msra.mxu0 %v947
    %1963 = vmatpush.bf16.msra.mxu0 %v939
    %1964 = vmatmul.bf16.gmra.mxu0 %v1902
    %v1965 = vpop.f32.mrf.mxu0
    %v1966 = vadd.f32 0.0, %v1965
    %v1967 = vpop.f32.mrf.mxu0
    %1968 = vdwg.mxu0
    %1969 = vmatpush.bf16.msra.mxu0 %v1059
    %1970 = vmatpush.bf16.msra.mxu0 %v1051
    %1971 = vmatpush.bf16.msra.mxu0 %v1043
    %1972 = vmatpush.bf16.msra.mxu0 %v1035
    %1973 = vmatpush.bf16.msra.mxu0 %v1027
    %1974 = vmatpush.bf16.msra.mxu0 %v1019
    %1975 = vmatpush.bf16.msra.mxu0 %v1011
    %1976 = vmatpush.bf16.msra.mxu0 %v1003
    %1977 = vmatmul.bf16.gmra.mxu0 %v1903
    %v1978 = vpop.f32.mrf.mxu0
    %v1979 = vadd.f32 %v1966, %v1978
    %v1980 = vpop.f32.mrf.mxu0
    %1981 = vdwg.mxu0
    %1982 = vmatpush.bf16.msra.mxu0 %v996
    %1983 = vmatpush.bf16.msra.mxu0 %v988
    %1984 = vmatpush.bf16.msra.mxu0 %v980
    %1985 = vmatpush.bf16.msra.mxu0 %v972
    %1986 = vmatpush.bf16.msra.mxu0 %v964
    %1987 = vmatpush.bf16.msra.mxu0 %v956
    %1988 = vmatpush.bf16.msra.mxu0 %v948
    %1989 = vmatpush.bf16.msra.mxu0 %v940
    %1990 = vmatmul.bf16.gmra.mxu0 %v1902
    %v1991 = vpop.f32.mrf.mxu0
    %v1992 = vadd.f32 0.0, %v1991
    %v1993 = vpop.f32.mrf.mxu0
    %1994 = vdwg.mxu0
    %1995 = vmatpush.bf16.msra.mxu0 %v1060
    %1996 = vmatpush.bf16.msra.mxu0 %v1052
    %1997 = vmatpush.bf16.msra.mxu0 %v1044
    %1998 = vmatpush.bf16.msra.mxu0 %v1036
    %1999 = vmatpush.bf16.msra.mxu0 %v1028
    %2000 = vmatpush.bf16.msra.mxu0 %v1020
    %2001 = vmatpush.bf16.msra.mxu0 %v1012
    %2002 = vmatpush.bf16.msra.mxu0 %v1004
    %2003 = vmatmul.bf16.gmra.mxu0 %v1903
    %v2004 = vpop.f32.mrf.mxu0
    %v2005 = vadd.f32 %v1992, %v2004
    %v2006 = vpop.f32.mrf.mxu0
    %2007 = vdwg.mxu0
    %2008 = vmatpush.bf16.msra.mxu0 %v997
    %2009 = vmatpush.bf16.msra.mxu0 %v989
    %2010 = vmatpush.bf16.msra.mxu0 %v981
    %2011 = vmatpush.bf16.msra.mxu0 %v973
    %2012 = vmatpush.bf16.msra.mxu0 %v965
    %2013 = vmatpush.bf16.msra.mxu0 %v957
    %2014 = vmatpush.bf16.msra.mxu0 %v949
    %2015 = vmatpush.bf16.msra.mxu0 %v941
    %2016 = vmatmul.bf16.gmra.mxu0 %v1902
    %v2017 = vpop.f32.mrf.mxu0
    %v2018 = vadd.f32 0.0, %v2017
    %v2019 = vpop.f32.mrf.mxu0
    %2020 = vdwg.mxu0
    %2021 = vmatpush.bf16.msra.mxu0 %v1061
    %2022 = vmatpush.bf16.msra.mxu0 %v1053
    %2023 = vmatpush.bf16.msra.mxu0 %v1045
    %2024 = vmatpush.bf16.msra.mxu0 %v1037
    %2025 = vmatpush.bf16.msra.mxu0 %v1029
    %2026 = vmatpush.bf16.msra.mxu0 %v1021
    %2027 = vmatpush.bf16.msra.mxu0 %v1013
    %2028 = vmatpush.bf16.msra.mxu0 %v1005
    %2029 = vmatmul.bf16.gmra.mxu0 %v1903
    %v2030 = vpop.f32.mrf.mxu0
    %v2031 = vadd.f32 %v2018, %v2030
    %v2032 = vpop.f32.mrf.mxu0
    %2033 = vdwg.mxu0
    %2034 = vmatpush.bf16.msra.mxu0 %v998
    %2035 = vmatpush.bf16.msra.mxu0 %v990
    %2036 = vmatpush.bf16.msra.mxu0 %v982
    %2037 = vmatpush.bf16.msra.mxu0 %v974
    %2038 = vmatpush.bf16.msra.mxu0 %v966
    %2039 = vmatpush.bf16.msra.mxu0 %v958
    %2040 = vmatpush.bf16.msra.mxu0 %v950
    %2041 = vmatpush.bf16.msra.mxu0 %v942
    %2042 = vmatmul.bf16.gmra.mxu0 %v1902
    %v2043 = vpop.f32.mrf.mxu0
    %v2044 = vadd.f32 0.0, %v2043
    %v2045 = vpop.f32.mrf.mxu0
    %2046 = vdwg.mxu0
    %2047 = vmatpush.bf16.msra.mxu0 %v1062
    %2048 = vmatpush.bf16.msra.mxu0 %v1054
    %2049 = vmatpush.bf16.msra.mxu0 %v1046
    %2050 = vmatpush.bf16.msra.mxu0 %v1038
    %2051 = vmatpush.bf16.msra.mxu0 %v1030
    %2052 = vmatpush.bf16.msra.mxu0 %v1022
    %2053 = vmatpush.bf16.msra.mxu0 %v1014
    %2054 = vmatpush.bf16.msra.mxu0 %v1006
    %2055 = vmatmul.bf16.gmra.mxu0 %v1903
    %v2056 = vpop.f32.mrf.mxu0
    %v2057 = vadd.f32 %v2044, %v2056
    %v2058 = vpop.f32.mrf.mxu0
    %2059 = vdwg.mxu0
    %2060 = vmatpush.bf16.msra.mxu0 %v999
    %2061 = vmatpush.bf16.msra.mxu0 %v991
    %2062 = vmatpush.bf16.msra.mxu0 %v983
    %2063 = vmatpush.bf16.msra.mxu0 %v975
    %2064 = vmatpush.bf16.msra.mxu0 %v967
    %2065 = vmatpush.bf16.msra.mxu0 %v959
    %2066 = vmatpush.bf16.msra.mxu0 %v951
    %2067 = vmatpush.bf16.msra.mxu0 %v943
    %2068 = vmatmul.bf16.gmra.mxu0 %v1902
    %v2069 = vpop.f32.mrf.mxu0
    %v2070 = vadd.f32 0.0, %v2069
    %v2071 = vpop.f32.mrf.mxu0
    %2072 = vdwg.mxu0
    %2073 = vmatpush.bf16.msra.mxu0 %v1063
    %2074 = vmatpush.bf16.msra.mxu0 %v1055
    %2075 = vmatpush.bf16.msra.mxu0 %v1047
    %2076 = vmatpush.bf16.msra.mxu0 %v1039
    %2077 = vmatpush.bf16.msra.mxu0 %v1031
    %2078 = vmatpush.bf16.msra.mxu0 %v1023
    %2079 = vmatpush.bf16.msra.mxu0 %v1015
    %2080 = vmatpush.bf16.msra.mxu0 %v1007
    %2081 = vmatmul.bf16.gmra.mxu0 %v1903
    %v2082 = vpop.f32.mrf.mxu0
    %v2083 = vadd.f32 %v2070, %v2082
    %v2084 = vpop.f32.mrf.mxu0
    %2085 = vdwg.mxu0
    %2086 = vmatpush.bf16.msra.mxu0 %v1000
    %2087 = vmatpush.bf16.msra.mxu0 %v992
    %2088 = vmatpush.bf16.msra.mxu0 %v984
    %2089 = vmatpush.bf16.msra.mxu0 %v976
    %2090 = vmatpush.bf16.msra.mxu0 %v968
    %2091 = vmatpush.bf16.msra.mxu0 %v960
    %2092 = vmatpush.bf16.msra.mxu0 %v952
    %2093 = vmatpush.bf16.msra.mxu0 %v944
    %2094 = vmatmul.bf16.gmra.mxu0 %v1902
    %v2095 = vpop.f32.mrf.mxu0
    %v2096 = vadd.f32 0.0, %v2095
    %v2097 = vpop.f32.mrf.mxu0
    %2098 = vdwg.mxu0
    %2099 = vmatpush.bf16.msra.mxu0 %v1064
    %2100 = vmatpush.bf16.msra.mxu0 %v1056
    %2101 = vmatpush.bf16.msra.mxu0 %v1048
    %2102 = vmatpush.bf16.msra.mxu0 %v1040
    %2103 = vmatpush.bf16.msra.mxu0 %v1032
    %2104 = vmatpush.bf16.msra.mxu0 %v1024
    %2105 = vmatpush.bf16.msra.mxu0 %v1016
    %2106 = vmatpush.bf16.msra.mxu0 %v1008
    %2107 = vmatmul.bf16.gmra.mxu0 %v1903
    %v2108 = vpop.f32.mrf.mxu0
    %v2109 = vadd.f32 %v2096, %v2108
    %v2110 = vpop.f32.mrf.mxu0
    %2111 = vdwg.mxu0
    %s2112 = smul.u32 3, 4
    %s2113 = smul.addr %s2112, 8
    %s2114 = scalar_lea.vmem [#allocation2], %s2113
    %v2115 = vld [vmem:[%s2114] sm:$0xff]
    %v2116 = vld [vmem:[%s2114 + $0x8] sm:$0xff]
    %v2117 = vld [vmem:[%s2114 + $0x10] sm:$0xff]
    %v2118 = vld [vmem:[%s2114 + $0x18] sm:$0xff]
    %v2119 = vadd.f32 %v2115, %v1927
    %v2120 = vadd.f32 %v2116, %v1953
    %v2121 = vadd.f32 %v2117, %v1979
    %v2122 = vadd.f32 %v2118, %v2005
    %v2123 = vadd.f32 %v2031, %v1413
    %v2124 = vadd.f32 %v2057, %v1414
    %v2125 = vadd.f32 %v2083, %v1415
    %v2126 = vadd.f32 %v2109, %v1416
    %v2127 = vxor.u32 %v2119, 2147483648
    %v2128 = vmul.f32 %v2127, 1.442695
    %v2129 = vpow.pop %v2128
    %v2130 = vadd.f32 %v2129, 1.0
    %v2131 = vrcp.pop %v2130
    %v2132 = vmul.f32 %v2130, %v2131
    %v2133 = vsub.f32 1.0, %v2132
    %v2134 = vmul.f32 %v2131, %v2133
    %v2135 = vadd.f32 %v2131, %v2134
    %vm2136 = vweird.f32 %v2130
    %vm2137 = vweird.f32 %v2131
    %vm2138 = vmor %vm2136, %vm2137
    %v2139 = vsel %vm2138, %v2131, %v2135
    %v2140 = vand.u32 2147483647, %v2130
    %vm2141 = vcmp.eq.f32.partialorder %v2140, 8.507059e+37
    %v2142 = vand.u32 %v2130, 2147483648
    %v2143 = vor.u32 1.1754944e-38, %v2142
    %v2144 = vsel %vm2141, %v2143, %v2139
    %v2145 = vmul.f32 1.0, %v2144
    %v2146 = vxor.u32 %v2120, 2147483648
    %v2147 = vmul.f32 %v2146, 1.442695
    %v2148 = vpow.pop %v2147
    %v2149 = vadd.f32 %v2148, 1.0
    %v2150 = vrcp.pop %v2149
    %v2151 = vmul.f32 %v2149, %v2150
    %v2152 = vsub.f32 1.0, %v2151
    %v2153 = vmul.f32 %v2150, %v2152
    %v2154 = vadd.f32 %v2150, %v2153
    %vm2155 = vweird.f32 %v2149
    %vm2156 = vweird.f32 %v2150
    %vm2157 = vmor %vm2155, %vm2156
    %v2158 = vsel %vm2157, %v2150, %v2154
    %v2159 = vand.u32 2147483647, %v2149
    %vm2160 = vcmp.eq.f32.partialorder %v2159, 8.507059e+37
    %v2161 = vand.u32 %v2149, 2147483648
    %v2162 = vor.u32 1.1754944e-38, %v2161
    %v2163 = vsel %vm2160, %v2162, %v2158
    %v2164 = vmul.f32 1.0, %v2163
    %v2165 = vtanh.pop %v2121
    %v2166 = vxor.u32 %v2122, 2147483648
    %v2167 = vmul.f32 %v2166, 1.442695
    %v2168 = vpow.pop %v2167
    %v2169 = vadd.f32 %v2168, 1.0
    %v2170 = vrcp.pop %v2169
    %v2171 = vmul.f32 %v2169, %v2170
    %v2172 = vsub.f32 1.0, %v2171
    %v2173 = vmul.f32 %v2170, %v2172
    %v2174 = vadd.f32 %v2170, %v2173
    %vm2175 = vweird.f32 %v2169
    %vm2176 = vweird.f32 %v2170
    %vm2177 = vmor %vm2175, %vm2176
    %v2178 = vsel %vm2177, %v2170, %v2174
    %v2179 = vand.u32 2147483647, %v2169
    %vm2180 = vcmp.eq.f32.partialorder %v2179, 8.507059e+37
    %v2181 = vand.u32 %v2169, 2147483648
    %v2182 = vor.u32 1.1754944e-38, %v2181
    %v2183 = vsel %vm2180, %v2182, %v2178
    %v2184 = vmul.f32 1.0, %v2183
    %v2185 = vmul.f32 %v2164, %v1836
    %v2186 = vmul.f32 %v2145, %v2165
    %v2187 = vadd.f32 %v2185, %v2186
    %v2188 = vtanh.pop %v2187
    %v2189 = vmul.f32 %v2184, %v2188
    %v2190 = vxor.u32 %v2123, 2147483648
    %v2191 = vmul.f32 %v2190, 1.442695
    %v2192 = vpow.pop %v2191
    %v2193 = vadd.f32 %v2192, 1.0
    %v2194 = vrcp.pop %v2193
    %v2195 = vmul.f32 %v2193, %v2194
    %v2196 = vsub.f32 1.0, %v2195
    %v2197 = vmul.f32 %v2194, %v2196
    %v2198 = vadd.f32 %v2194, %v2197
    %vm2199 = vweird.f32 %v2193
    %vm2200 = vweird.f32 %v2194
    %vm2201 = vmor %vm2199, %vm2200
    %v2202 = vsel %vm2201, %v2194, %v2198
    %v2203 = vand.u32 2147483647, %v2193
    %vm2204 = vcmp.eq.f32.partialorder %v2203, 8.507059e+37
    %v2205 = vand.u32 %v2193, 2147483648
    %v2206 = vor.u32 1.1754944e-38, %v2205
    %v2207 = vsel %vm2204, %v2206, %v2202
    %v2208 = vmul.f32 1.0, %v2207
    %v2209 = vxor.u32 %v2124, 2147483648
    %v2210 = vmul.f32 %v2209, 1.442695
    %v2211 = vpow.pop %v2210
    %v2212 = vadd.f32 %v2211, 1.0
    %v2213 = vrcp.pop %v2212
    %v2214 = vmul.f32 %v2212, %v2213
    %v2215 = vsub.f32 1.0, %v2214
    %v2216 = vmul.f32 %v2213, %v2215
    %v2217 = vadd.f32 %v2213, %v2216
    %vm2218 = vweird.f32 %v2212
    %vm2219 = vweird.f32 %v2213
    %vm2220 = vmor %vm2218, %vm2219
    %v2221 = vsel %vm2220, %v2213, %v2217
    %v2222 = vand.u32 2147483647, %v2212
    %vm2223 = vcmp.eq.f32.partialorder %v2222, 8.507059e+37
    %v2224 = vand.u32 %v2212, 2147483648
    %v2225 = vor.u32 1.1754944e-38, %v2224
    %v2226 = vsel %vm2223, %v2225, %v2221
    %v2227 = vmul.f32 1.0, %v2226
    %v2228 = vtanh.pop %v2125
    %v2229 = vxor.u32 %v2126, 2147483648
    %v2230 = vmul.f32 %v2229, 1.442695
    %v2231 = vpow.pop %v2230
    %v2232 = vadd.f32 %v2231, 1.0
    %v2233 = vrcp.pop %v2232
    %v2234 = vmul.f32 %v2232, %v2233
    %v2235 = vsub.f32 1.0, %v2234
    %v2236 = vmul.f32 %v2233, %v2235
    %v2237 = vadd.f32 %v2233, %v2236
    %vm2238 = vweird.f32 %v2232
    %vm2239 = vweird.f32 %v2233
    %vm2240 = vmor %vm2238, %vm2239
    %v2241 = vsel %vm2240, %v2233, %v2237
    %v2242 = vand.u32 2147483647, %v2232
    %vm2243 = vcmp.eq.f32.partialorder %v2242, 8.507059e+37
    %v2244 = vand.u32 %v2232, 2147483648
    %v2245 = vor.u32 1.1754944e-38, %v2244
    %v2246 = vsel %vm2243, %v2245, %v2241
    %v2247 = vmul.f32 1.0, %v2246
    %v2248 = vmul.f32 %v2227, %v1899
    %v2249 = vmul.f32 %v2208, %v2228
    %v2250 = vadd.f32 %v2248, %v2249
    %v2251 = vtanh.pop %v2250
    %v2252 = vmul.f32 %v2247, %v2251
    %v2253 = vpack.c.bf16 %v2189, %v2189
    %v2254 = vpack.c.bf16 %v2252, %v2252
    %2255 = vmatpush.bf16.msra.mxu0 %v993
    %2256 = vmatpush.bf16.msra.mxu0 %v985
    %2257 = vmatpush.bf16.msra.mxu0 %v977
    %2258 = vmatpush.bf16.msra.mxu0 %v969
    %2259 = vmatpush.bf16.msra.mxu0 %v961
    %2260 = vmatpush.bf16.msra.mxu0 %v953
    %2261 = vmatpush.bf16.msra.mxu0 %v945
    %2262 = vmatpush.bf16.msra.mxu0 %v937
    %2263 = vmatmul.bf16.gmra.mxu0 %v2253
    %v2264 = vpop.f32.mrf.mxu0
    %v2265 = vadd.f32 0.0, %v2264
    %v2266 = vpop.f32.mrf.mxu0
    %2267 = vdwg.mxu0
    %2268 = vmatpush.bf16.msra.mxu0 %v1057
    %2269 = vmatpush.bf16.msra.mxu0 %v1049
    %2270 = vmatpush.bf16.msra.mxu0 %v1041
    %2271 = vmatpush.bf16.msra.mxu0 %v1033
    %2272 = vmatpush.bf16.msra.mxu0 %v1025
    %2273 = vmatpush.bf16.msra.mxu0 %v1017
    %2274 = vmatpush.bf16.msra.mxu0 %v1009
    %2275 = vmatpush.bf16.msra.mxu0 %v1001
    %2276 = vmatmul.bf16.gmra.mxu0 %v2254
    %v2277 = vpop.f32.mrf.mxu0
    %v2278 = vadd.f32 %v2265, %v2277
    %v2279 = vpop.f32.mrf.mxu0
    %2280 = vdwg.mxu0
    %2281 = vmatpush.bf16.msra.mxu0 %v994
    %2282 = vmatpush.bf16.msra.mxu0 %v986
    %2283 = vmatpush.bf16.msra.mxu0 %v978
    %2284 = vmatpush.bf16.msra.mxu0 %v970
    %2285 = vmatpush.bf16.msra.mxu0 %v962
    %2286 = vmatpush.bf16.msra.mxu0 %v954
    %2287 = vmatpush.bf16.msra.mxu0 %v946
    %2288 = vmatpush.bf16.msra.mxu0 %v938
    %2289 = vmatmul.bf16.gmra.mxu0 %v2253
    %v2290 = vpop.f32.mrf.mxu0
    %v2291 = vadd.f32 0.0, %v2290
    %v2292 = vpop.f32.mrf.mxu0
    %2293 = vdwg.mxu0
    %2294 = vmatpush.bf16.msra.mxu0 %v1058
    %2295 = vmatpush.bf16.msra.mxu0 %v1050
    %2296 = vmatpush.bf16.msra.mxu0 %v1042
    %2297 = vmatpush.bf16.msra.mxu0 %v1034
    %2298 = vmatpush.bf16.msra.mxu0 %v1026
    %2299 = vmatpush.bf16.msra.mxu0 %v1018
    %2300 = vmatpush.bf16.msra.mxu0 %v1010
    %2301 = vmatpush.bf16.msra.mxu0 %v1002
    %2302 = vmatmul.bf16.gmra.mxu0 %v2254
    %v2303 = vpop.f32.mrf.mxu0
    %v2304 = vadd.f32 %v2291, %v2303
    %v2305 = vpop.f32.mrf.mxu0
    %2306 = vdwg.mxu0
    %2307 = vmatpush.bf16.msra.mxu0 %v995
    %2308 = vmatpush.bf16.msra.mxu0 %v987
    %2309 = vmatpush.bf16.msra.mxu0 %v979
    %2310 = vmatpush.bf16.msra.mxu0 %v971
    %2311 = vmatpush.bf16.msra.mxu0 %v963
    %2312 = vmatpush.bf16.msra.mxu0 %v955
    %2313 = vmatpush.bf16.msra.mxu0 %v947
    %2314 = vmatpush.bf16.msra.mxu0 %v939
    %2315 = vmatmul.bf16.gmra.mxu0 %v2253
    %v2316 = vpop.f32.mrf.mxu0
    %v2317 = vadd.f32 0.0, %v2316
    %v2318 = vpop.f32.mrf.mxu0
    %2319 = vdwg.mxu0
    %2320 = vmatpush.bf16.msra.mxu0 %v1059
    %2321 = vmatpush.bf16.msra.mxu0 %v1051
    %2322 = vmatpush.bf16.msra.mxu0 %v1043
    %2323 = vmatpush.bf16.msra.mxu0 %v1035
    %2324 = vmatpush.bf16.msra.mxu0 %v1027
    %2325 = vmatpush.bf16.msra.mxu0 %v1019
    %2326 = vmatpush.bf16.msra.mxu0 %v1011
    %2327 = vmatpush.bf16.msra.mxu0 %v1003
    %2328 = vmatmul.bf16.gmra.mxu0 %v2254
    %v2329 = vpop.f32.mrf.mxu0
    %v2330 = vadd.f32 %v2317, %v2329
    %v2331 = vpop.f32.mrf.mxu0
    %2332 = vdwg.mxu0
    %2333 = vmatpush.bf16.msra.mxu0 %v996
    %2334 = vmatpush.bf16.msra.mxu0 %v988
    %2335 = vmatpush.bf16.msra.mxu0 %v980
    %2336 = vmatpush.bf16.msra.mxu0 %v972
    %2337 = vmatpush.bf16.msra.mxu0 %v964
    %2338 = vmatpush.bf16.msra.mxu0 %v956
    %2339 = vmatpush.bf16.msra.mxu0 %v948
    %2340 = vmatpush.bf16.msra.mxu0 %v940
    %2341 = vmatmul.bf16.gmra.mxu0 %v2253
    %v2342 = vpop.f32.mrf.mxu0
    %v2343 = vadd.f32 0.0, %v2342
    %v2344 = vpop.f32.mrf.mxu0
    %2345 = vdwg.mxu0
    %2346 = vmatpush.bf16.msra.mxu0 %v1060
    %2347 = vmatpush.bf16.msra.mxu0 %v1052
    %2348 = vmatpush.bf16.msra.mxu0 %v1044
    %2349 = vmatpush.bf16.msra.mxu0 %v1036
    %2350 = vmatpush.bf16.msra.mxu0 %v1028
    %2351 = vmatpush.bf16.msra.mxu0 %v1020
    %2352 = vmatpush.bf16.msra.mxu0 %v1012
    %2353 = vmatpush.bf16.msra.mxu0 %v1004
    %2354 = vmatmul.bf16.gmra.mxu0 %v2254
    %v2355 = vpop.f32.mrf.mxu0
    %v2356 = vadd.f32 %v2343, %v2355
    %v2357 = vpop.f32.mrf.mxu0
    %2358 = vdwg.mxu0
    %2359 = vmatpush.bf16.msra.mxu0 %v997
    %2360 = vmatpush.bf16.msra.mxu0 %v989
    %2361 = vmatpush.bf16.msra.mxu0 %v981
    %2362 = vmatpush.bf16.msra.mxu0 %v973
    %2363 = vmatpush.bf16.msra.mxu0 %v965
    %2364 = vmatpush.bf16.msra.mxu0 %v957
    %2365 = vmatpush.bf16.msra.mxu0 %v949
    %2366 = vmatpush.bf16.msra.mxu0 %v941
    %2367 = vmatmul.bf16.gmra.mxu0 %v2253
    %v2368 = vpop.f32.mrf.mxu0
    %v2369 = vadd.f32 0.0, %v2368
    %v2370 = vpop.f32.mrf.mxu0
    %2371 = vdwg.mxu0
    %2372 = vmatpush.bf16.msra.mxu0 %v1061
    %2373 = vmatpush.bf16.msra.mxu0 %v1053
    %2374 = vmatpush.bf16.msra.mxu0 %v1045
    %2375 = vmatpush.bf16.msra.mxu0 %v1037
    %2376 = vmatpush.bf16.msra.mxu0 %v1029
    %2377 = vmatpush.bf16.msra.mxu0 %v1021
    %2378 = vmatpush.bf16.msra.mxu0 %v1013
    %2379 = vmatpush.bf16.msra.mxu0 %v1005
    %2380 = vmatmul.bf16.gmra.mxu0 %v2254
    %v2381 = vpop.f32.mrf.mxu0
    %v2382 = vadd.f32 %v2369, %v2381
    %v2383 = vpop.f32.mrf.mxu0
    %2384 = vdwg.mxu0
    %2385 = vmatpush.bf16.msra.mxu0 %v998
    %2386 = vmatpush.bf16.msra.mxu0 %v990
    %2387 = vmatpush.bf16.msra.mxu0 %v982
    %2388 = vmatpush.bf16.msra.mxu0 %v974
    %2389 = vmatpush.bf16.msra.mxu0 %v966
    %2390 = vmatpush.bf16.msra.mxu0 %v958
    %2391 = vmatpush.bf16.msra.mxu0 %v950
    %2392 = vmatpush.bf16.msra.mxu0 %v942
    %2393 = vmatmul.bf16.gmra.mxu0 %v2253
    %v2394 = vpop.f32.mrf.mxu0
    %v2395 = vadd.f32 0.0, %v2394
    %v2396 = vpop.f32.mrf.mxu0
    %2397 = vdwg.mxu0
    %2398 = vmatpush.bf16.msra.mxu0 %v1062
    %2399 = vmatpush.bf16.msra.mxu0 %v1054
    %2400 = vmatpush.bf16.msra.mxu0 %v1046
    %2401 = vmatpush.bf16.msra.mxu0 %v1038
    %2402 = vmatpush.bf16.msra.mxu0 %v1030
    %2403 = vmatpush.bf16.msra.mxu0 %v1022
    %2404 = vmatpush.bf16.msra.mxu0 %v1014
    %2405 = vmatpush.bf16.msra.mxu0 %v1006
    %2406 = vmatmul.bf16.gmra.mxu0 %v2254
    %v2407 = vpop.f32.mrf.mxu0
    %v2408 = vadd.f32 %v2395, %v2407
    %v2409 = vpop.f32.mrf.mxu0
    %2410 = vdwg.mxu0
    %2411 = vmatpush.bf16.msra.mxu0 %v999
    %2412 = vmatpush.bf16.msra.mxu0 %v991
    %2413 = vmatpush.bf16.msra.mxu0 %v983
    %2414 = vmatpush.bf16.msra.mxu0 %v975
    %2415 = vmatpush.bf16.msra.mxu0 %v967
    %2416 = vmatpush.bf16.msra.mxu0 %v959
    %2417 = vmatpush.bf16.msra.mxu0 %v951
    %2418 = vmatpush.bf16.msra.mxu0 %v943
    %2419 = vmatmul.bf16.gmra.mxu0 %v2253
    %v2420 = vpop.f32.mrf.mxu0
    %v2421 = vadd.f32 0.0, %v2420
    %v2422 = vpop.f32.mrf.mxu0
    %2423 = vdwg.mxu0
    %2424 = vmatpush.bf16.msra.mxu0 %v1063
    %2425 = vmatpush.bf16.msra.mxu0 %v1055
    %2426 = vmatpush.bf16.msra.mxu0 %v1047
    %2427 = vmatpush.bf16.msra.mxu0 %v1039
    %2428 = vmatpush.bf16.msra.mxu0 %v1031
    %2429 = vmatpush.bf16.msra.mxu0 %v1023
    %2430 = vmatpush.bf16.msra.mxu0 %v1015
    %2431 = vmatpush.bf16.msra.mxu0 %v1007
    %2432 = vmatmul.bf16.gmra.mxu0 %v2254
    %v2433 = vpop.f32.mrf.mxu0
    %v2434 = vadd.f32 %v2421, %v2433
    %v2435 = vpop.f32.mrf.mxu0
    %2436 = vdwg.mxu0
    %2437 = vmatpush.bf16.msra.mxu0 %v1000
    %2438 = vmatpush.bf16.msra.mxu0 %v992
    %2439 = vmatpush.bf16.msra.mxu0 %v984
    %2440 = vmatpush.bf16.msra.mxu0 %v976
    %2441 = vmatpush.bf16.msra.mxu0 %v968
    %2442 = vmatpush.bf16.msra.mxu0 %v960
    %2443 = vmatpush.bf16.msra.mxu0 %v952
    %2444 = vmatpush.bf16.msra.mxu0 %v944
    %2445 = vmatmul.bf16.gmra.mxu0 %v2253
    %v2446 = vpop.f32.mrf.mxu0
    %v2447 = vadd.f32 0.0, %v2446
    %v2448 = vpop.f32.mrf.mxu0
    %2449 = vdwg.mxu0
    %2450 = vmatpush.bf16.msra.mxu0 %v1064
    %2451 = vmatpush.bf16.msra.mxu0 %v1056
    %2452 = vmatpush.bf16.msra.mxu0 %v1048
    %2453 = vmatpush.bf16.msra.mxu0 %v1040
    %2454 = vmatpush.bf16.msra.mxu0 %v1032
    %2455 = vmatpush.bf16.msra.mxu0 %v1024
    %2456 = vmatpush.bf16.msra.mxu0 %v1016
    %2457 = vmatpush.bf16.msra.mxu0 %v1008
    %2458 = vmatmul.bf16.gmra.mxu0 %v2254
    %v2459 = vpop.f32.mrf.mxu0
    %v2460 = vadd.f32 %v2447, %v2459
    %v2461 = vpop.f32.mrf.mxu0
    %2462 = vdwg.mxu0
    %s2463 = smul.u32 4, 4
    %s2464 = smul.addr %s2463, 8
    %s2465 = scalar_lea.vmem [#allocation2], %s2464
    %v2466 = vld [vmem:[%s2465] sm:$0xff]
    %v2467 = vld [vmem:[%s2465 + $0x8] sm:$0xff]
    %v2468 = vld [vmem:[%s2465 + $0x10] sm:$0xff]
    %v2469 = vld [vmem:[%s2465 + $0x18] sm:$0xff]
    %v2470 = vadd.f32 %v2466, %v2278
    %v2471 = vadd.f32 %v2467, %v2304
    %v2472 = vadd.f32 %v2468, %v2330
    %v2473 = vadd.f32 %v2469, %v2356
    %v2474 = vadd.f32 %v2382, %v1413
    %v2475 = vadd.f32 %v2408, %v1414
    %v2476 = vadd.f32 %v2434, %v1415
    %v2477 = vadd.f32 %v2460, %v1416
    %v2478 = vxor.u32 %v2470, 2147483648
    %v2479 = vmul.f32 %v2478, 1.442695
    %v2480 = vpow.pop %v2479
    %v2481 = vadd.f32 %v2480, 1.0
    %v2482 = vrcp.pop %v2481
    %v2483 = vmul.f32 %v2481, %v2482
    %v2484 = vsub.f32 1.0, %v2483
    %v2485 = vmul.f32 %v2482, %v2484
    %v2486 = vadd.f32 %v2482, %v2485
    %vm2487 = vweird.f32 %v2481
    %vm2488 = vweird.f32 %v2482
    %vm2489 = vmor %vm2487, %vm2488
    %v2490 = vsel %vm2489, %v2482, %v2486
    %v2491 = vand.u32 2147483647, %v2481
    %vm2492 = vcmp.eq.f32.partialorder %v2491, 8.507059e+37
    %v2493 = vand.u32 %v2481, 2147483648
    %v2494 = vor.u32 1.1754944e-38, %v2493
    %v2495 = vsel %vm2492, %v2494, %v2490
    %v2496 = vmul.f32 1.0, %v2495
    %v2497 = vxor.u32 %v2471, 2147483648
    %v2498 = vmul.f32 %v2497, 1.442695
    %v2499 = vpow.pop %v2498
    %v2500 = vadd.f32 %v2499, 1.0
    %v2501 = vrcp.pop %v2500
    %v2502 = vmul.f32 %v2500, %v2501
    %v2503 = vsub.f32 1.0, %v2502
    %v2504 = vmul.f32 %v2501, %v2503
    %v2505 = vadd.f32 %v2501, %v2504
    %vm2506 = vweird.f32 %v2500
    %vm2507 = vweird.f32 %v2501
    %vm2508 = vmor %vm2506, %vm2507
    %v2509 = vsel %vm2508, %v2501, %v2505
    %v2510 = vand.u32 2147483647, %v2500
    %vm2511 = vcmp.eq.f32.partialorder %v2510, 8.507059e+37
    %v2512 = vand.u32 %v2500, 2147483648
    %v2513 = vor.u32 1.1754944e-38, %v2512
    %v2514 = vsel %vm2511, %v2513, %v2509
    %v2515 = vmul.f32 1.0, %v2514
    %v2516 = vtanh.pop %v2472
    %v2517 = vxor.u32 %v2473, 2147483648
    %v2518 = vmul.f32 %v2517, 1.442695
    %v2519 = vpow.pop %v2518
    %v2520 = vadd.f32 %v2519, 1.0
    %v2521 = vrcp.pop %v2520
    %v2522 = vmul.f32 %v2520, %v2521
    %v2523 = vsub.f32 1.0, %v2522
    %v2524 = vmul.f32 %v2521, %v2523
    %v2525 = vadd.f32 %v2521, %v2524
    %vm2526 = vweird.f32 %v2520
    %vm2527 = vweird.f32 %v2521
    %vm2528 = vmor %vm2526, %vm2527
    %v2529 = vsel %vm2528, %v2521, %v2525
    %v2530 = vand.u32 2147483647, %v2520
    %vm2531 = vcmp.eq.f32.partialorder %v2530, 8.507059e+37
    %v2532 = vand.u32 %v2520, 2147483648
    %v2533 = vor.u32 1.1754944e-38, %v2532
    %v2534 = vsel %vm2531, %v2533, %v2529
    %v2535 = vmul.f32 1.0, %v2534
    %v2536 = vmul.f32 %v2515, %v2187
    %v2537 = vmul.f32 %v2496, %v2516
    %v2538 = vadd.f32 %v2536, %v2537
    %v2539 = vtanh.pop %v2538
    %v2540 = vmul.f32 %v2535, %v2539
    %v2541 = vxor.u32 %v2474, 2147483648
    %v2542 = vmul.f32 %v2541, 1.442695
    %v2543 = vpow.pop %v2542
    %v2544 = vadd.f32 %v2543, 1.0
    %v2545 = vrcp.pop %v2544
    %v2546 = vmul.f32 %v2544, %v2545
    %v2547 = vsub.f32 1.0, %v2546
    %v2548 = vmul.f32 %v2545, %v2547
    %v2549 = vadd.f32 %v2545, %v2548
    %vm2550 = vweird.f32 %v2544
    %vm2551 = vweird.f32 %v2545
    %vm2552 = vmor %vm2550, %vm2551
    %v2553 = vsel %vm2552, %v2545, %v2549
    %v2554 = vand.u32 2147483647, %v2544
    %vm2555 = vcmp.eq.f32.partialorder %v2554, 8.507059e+37
    %v2556 = vand.u32 %v2544, 2147483648
    %v2557 = vor.u32 1.1754944e-38, %v2556
    %v2558 = vsel %vm2555, %v2557, %v2553
    %v2559 = vmul.f32 1.0, %v2558
    %v2560 = vxor.u32 %v2475, 2147483648
    %v2561 = vmul.f32 %v2560, 1.442695
    %v2562 = vpow.pop %v2561
    %v2563 = vadd.f32 %v2562, 1.0
    %v2564 = vrcp.pop %v2563
    %v2565 = vmul.f32 %v2563, %v2564
    %v2566 = vsub.f32 1.0, %v2565
    %v2567 = vmul.f32 %v2564, %v2566
    %v2568 = vadd.f32 %v2564, %v2567
    %vm2569 = vweird.f32 %v2563
    %vm2570 = vweird.f32 %v2564
    %vm2571 = vmor %vm2569, %vm2570
    %v2572 = vsel %vm2571, %v2564, %v2568
    %v2573 = vand.u32 2147483647, %v2563
    %vm2574 = vcmp.eq.f32.partialorder %v2573, 8.507059e+37
    %v2575 = vand.u32 %v2563, 2147483648
    %v2576 = vor.u32 1.1754944e-38, %v2575
    %v2577 = vsel %vm2574, %v2576, %v2572
    %v2578 = vmul.f32 1.0, %v2577
    %v2579 = vtanh.pop %v2476
    %v2580 = vxor.u32 %v2477, 2147483648
    %v2581 = vmul.f32 %v2580, 1.442695
    %v2582 = vpow.pop %v2581
    %v2583 = vadd.f32 %v2582, 1.0
    %v2584 = vrcp.pop %v2583
    %v2585 = vmul.f32 %v2583, %v2584
    %v2586 = vsub.f32 1.0, %v2585
    %v2587 = vmul.f32 %v2584, %v2586
    %v2588 = vadd.f32 %v2584, %v2587
    %vm2589 = vweird.f32 %v2583
    %vm2590 = vweird.f32 %v2584
    %vm2591 = vmor %vm2589, %vm2590
    %v2592 = vsel %vm2591, %v2584, %v2588
    %v2593 = vand.u32 2147483647, %v2583
    %vm2594 = vcmp.eq.f32.partialorder %v2593, 8.507059e+37
    %v2595 = vand.u32 %v2583, 2147483648
    %v2596 = vor.u32 1.1754944e-38, %v2595
    %v2597 = vsel %vm2594, %v2596, %v2592
    %v2598 = vmul.f32 1.0, %v2597
    %v2599 = vmul.f32 %v2578, %v2250
    %v2600 = vmul.f32 %v2559, %v2579
    %v2601 = vadd.f32 %v2599, %v2600
    %v2602 = vtanh.pop %v2601
    %v2603 = vmul.f32 %v2598, %v2602
    %v2604 = vpack.c.bf16 %v2540, %v2540
    %v2605 = vpack.c.bf16 %v2603, %v2603
    %2606 = vmatpush.bf16.msra.mxu0 %v993
    %2607 = vmatpush.bf16.msra.mxu0 %v985
    %2608 = vmatpush.bf16.msra.mxu0 %v977
    %2609 = vmatpush.bf16.msra.mxu0 %v969
    %2610 = vmatpush.bf16.msra.mxu0 %v961
    %2611 = vmatpush.bf16.msra.mxu0 %v953
    %2612 = vmatpush.bf16.msra.mxu0 %v945
    %2613 = vmatpush.bf16.msra.mxu0 %v937
    %2614 = vmatmul.bf16.gmra.mxu0 %v2604
    %v2615 = vpop.f32.mrf.mxu0
    %v2616 = vadd.f32 0.0, %v2615
    %v2617 = vpop.f32.mrf.mxu0
    %2618 = vdwg.mxu0
    %2619 = vmatpush.bf16.msra.mxu0 %v1057
    %2620 = vmatpush.bf16.msra.mxu0 %v1049
    %2621 = vmatpush.bf16.msra.mxu0 %v1041
    %2622 = vmatpush.bf16.msra.mxu0 %v1033
    %2623 = vmatpush.bf16.msra.mxu0 %v1025
    %2624 = vmatpush.bf16.msra.mxu0 %v1017
    %2625 = vmatpush.bf16.msra.mxu0 %v1009
    %2626 = vmatpush.bf16.msra.mxu0 %v1001
    %2627 = vmatmul.bf16.gmra.mxu0 %v2605
    %v2628 = vpop.f32.mrf.mxu0
    %v2629 = vadd.f32 %v2616, %v2628
    %v2630 = vpop.f32.mrf.mxu0
    %2631 = vdwg.mxu0
    %2632 = vmatpush.bf16.msra.mxu0 %v994
    %2633 = vmatpush.bf16.msra.mxu0 %v986
    %2634 = vmatpush.bf16.msra.mxu0 %v978
    %2635 = vmatpush.bf16.msra.mxu0 %v970
    %2636 = vmatpush.bf16.msra.mxu0 %v962
    %2637 = vmatpush.bf16.msra.mxu0 %v954
    %2638 = vmatpush.bf16.msra.mxu0 %v946
    %2639 = vmatpush.bf16.msra.mxu0 %v938
    %2640 = vmatmul.bf16.gmra.mxu0 %v2604
    %v2641 = vpop.f32.mrf.mxu0
    %v2642 = vadd.f32 0.0, %v2641
    %v2643 = vpop.f32.mrf.mxu0
    %2644 = vdwg.mxu0
    %2645 = vmatpush.bf16.msra.mxu0 %v1058
    %2646 = vmatpush.bf16.msra.mxu0 %v1050
    %2647 = vmatpush.bf16.msra.mxu0 %v1042
    %2648 = vmatpush.bf16.msra.mxu0 %v1034
    %2649 = vmatpush.bf16.msra.mxu0 %v1026
    %2650 = vmatpush.bf16.msra.mxu0 %v1018
    %2651 = vmatpush.bf16.msra.mxu0 %v1010
    %2652 = vmatpush.bf16.msra.mxu0 %v1002
    %2653 = vmatmul.bf16.gmra.mxu0 %v2605
    %v2654 = vpop.f32.mrf.mxu0
    %v2655 = vadd.f32 %v2642, %v2654
    %v2656 = vpop.f32.mrf.mxu0
    %2657 = vdwg.mxu0
    %2658 = vmatpush.bf16.msra.mxu0 %v995
    %2659 = vmatpush.bf16.msra.mxu0 %v987
    %2660 = vmatpush.bf16.msra.mxu0 %v979
    %2661 = vmatpush.bf16.msra.mxu0 %v971
    %2662 = vmatpush.bf16.msra.mxu0 %v963
    %2663 = vmatpush.bf16.msra.mxu0 %v955
    %2664 = vmatpush.bf16.msra.mxu0 %v947
    %2665 = vmatpush.bf16.msra.mxu0 %v939
    %2666 = vmatmul.bf16.gmra.mxu0 %v2604
    %v2667 = vpop.f32.mrf.mxu0
    %v2668 = vadd.f32 0.0, %v2667
    %v2669 = vpop.f32.mrf.mxu0
    %2670 = vdwg.mxu0
    %2671 = vmatpush.bf16.msra.mxu0 %v1059
    %2672 = vmatpush.bf16.msra.mxu0 %v1051
    %2673 = vmatpush.bf16.msra.mxu0 %v1043
    %2674 = vmatpush.bf16.msra.mxu0 %v1035
    %2675 = vmatpush.bf16.msra.mxu0 %v1027
    %2676 = vmatpush.bf16.msra.mxu0 %v1019
    %2677 = vmatpush.bf16.msra.mxu0 %v1011
    %2678 = vmatpush.bf16.msra.mxu0 %v1003
    %2679 = vmatmul.bf16.gmra.mxu0 %v2605
    %v2680 = vpop.f32.mrf.mxu0
    %v2681 = vadd.f32 %v2668, %v2680
    %v2682 = vpop.f32.mrf.mxu0
    %2683 = vdwg.mxu0
    %2684 = vmatpush.bf16.msra.mxu0 %v996
    %2685 = vmatpush.bf16.msra.mxu0 %v988
    %2686 = vmatpush.bf16.msra.mxu0 %v980
    %2687 = vmatpush.bf16.msra.mxu0 %v972
    %2688 = vmatpush.bf16.msra.mxu0 %v964
    %2689 = vmatpush.bf16.msra.mxu0 %v956
    %2690 = vmatpush.bf16.msra.mxu0 %v948
    %2691 = vmatpush.bf16.msra.mxu0 %v940
    %2692 = vmatmul.bf16.gmra.mxu0 %v2604
    %v2693 = vpop.f32.mrf.mxu0
    %v2694 = vadd.f32 0.0, %v2693
    %v2695 = vpop.f32.mrf.mxu0
    %2696 = vdwg.mxu0
    %2697 = vmatpush.bf16.msra.mxu0 %v1060
    %2698 = vmatpush.bf16.msra.mxu0 %v1052
    %2699 = vmatpush.bf16.msra.mxu0 %v1044
    %2700 = vmatpush.bf16.msra.mxu0 %v1036
    %2701 = vmatpush.bf16.msra.mxu0 %v1028
    %2702 = vmatpush.bf16.msra.mxu0 %v1020
    %2703 = vmatpush.bf16.msra.mxu0 %v1012
    %2704 = vmatpush.bf16.msra.mxu0 %v1004
    %2705 = vmatmul.bf16.gmra.mxu0 %v2605
    %v2706 = vpop.f32.mrf.mxu0
    %v2707 = vadd.f32 %v2694, %v2706
    %v2708 = vpop.f32.mrf.mxu0
    %2709 = vdwg.mxu0
    %2710 = vmatpush.bf16.msra.mxu0 %v997
    %2711 = vmatpush.bf16.msra.mxu0 %v989
    %2712 = vmatpush.bf16.msra.mxu0 %v981
    %2713 = vmatpush.bf16.msra.mxu0 %v973
    %2714 = vmatpush.bf16.msra.mxu0 %v965
    %2715 = vmatpush.bf16.msra.mxu0 %v957
    %2716 = vmatpush.bf16.msra.mxu0 %v949
    %2717 = vmatpush.bf16.msra.mxu0 %v941
    %2718 = vmatmul.bf16.gmra.mxu0 %v2604
    %v2719 = vpop.f32.mrf.mxu0
    %v2720 = vadd.f32 0.0, %v2719
    %v2721 = vpop.f32.mrf.mxu0
    %2722 = vdwg.mxu0
    %2723 = vmatpush.bf16.msra.mxu0 %v1061
    %2724 = vmatpush.bf16.msra.mxu0 %v1053
    %2725 = vmatpush.bf16.msra.mxu0 %v1045
    %2726 = vmatpush.bf16.msra.mxu0 %v1037
    %2727 = vmatpush.bf16.msra.mxu0 %v1029
    %2728 = vmatpush.bf16.msra.mxu0 %v1021
    %2729 = vmatpush.bf16.msra.mxu0 %v1013
    %2730 = vmatpush.bf16.msra.mxu0 %v1005
    %2731 = vmatmul.bf16.gmra.mxu0 %v2605
    %v2732 = vpop.f32.mrf.mxu0
    %v2733 = vadd.f32 %v2720, %v2732
    %v2734 = vpop.f32.mrf.mxu0
    %2735 = vdwg.mxu0
    %2736 = vmatpush.bf16.msra.mxu0 %v998
    %2737 = vmatpush.bf16.msra.mxu0 %v990
    %2738 = vmatpush.bf16.msra.mxu0 %v982
    %2739 = vmatpush.bf16.msra.mxu0 %v974
    %2740 = vmatpush.bf16.msra.mxu0 %v966
    %2741 = vmatpush.bf16.msra.mxu0 %v958
    %2742 = vmatpush.bf16.msra.mxu0 %v950
    %2743 = vmatpush.bf16.msra.mxu0 %v942
    %2744 = vmatmul.bf16.gmra.mxu0 %v2604
    %v2745 = vpop.f32.mrf.mxu0
    %v2746 = vadd.f32 0.0, %v2745
    %v2747 = vpop.f32.mrf.mxu0
    %2748 = vdwg.mxu0
    %2749 = vmatpush.bf16.msra.mxu0 %v1062
    %2750 = vmatpush.bf16.msra.mxu0 %v1054
    %2751 = vmatpush.bf16.msra.mxu0 %v1046
    %2752 = vmatpush.bf16.msra.mxu0 %v1038
    %2753 = vmatpush.bf16.msra.mxu0 %v1030
    %2754 = vmatpush.bf16.msra.mxu0 %v1022
    %2755 = vmatpush.bf16.msra.mxu0 %v1014
    %2756 = vmatpush.bf16.msra.mxu0 %v1006
    %2757 = vmatmul.bf16.gmra.mxu0 %v2605
    %v2758 = vpop.f32.mrf.mxu0
    %v2759 = vadd.f32 %v2746, %v2758
    %v2760 = vpop.f32.mrf.mxu0
    %2761 = vdwg.mxu0
    %2762 = vmatpush.bf16.msra.mxu0 %v999
    %2763 = vmatpush.bf16.msra.mxu0 %v991
    %2764 = vmatpush.bf16.msra.mxu0 %v983
    %2765 = vmatpush.bf16.msra.mxu0 %v975
    %2766 = vmatpush.bf16.msra.mxu0 %v967
    %2767 = vmatpush.bf16.msra.mxu0 %v959
    %2768 = vmatpush.bf16.msra.mxu0 %v951
    %2769 = vmatpush.bf16.msra.mxu0 %v943
    %2770 = vmatmul.bf16.gmra.mxu0 %v2604
    %v2771 = vpop.f32.mrf.mxu0
    %v2772 = vadd.f32 0.0, %v2771
    %v2773 = vpop.f32.mrf.mxu0
    %2774 = vdwg.mxu0
    %2775 = vmatpush.bf16.msra.mxu0 %v1063
    %2776 = vmatpush.bf16.msra.mxu0 %v1055
    %2777 = vmatpush.bf16.msra.mxu0 %v1047
    %2778 = vmatpush.bf16.msra.mxu0 %v1039
    %2779 = vmatpush.bf16.msra.mxu0 %v1031
    %2780 = vmatpush.bf16.msra.mxu0 %v1023
    %2781 = vmatpush.bf16.msra.mxu0 %v1015
    %2782 = vmatpush.bf16.msra.mxu0 %v1007
    %2783 = vmatmul.bf16.gmra.mxu0 %v2605
    %v2784 = vpop.f32.mrf.mxu0
    %v2785 = vadd.f32 %v2772, %v2784
    %v2786 = vpop.f32.mrf.mxu0
    %2787 = vdwg.mxu0
    %2788 = vmatpush.bf16.msra.mxu0 %v1000
    %2789 = vmatpush.bf16.msra.mxu0 %v992
    %2790 = vmatpush.bf16.msra.mxu0 %v984
    %2791 = vmatpush.bf16.msra.mxu0 %v976
    %2792 = vmatpush.bf16.msra.mxu0 %v968
    %2793 = vmatpush.bf16.msra.mxu0 %v960
    %2794 = vmatpush.bf16.msra.mxu0 %v952
    %2795 = vmatpush.bf16.msra.mxu0 %v944
    %2796 = vmatmul.bf16.gmra.mxu0 %v2604
    %v2797 = vpop.f32.mrf.mxu0
    %v2798 = vadd.f32 0.0, %v2797
    %v2799 = vpop.f32.mrf.mxu0
    %2800 = vdwg.mxu0
    %2801 = vmatpush.bf16.msra.mxu0 %v1064
    %2802 = vmatpush.bf16.msra.mxu0 %v1056
    %2803 = vmatpush.bf16.msra.mxu0 %v1048
    %2804 = vmatpush.bf16.msra.mxu0 %v1040
    %2805 = vmatpush.bf16.msra.mxu0 %v1032
    %2806 = vmatpush.bf16.msra.mxu0 %v1024
    %2807 = vmatpush.bf16.msra.mxu0 %v1016
    %2808 = vmatpush.bf16.msra.mxu0 %v1008
    %2809 = vmatmul.bf16.gmra.mxu0 %v2605
    %v2810 = vpop.f32.mrf.mxu0
    %v2811 = vadd.f32 %v2798, %v2810
    %v2812 = vpop.f32.mrf.mxu0
    %2813 = vdwg.mxu0
    %s2814 = smul.u32 5, 4
    %s2815 = smul.addr %s2814, 8
    %s2816 = scalar_lea.vmem [#allocation2], %s2815
    %v2817 = vld [vmem:[%s2816] sm:$0xff]
    %v2818 = vld [vmem:[%s2816 + $0x8] sm:$0xff]
    %v2819 = vld [vmem:[%s2816 + $0x10] sm:$0xff]
    %v2820 = vld [vmem:[%s2816 + $0x18] sm:$0xff]
    %v2821 = vadd.f32 %v2817, %v2629
    %v2822 = vadd.f32 %v2818, %v2655
    %v2823 = vadd.f32 %v2819, %v2681
    %v2824 = vadd.f32 %v2820, %v2707
    %v2825 = vadd.f32 %v2733, %v1413
    %v2826 = vadd.f32 %v2759, %v1414
    %v2827 = vadd.f32 %v2785, %v1415
    %v2828 = vadd.f32 %v2811, %v1416
    %v2829 = vxor.u32 %v2821, 2147483648
    %v2830 = vmul.f32 %v2829, 1.442695
    %v2831 = vpow.pop %v2830
    %v2832 = vadd.f32 %v2831, 1.0
    %v2833 = vrcp.pop %v2832
    %v2834 = vmul.f32 %v2832, %v2833
    %v2835 = vsub.f32 1.0, %v2834
    %v2836 = vmul.f32 %v2833, %v2835
    %v2837 = vadd.f32 %v2833, %v2836
    %vm2838 = vweird.f32 %v2832
    %vm2839 = vweird.f32 %v2833
    %vm2840 = vmor %vm2838, %vm2839
    %v2841 = vsel %vm2840, %v2833, %v2837
    %v2842 = vand.u32 2147483647, %v2832
    %vm2843 = vcmp.eq.f32.partialorder %v2842, 8.507059e+37
    %v2844 = vand.u32 %v2832, 2147483648
    %v2845 = vor.u32 1.1754944e-38, %v2844
    %v2846 = vsel %vm2843, %v2845, %v2841
    %v2847 = vmul.f32 1.0, %v2846
    %v2848 = vxor.u32 %v2822, 2147483648
    %v2849 = vmul.f32 %v2848, 1.442695
    %v2850 = vpow.pop %v2849
    %v2851 = vadd.f32 %v2850, 1.0
    %v2852 = vrcp.pop %v2851
    %v2853 = vmul.f32 %v2851, %v2852
    %v2854 = vsub.f32 1.0, %v2853
    %v2855 = vmul.f32 %v2852, %v2854
    %v2856 = vadd.f32 %v2852, %v2855
    %vm2857 = vweird.f32 %v2851
    %vm2858 = vweird.f32 %v2852
    %vm2859 = vmor %vm2857, %vm2858
    %v2860 = vsel %vm2859, %v2852, %v2856
    %v2861 = vand.u32 2147483647, %v2851
    %vm2862 = vcmp.eq.f32.partialorder %v2861, 8.507059e+37
    %v2863 = vand.u32 %v2851, 2147483648
    %v2864 = vor.u32 1.1754944e-38, %v2863
    %v2865 = vsel %vm2862, %v2864, %v2860
    %v2866 = vmul.f32 1.0, %v2865
    %v2867 = vtanh.pop %v2823
    %v2868 = vxor.u32 %v2824, 2147483648
    %v2869 = vmul.f32 %v2868, 1.442695
    %v2870 = vpow.pop %v2869
    %v2871 = vadd.f32 %v2870, 1.0
    %v2872 = vrcp.pop %v2871
    %v2873 = vmul.f32 %v2871, %v2872
    %v2874 = vsub.f32 1.0, %v2873
    %v2875 = vmul.f32 %v2872, %v2874
    %v2876 = vadd.f32 %v2872, %v2875
    %vm2877 = vweird.f32 %v2871
    %vm2878 = vweird.f32 %v2872
    %vm2879 = vmor %vm2877, %vm2878
    %v2880 = vsel %vm2879, %v2872, %v2876
    %v2881 = vand.u32 2147483647, %v2871
    %vm2882 = vcmp.eq.f32.partialorder %v2881, 8.507059e+37
    %v2883 = vand.u32 %v2871, 2147483648
    %v2884 = vor.u32 1.1754944e-38, %v2883
    %v2885 = vsel %vm2882, %v2884, %v2880
    %v2886 = vmul.f32 1.0, %v2885
    %v2887 = vmul.f32 %v2866, %v2538
    %v2888 = vmul.f32 %v2847, %v2867
    %v2889 = vadd.f32 %v2887, %v2888
    %v2890 = vtanh.pop %v2889
    %v2891 = vmul.f32 %v2886, %v2890
    %v2892 = vxor.u32 %v2825, 2147483648
    %v2893 = vmul.f32 %v2892, 1.442695
    %v2894 = vpow.pop %v2893
    %v2895 = vadd.f32 %v2894, 1.0
    %v2896 = vrcp.pop %v2895
    %v2897 = vmul.f32 %v2895, %v2896
    %v2898 = vsub.f32 1.0, %v2897
    %v2899 = vmul.f32 %v2896, %v2898
    %v2900 = vadd.f32 %v2896, %v2899
    %vm2901 = vweird.f32 %v2895
    %vm2902 = vweird.f32 %v2896
    %vm2903 = vmor %vm2901, %vm2902
    %v2904 = vsel %vm2903, %v2896, %v2900
    %v2905 = vand.u32 2147483647, %v2895
    %vm2906 = vcmp.eq.f32.partialorder %v2905, 8.507059e+37
    %v2907 = vand.u32 %v2895, 2147483648
    %v2908 = vor.u32 1.1754944e-38, %v2907
    %v2909 = vsel %vm2906, %v2908, %v2904
    %v2910 = vmul.f32 1.0, %v2909
    %v2911 = vxor.u32 %v2826, 2147483648
    %v2912 = vmul.f32 %v2911, 1.442695
    %v2913 = vpow.pop %v2912
    %v2914 = vadd.f32 %v2913, 1.0
    %v2915 = vrcp.pop %v2914
    %v2916 = vmul.f32 %v2914, %v2915
    %v2917 = vsub.f32 1.0, %v2916
    %v2918 = vmul.f32 %v2915, %v2917
    %v2919 = vadd.f32 %v2915, %v2918
    %vm2920 = vweird.f32 %v2914
    %vm2921 = vweird.f32 %v2915
    %vm2922 = vmor %vm2920, %vm2921
    %v2923 = vsel %vm2922, %v2915, %v2919
    %v2924 = vand.u32 2147483647, %v2914
    %vm2925 = vcmp.eq.f32.partialorder %v2924, 8.507059e+37
    %v2926 = vand.u32 %v2914, 2147483648
    %v2927 = vor.u32 1.1754944e-38, %v2926
    %v2928 = vsel %vm2925, %v2927, %v2923
    %v2929 = vmul.f32 1.0, %v2928
    %v2930 = vtanh.pop %v2827
    %v2931 = vxor.u32 %v2828, 2147483648
    %v2932 = vmul.f32 %v2931, 1.442695
    %v2933 = vpow.pop %v2932
    %v2934 = vadd.f32 %v2933, 1.0
    %v2935 = vrcp.pop %v2934
    %v2936 = vmul.f32 %v2934, %v2935
    %v2937 = vsub.f32 1.0, %v2936
    %v2938 = vmul.f32 %v2935, %v2937
    %v2939 = vadd.f32 %v2935, %v2938
    %vm2940 = vweird.f32 %v2934
    %vm2941 = vweird.f32 %v2935
    %vm2942 = vmor %vm2940, %vm2941
    %v2943 = vsel %vm2942, %v2935, %v2939
    %v2944 = vand.u32 2147483647, %v2934
    %vm2945 = vcmp.eq.f32.partialorder %v2944, 8.507059e+37
    %v2946 = vand.u32 %v2934, 2147483648
    %v2947 = vor.u32 1.1754944e-38, %v2946
    %v2948 = vsel %vm2945, %v2947, %v2943
    %v2949 = vmul.f32 1.0, %v2948
    %v2950 = vmul.f32 %v2929, %v2601
    %v2951 = vmul.f32 %v2910, %v2930
    %v2952 = vadd.f32 %v2950, %v2951
    %v2953 = vtanh.pop %v2952
    %v2954 = vmul.f32 %v2949, %v2953
    %v2955 = vpack.c.bf16 %v2891, %v2891
    %v2956 = vpack.c.bf16 %v2954, %v2954
    %2957 = vmatpush.bf16.msra.mxu0 %v993
    %2958 = vmatpush.bf16.msra.mxu0 %v985
    %2959 = vmatpush.bf16.msra.mxu0 %v977
    %2960 = vmatpush.bf16.msra.mxu0 %v969
    %2961 = vmatpush.bf16.msra.mxu0 %v961
    %2962 = vmatpush.bf16.msra.mxu0 %v953
    %2963 = vmatpush.bf16.msra.mxu0 %v945
    %2964 = vmatpush.bf16.msra.mxu0 %v937
    %2965 = vmatmul.bf16.gmra.mxu0 %v2955
    %v2966 = vpop.f32.mrf.mxu0
    %v2967 = vadd.f32 0.0, %v2966
    %v2968 = vpop.f32.mrf.mxu0
    %2969 = vdwg.mxu0
    %2970 = vmatpush.bf16.msra.mxu0 %v1057
    %2971 = vmatpush.bf16.msra.mxu0 %v1049
    %2972 = vmatpush.bf16.msra.mxu0 %v1041
    %2973 = vmatpush.bf16.msra.mxu0 %v1033
    %2974 = vmatpush.bf16.msra.mxu0 %v1025
    %2975 = vmatpush.bf16.msra.mxu0 %v1017
    %2976 = vmatpush.bf16.msra.mxu0 %v1009
    %2977 = vmatpush.bf16.msra.mxu0 %v1001
    %2978 = vmatmul.bf16.gmra.mxu0 %v2956
    %v2979 = vpop.f32.mrf.mxu0
    %v2980 = vadd.f32 %v2967, %v2979
    %v2981 = vpop.f32.mrf.mxu0
    %2982 = vdwg.mxu0
    %2983 = vmatpush.bf16.msra.mxu0 %v994
    %2984 = vmatpush.bf16.msra.mxu0 %v986
    %2985 = vmatpush.bf16.msra.mxu0 %v978
    %2986 = vmatpush.bf16.msra.mxu0 %v970
    %2987 = vmatpush.bf16.msra.mxu0 %v962
    %2988 = vmatpush.bf16.msra.mxu0 %v954
    %2989 = vmatpush.bf16.msra.mxu0 %v946
    %2990 = vmatpush.bf16.msra.mxu0 %v938
    %2991 = vmatmul.bf16.gmra.mxu0 %v2955
    %v2992 = vpop.f32.mrf.mxu0
    %v2993 = vadd.f32 0.0, %v2992
    %v2994 = vpop.f32.mrf.mxu0
    %2995 = vdwg.mxu0
    %2996 = vmatpush.bf16.msra.mxu0 %v1058
    %2997 = vmatpush.bf16.msra.mxu0 %v1050
    %2998 = vmatpush.bf16.msra.mxu0 %v1042
    %2999 = vmatpush.bf16.msra.mxu0 %v1034
    %3000 = vmatpush.bf16.msra.mxu0 %v1026
    %3001 = vmatpush.bf16.msra.mxu0 %v1018
    %3002 = vmatpush.bf16.msra.mxu0 %v1010
    %3003 = vmatpush.bf16.msra.mxu0 %v1002
    %3004 = vmatmul.bf16.gmra.mxu0 %v2956
    %v3005 = vpop.f32.mrf.mxu0
    %v3006 = vadd.f32 %v2993, %v3005
    %v3007 = vpop.f32.mrf.mxu0
    %3008 = vdwg.mxu0
    %3009 = vmatpush.bf16.msra.mxu0 %v995
    %3010 = vmatpush.bf16.msra.mxu0 %v987
    %3011 = vmatpush.bf16.msra.mxu0 %v979
    %3012 = vmatpush.bf16.msra.mxu0 %v971
    %3013 = vmatpush.bf16.msra.mxu0 %v963
    %3014 = vmatpush.bf16.msra.mxu0 %v955
    %3015 = vmatpush.bf16.msra.mxu0 %v947
    %3016 = vmatpush.bf16.msra.mxu0 %v939
    %3017 = vmatmul.bf16.gmra.mxu0 %v2955
    %v3018 = vpop.f32.mrf.mxu0
    %v3019 = vadd.f32 0.0, %v3018
    %v3020 = vpop.f32.mrf.mxu0
    %3021 = vdwg.mxu0
    %3022 = vmatpush.bf16.msra.mxu0 %v1059
    %3023 = vmatpush.bf16.msra.mxu0 %v1051
    %3024 = vmatpush.bf16.msra.mxu0 %v1043
    %3025 = vmatpush.bf16.msra.mxu0 %v1035
    %3026 = vmatpush.bf16.msra.mxu0 %v1027
    %3027 = vmatpush.bf16.msra.mxu0 %v1019
    %3028 = vmatpush.bf16.msra.mxu0 %v1011
    %3029 = vmatpush.bf16.msra.mxu0 %v1003
    %3030 = vmatmul.bf16.gmra.mxu0 %v2956
    %v3031 = vpop.f32.mrf.mxu0
    %v3032 = vadd.f32 %v3019, %v3031
    %v3033 = vpop.f32.mrf.mxu0
    %3034 = vdwg.mxu0
    %3035 = vmatpush.bf16.msra.mxu0 %v996
    %3036 = vmatpush.bf16.msra.mxu0 %v988
    %3037 = vmatpush.bf16.msra.mxu0 %v980
    %3038 = vmatpush.bf16.msra.mxu0 %v972
    %3039 = vmatpush.bf16.msra.mxu0 %v964
    %3040 = vmatpush.bf16.msra.mxu0 %v956
    %3041 = vmatpush.bf16.msra.mxu0 %v948
    %3042 = vmatpush.bf16.msra.mxu0 %v940
    %3043 = vmatmul.bf16.gmra.mxu0 %v2955
    %v3044 = vpop.f32.mrf.mxu0
    %v3045 = vadd.f32 0.0, %v3044
    %v3046 = vpop.f32.mrf.mxu0
    %3047 = vdwg.mxu0
    %3048 = vmatpush.bf16.msra.mxu0 %v1060
    %3049 = vmatpush.bf16.msra.mxu0 %v1052
    %3050 = vmatpush.bf16.msra.mxu0 %v1044
    %3051 = vmatpush.bf16.msra.mxu0 %v1036
    %3052 = vmatpush.bf16.msra.mxu0 %v1028
    %3053 = vmatpush.bf16.msra.mxu0 %v1020
    %3054 = vmatpush.bf16.msra.mxu0 %v1012
    %3055 = vmatpush.bf16.msra.mxu0 %v1004
    %3056 = vmatmul.bf16.gmra.mxu0 %v2956
    %v3057 = vpop.f32.mrf.mxu0
    %v3058 = vadd.f32 %v3045, %v3057
    %v3059 = vpop.f32.mrf.mxu0
    %3060 = vdwg.mxu0
    %3061 = vmatpush.bf16.msra.mxu0 %v997
    %3062 = vmatpush.bf16.msra.mxu0 %v989
    %3063 = vmatpush.bf16.msra.mxu0 %v981
    %3064 = vmatpush.bf16.msra.mxu0 %v973
    %3065 = vmatpush.bf16.msra.mxu0 %v965
    %3066 = vmatpush.bf16.msra.mxu0 %v957
    %3067 = vmatpush.bf16.msra.mxu0 %v949
    %3068 = vmatpush.bf16.msra.mxu0 %v941
    %3069 = vmatmul.bf16.gmra.mxu0 %v2955
    %v3070 = vpop.f32.mrf.mxu0
    %v3071 = vadd.f32 0.0, %v3070
    %v3072 = vpop.f32.mrf.mxu0
    %3073 = vdwg.mxu0
    %3074 = vmatpush.bf16.msra.mxu0 %v1061
    %3075 = vmatpush.bf16.msra.mxu0 %v1053
    %3076 = vmatpush.bf16.msra.mxu0 %v1045
    %3077 = vmatpush.bf16.msra.mxu0 %v1037
    %3078 = vmatpush.bf16.msra.mxu0 %v1029
    %3079 = vmatpush.bf16.msra.mxu0 %v1021
    %3080 = vmatpush.bf16.msra.mxu0 %v1013
    %3081 = vmatpush.bf16.msra.mxu0 %v1005
    %3082 = vmatmul.bf16.gmra.mxu0 %v2956
    %v3083 = vpop.f32.mrf.mxu0
    %v3084 = vadd.f32 %v3071, %v3083
    %v3085 = vpop.f32.mrf.mxu0
    %3086 = vdwg.mxu0
    %3087 = vmatpush.bf16.msra.mxu0 %v998
    %3088 = vmatpush.bf16.msra.mxu0 %v990
    %3089 = vmatpush.bf16.msra.mxu0 %v982
    %3090 = vmatpush.bf16.msra.mxu0 %v974
    %3091 = vmatpush.bf16.msra.mxu0 %v966
    %3092 = vmatpush.bf16.msra.mxu0 %v958
    %3093 = vmatpush.bf16.msra.mxu0 %v950
    %3094 = vmatpush.bf16.msra.mxu0 %v942
    %3095 = vmatmul.bf16.gmra.mxu0 %v2955
    %v3096 = vpop.f32.mrf.mxu0
    %v3097 = vadd.f32 0.0, %v3096
    %v3098 = vpop.f32.mrf.mxu0
    %3099 = vdwg.mxu0
    %3100 = vmatpush.bf16.msra.mxu0 %v1062
    %3101 = vmatpush.bf16.msra.mxu0 %v1054
    %3102 = vmatpush.bf16.msra.mxu0 %v1046
    %3103 = vmatpush.bf16.msra.mxu0 %v1038
    %3104 = vmatpush.bf16.msra.mxu0 %v1030
    %3105 = vmatpush.bf16.msra.mxu0 %v1022
    %3106 = vmatpush.bf16.msra.mxu0 %v1014
    %3107 = vmatpush.bf16.msra.mxu0 %v1006
    %3108 = vmatmul.bf16.gmra.mxu0 %v2956
    %v3109 = vpop.f32.mrf.mxu0
    %v3110 = vadd.f32 %v3097, %v3109
    %v3111 = vpop.f32.mrf.mxu0
    %3112 = vdwg.mxu0
    %3113 = vmatpush.bf16.msra.mxu0 %v999
    %3114 = vmatpush.bf16.msra.mxu0 %v991
    %3115 = vmatpush.bf16.msra.mxu0 %v983
    %3116 = vmatpush.bf16.msra.mxu0 %v975
    %3117 = vmatpush.bf16.msra.mxu0 %v967
    %3118 = vmatpush.bf16.msra.mxu0 %v959
    %3119 = vmatpush.bf16.msra.mxu0 %v951
    %3120 = vmatpush.bf16.msra.mxu0 %v943
    %3121 = vmatmul.bf16.gmra.mxu0 %v2955
    %v3122 = vpop.f32.mrf.mxu0
    %v3123 = vadd.f32 0.0, %v3122
    %v3124 = vpop.f32.mrf.mxu0
    %3125 = vdwg.mxu0
    %3126 = vmatpush.bf16.msra.mxu0 %v1063
    %3127 = vmatpush.bf16.msra.mxu0 %v1055
    %3128 = vmatpush.bf16.msra.mxu0 %v1047
    %3129 = vmatpush.bf16.msra.mxu0 %v1039
    %3130 = vmatpush.bf16.msra.mxu0 %v1031
    %3131 = vmatpush.bf16.msra.mxu0 %v1023
    %3132 = vmatpush.bf16.msra.mxu0 %v1015
    %3133 = vmatpush.bf16.msra.mxu0 %v1007
    %3134 = vmatmul.bf16.gmra.mxu0 %v2956
    %v3135 = vpop.f32.mrf.mxu0
    %v3136 = vadd.f32 %v3123, %v3135
    %v3137 = vpop.f32.mrf.mxu0
    %3138 = vdwg.mxu0
    %3139 = vmatpush.bf16.msra.mxu0 %v1000
    %3140 = vmatpush.bf16.msra.mxu0 %v992
    %3141 = vmatpush.bf16.msra.mxu0 %v984
    %3142 = vmatpush.bf16.msra.mxu0 %v976
    %3143 = vmatpush.bf16.msra.mxu0 %v968
    %3144 = vmatpush.bf16.msra.mxu0 %v960
    %3145 = vmatpush.bf16.msra.mxu0 %v952
    %3146 = vmatpush.bf16.msra.mxu0 %v944
    %3147 = vmatmul.bf16.gmra.mxu0 %v2955
    %v3148 = vpop.f32.mrf.mxu0
    %v3149 = vadd.f32 0.0, %v3148
    %v3150 = vpop.f32.mrf.mxu0
    %3151 = vdwg.mxu0
    %3152 = vmatpush.bf16.msra.mxu0 %v1064
    %3153 = vmatpush.bf16.msra.mxu0 %v1056
    %3154 = vmatpush.bf16.msra.mxu0 %v1048
    %3155 = vmatpush.bf16.msra.mxu0 %v1040
    %3156 = vmatpush.bf16.msra.mxu0 %v1032
    %3157 = vmatpush.bf16.msra.mxu0 %v1024
    %3158 = vmatpush.bf16.msra.mxu0 %v1016
    %3159 = vmatpush.bf16.msra.mxu0 %v1008
    %3160 = vmatmul.bf16.gmra.mxu0 %v2956
    %v3161 = vpop.f32.mrf.mxu0
    %v3162 = vadd.f32 %v3149, %v3161
    %v3163 = vpop.f32.mrf.mxu0
    %3164 = vdwg.mxu0
    %s3165 = smul.u32 6, 4
    %s3166 = smul.addr %s3165, 8
    %s3167 = scalar_lea.vmem [#allocation2], %s3166
    %v3168 = vld [vmem:[%s3167] sm:$0xff]
    %v3169 = vld [vmem:[%s3167 + $0x8] sm:$0xff]
    %v3170 = vld [vmem:[%s3167 + $0x10] sm:$0xff]
    %v3171 = vld [vmem:[%s3167 + $0x18] sm:$0xff]
    %v3172 = vadd.f32 %v3168, %v2980
    %v3173 = vadd.f32 %v3169, %v3006
    %v3174 = vadd.f32 %v3170, %v3032
    %v3175 = vadd.f32 %v3171, %v3058
    %v3176 = vadd.f32 %v3084, %v1413
    %v3177 = vadd.f32 %v3110, %v1414
    %v3178 = vadd.f32 %v3136, %v1415
    %v3179 = vadd.f32 %v3162, %v1416
    %v3180 = vxor.u32 %v3172, 2147483648
    %v3181 = vmul.f32 %v3180, 1.442695
    %v3182 = vpow.pop %v3181
    %v3183 = vadd.f32 %v3182, 1.0
    %v3184 = vrcp.pop %v3183
    %v3185 = vmul.f32 %v3183, %v3184
    %v3186 = vsub.f32 1.0, %v3185
    %v3187 = vmul.f32 %v3184, %v3186
    %v3188 = vadd.f32 %v3184, %v3187
    %vm3189 = vweird.f32 %v3183
    %vm3190 = vweird.f32 %v3184
    %vm3191 = vmor %vm3189, %vm3190
    %v3192 = vsel %vm3191, %v3184, %v3188
    %v3193 = vand.u32 2147483647, %v3183
    %vm3194 = vcmp.eq.f32.partialorder %v3193, 8.507059e+37
    %v3195 = vand.u32 %v3183, 2147483648
    %v3196 = vor.u32 1.1754944e-38, %v3195
    %v3197 = vsel %vm3194, %v3196, %v3192
    %v3198 = vmul.f32 1.0, %v3197
    %v3199 = vxor.u32 %v3173, 2147483648
    %v3200 = vmul.f32 %v3199, 1.442695
    %v3201 = vpow.pop %v3200
    %v3202 = vadd.f32 %v3201, 1.0
    %v3203 = vrcp.pop %v3202
    %v3204 = vmul.f32 %v3202, %v3203
    %v3205 = vsub.f32 1.0, %v3204
    %v3206 = vmul.f32 %v3203, %v3205
    %v3207 = vadd.f32 %v3203, %v3206
    %vm3208 = vweird.f32 %v3202
    %vm3209 = vweird.f32 %v3203
    %vm3210 = vmor %vm3208, %vm3209
    %v3211 = vsel %vm3210, %v3203, %v3207
    %v3212 = vand.u32 2147483647, %v3202
    %vm3213 = vcmp.eq.f32.partialorder %v3212, 8.507059e+37
    %v3214 = vand.u32 %v3202, 2147483648
    %v3215 = vor.u32 1.1754944e-38, %v3214
    %v3216 = vsel %vm3213, %v3215, %v3211
    %v3217 = vmul.f32 1.0, %v3216
    %v3218 = vtanh.pop %v3174
    %v3219 = vxor.u32 %v3175, 2147483648
    %v3220 = vmul.f32 %v3219, 1.442695
    %v3221 = vpow.pop %v3220
    %v3222 = vadd.f32 %v3221, 1.0
    %v3223 = vrcp.pop %v3222
    %v3224 = vmul.f32 %v3222, %v3223
    %v3225 = vsub.f32 1.0, %v3224
    %v3226 = vmul.f32 %v3223, %v3225
    %v3227 = vadd.f32 %v3223, %v3226
    %vm3228 = vweird.f32 %v3222
    %vm3229 = vweird.f32 %v3223
    %vm3230 = vmor %vm3228, %vm3229
    %v3231 = vsel %vm3230, %v3223, %v3227
    %v3232 = vand.u32 2147483647, %v3222
    %vm3233 = vcmp.eq.f32.partialorder %v3232, 8.507059e+37
    %v3234 = vand.u32 %v3222, 2147483648
    %v3235 = vor.u32 1.1754944e-38, %v3234
    %v3236 = vsel %vm3233, %v3235, %v3231
    %v3237 = vmul.f32 1.0, %v3236
    %v3238 = vmul.f32 %v3217, %v2889
    %v3239 = vmul.f32 %v3198, %v3218
    %v3240 = vadd.f32 %v3238, %v3239
    %v3241 = vtanh.pop %v3240
    %v3242 = vmul.f32 %v3237, %v3241
    %v3243 = vxor.u32 %v3176, 2147483648
    %v3244 = vmul.f32 %v3243, 1.442695
    %v3245 = vpow.pop %v3244
    %v3246 = vadd.f32 %v3245, 1.0
    %v3247 = vrcp.pop %v3246
    %v3248 = vmul.f32 %v3246, %v3247
    %v3249 = vsub.f32 1.0, %v3248
    %v3250 = vmul.f32 %v3247, %v3249
    %v3251 = vadd.f32 %v3247, %v3250
    %vm3252 = vweird.f32 %v3246
    %vm3253 = vweird.f32 %v3247
    %vm3254 = vmor %vm3252, %vm3253
    %v3255 = vsel %vm3254, %v3247, %v3251
    %v3256 = vand.u32 2147483647, %v3246
    %vm3257 = vcmp.eq.f32.partialorder %v3256, 8.507059e+37
    %v3258 = vand.u32 %v3246, 2147483648
    %v3259 = vor.u32 1.1754944e-38, %v3258
    %v3260 = vsel %vm3257, %v3259, %v3255
    %v3261 = vmul.f32 1.0, %v3260
    %v3262 = vxor.u32 %v3177, 2147483648
    %v3263 = vmul.f32 %v3262, 1.442695
    %v3264 = vpow.pop %v3263
    %v3265 = vadd.f32 %v3264, 1.0
    %v3266 = vrcp.pop %v3265
    %v3267 = vmul.f32 %v3265, %v3266
    %v3268 = vsub.f32 1.0, %v3267
    %v3269 = vmul.f32 %v3266, %v3268
    %v3270 = vadd.f32 %v3266, %v3269
    %vm3271 = vweird.f32 %v3265
    %vm3272 = vweird.f32 %v3266
    %vm3273 = vmor %vm3271, %vm3272
    %v3274 = vsel %vm3273, %v3266, %v3270
    %v3275 = vand.u32 2147483647, %v3265
    %vm3276 = vcmp.eq.f32.partialorder %v3275, 8.507059e+37
    %v3277 = vand.u32 %v3265, 2147483648
    %v3278 = vor.u32 1.1754944e-38, %v3277
    %v3279 = vsel %vm3276, %v3278, %v3274
    %v3280 = vmul.f32 1.0, %v3279
    %v3281 = vtanh.pop %v3178
    %v3282 = vxor.u32 %v3179, 2147483648
    %v3283 = vmul.f32 %v3282, 1.442695
    %v3284 = vpow.pop %v3283
    %v3285 = vadd.f32 %v3284, 1.0
    %v3286 = vrcp.pop %v3285
    %v3287 = vmul.f32 %v3285, %v3286
    %v3288 = vsub.f32 1.0, %v3287
    %v3289 = vmul.f32 %v3286, %v3288
    %v3290 = vadd.f32 %v3286, %v3289
    %vm3291 = vweird.f32 %v3285
    %vm3292 = vweird.f32 %v3286
    %vm3293 = vmor %vm3291, %vm3292
    %v3294 = vsel %vm3293, %v3286, %v3290
    %v3295 = vand.u32 2147483647, %v3285
    %vm3296 = vcmp.eq.f32.partialorder %v3295, 8.507059e+37
    %v3297 = vand.u32 %v3285, 2147483648
    %v3298 = vor.u32 1.1754944e-38, %v3297
    %v3299 = vsel %vm3296, %v3298, %v3294
    %v3300 = vmul.f32 1.0, %v3299
    %v3301 = vmul.f32 %v3280, %v2952
    %v3302 = vmul.f32 %v3261, %v3281
    %v3303 = vadd.f32 %v3301, %v3302
    %v3304 = vtanh.pop %v3303
    %v3305 = vmul.f32 %v3300, %v3304
    %v3306 = vpack.c.bf16 %v3242, %v3242
    %v3307 = vpack.c.bf16 %v3305, %v3305
    %3308 = vmatpush.bf16.msra.mxu0 %v993
    %3309 = vmatpush.bf16.msra.mxu0 %v985
    %3310 = vmatpush.bf16.msra.mxu0 %v977
    %3311 = vmatpush.bf16.msra.mxu0 %v969
    %3312 = vmatpush.bf16.msra.mxu0 %v961
    %3313 = vmatpush.bf16.msra.mxu0 %v953
    %3314 = vmatpush.bf16.msra.mxu0 %v945
    %3315 = vmatpush.bf16.msra.mxu0 %v937
    %3316 = vmatmul.bf16.gmra.mxu0 %v3306
    %v3317 = vpop.f32.mrf.mxu0
    %v3318 = vadd.f32 0.0, %v3317
    %v3319 = vpop.f32.mrf.mxu0
    %3320 = vdwg.mxu0
    %3321 = vmatpush.bf16.msra.mxu0 %v1057
    %3322 = vmatpush.bf16.msra.mxu0 %v1049
    %3323 = vmatpush.bf16.msra.mxu0 %v1041
    %3324 = vmatpush.bf16.msra.mxu0 %v1033
    %3325 = vmatpush.bf16.msra.mxu0 %v1025
    %3326 = vmatpush.bf16.msra.mxu0 %v1017
    %3327 = vmatpush.bf16.msra.mxu0 %v1009
    %3328 = vmatpush.bf16.msra.mxu0 %v1001
    %3329 = vmatmul.bf16.gmra.mxu0 %v3307
    %v3330 = vpop.f32.mrf.mxu0
    %v3331 = vadd.f32 %v3318, %v3330
    %v3332 = vpop.f32.mrf.mxu0
    %3333 = vdwg.mxu0
    %3334 = vmatpush.bf16.msra.mxu0 %v994
    %3335 = vmatpush.bf16.msra.mxu0 %v986
    %3336 = vmatpush.bf16.msra.mxu0 %v978
    %3337 = vmatpush.bf16.msra.mxu0 %v970
    %3338 = vmatpush.bf16.msra.mxu0 %v962
    %3339 = vmatpush.bf16.msra.mxu0 %v954
    %3340 = vmatpush.bf16.msra.mxu0 %v946
    %3341 = vmatpush.bf16.msra.mxu0 %v938
    %3342 = vmatmul.bf16.gmra.mxu0 %v3306
    %v3343 = vpop.f32.mrf.mxu0
    %v3344 = vadd.f32 0.0, %v3343
    %v3345 = vpop.f32.mrf.mxu0
    %3346 = vdwg.mxu0
    %3347 = vmatpush.bf16.msra.mxu0 %v1058
    %3348 = vmatpush.bf16.msra.mxu0 %v1050
    %3349 = vmatpush.bf16.msra.mxu0 %v1042
    %3350 = vmatpush.bf16.msra.mxu0 %v1034
    %3351 = vmatpush.bf16.msra.mxu0 %v1026
    %3352 = vmatpush.bf16.msra.mxu0 %v1018
    %3353 = vmatpush.bf16.msra.mxu0 %v1010
    %3354 = vmatpush.bf16.msra.mxu0 %v1002
    %3355 = vmatmul.bf16.gmra.mxu0 %v3307
    %v3356 = vpop.f32.mrf.mxu0
    %v3357 = vadd.f32 %v3344, %v3356
    %v3358 = vpop.f32.mrf.mxu0
    %3359 = vdwg.mxu0
    %3360 = vmatpush.bf16.msra.mxu0 %v995
    %3361 = vmatpush.bf16.msra.mxu0 %v987
    %3362 = vmatpush.bf16.msra.mxu0 %v979
    %3363 = vmatpush.bf16.msra.mxu0 %v971
    %3364 = vmatpush.bf16.msra.mxu0 %v963
    %3365 = vmatpush.bf16.msra.mxu0 %v955
    %3366 = vmatpush.bf16.msra.mxu0 %v947
    %3367 = vmatpush.bf16.msra.mxu0 %v939
    %3368 = vmatmul.bf16.gmra.mxu0 %v3306
    %v3369 = vpop.f32.mrf.mxu0
    %v3370 = vadd.f32 0.0, %v3369
    %v3371 = vpop.f32.mrf.mxu0
    %3372 = vdwg.mxu0
    %3373 = vmatpush.bf16.msra.mxu0 %v1059
    %3374 = vmatpush.bf16.msra.mxu0 %v1051
    %3375 = vmatpush.bf16.msra.mxu0 %v1043
    %3376 = vmatpush.bf16.msra.mxu0 %v1035
    %3377 = vmatpush.bf16.msra.mxu0 %v1027
    %3378 = vmatpush.bf16.msra.mxu0 %v1019
    %3379 = vmatpush.bf16.msra.mxu0 %v1011
    %3380 = vmatpush.bf16.msra.mxu0 %v1003
    %3381 = vmatmul.bf16.gmra.mxu0 %v3307
    %v3382 = vpop.f32.mrf.mxu0
    %v3383 = vadd.f32 %v3370, %v3382
    %v3384 = vpop.f32.mrf.mxu0
    %3385 = vdwg.mxu0
    %3386 = vmatpush.bf16.msra.mxu0 %v996
    %3387 = vmatpush.bf16.msra.mxu0 %v988
    %3388 = vmatpush.bf16.msra.mxu0 %v980
    %3389 = vmatpush.bf16.msra.mxu0 %v972
    %3390 = vmatpush.bf16.msra.mxu0 %v964
    %3391 = vmatpush.bf16.msra.mxu0 %v956
    %3392 = vmatpush.bf16.msra.mxu0 %v948
    %3393 = vmatpush.bf16.msra.mxu0 %v940
    %3394 = vmatmul.bf16.gmra.mxu0 %v3306
    %v3395 = vpop.f32.mrf.mxu0
    %v3396 = vadd.f32 0.0, %v3395
    %v3397 = vpop.f32.mrf.mxu0
    %3398 = vdwg.mxu0
    %3399 = vmatpush.bf16.msra.mxu0 %v1060
    %3400 = vmatpush.bf16.msra.mxu0 %v1052
    %3401 = vmatpush.bf16.msra.mxu0 %v1044
    %3402 = vmatpush.bf16.msra.mxu0 %v1036
    %3403 = vmatpush.bf16.msra.mxu0 %v1028
    %3404 = vmatpush.bf16.msra.mxu0 %v1020
    %3405 = vmatpush.bf16.msra.mxu0 %v1012
    %3406 = vmatpush.bf16.msra.mxu0 %v1004
    %3407 = vmatmul.bf16.gmra.mxu0 %v3307
    %v3408 = vpop.f32.mrf.mxu0
    %v3409 = vadd.f32 %v3396, %v3408
    %v3410 = vpop.f32.mrf.mxu0
    %3411 = vdwg.mxu0
    %3412 = vmatpush.bf16.msra.mxu0 %v997
    %3413 = vmatpush.bf16.msra.mxu0 %v989
    %3414 = vmatpush.bf16.msra.mxu0 %v981
    %3415 = vmatpush.bf16.msra.mxu0 %v973
    %3416 = vmatpush.bf16.msra.mxu0 %v965
    %3417 = vmatpush.bf16.msra.mxu0 %v957
    %3418 = vmatpush.bf16.msra.mxu0 %v949
    %3419 = vmatpush.bf16.msra.mxu0 %v941
    %3420 = vmatmul.bf16.gmra.mxu0 %v3306
    %v3421 = vpop.f32.mrf.mxu0
    %v3422 = vadd.f32 0.0, %v3421
    %v3423 = vpop.f32.mrf.mxu0
    %3424 = vdwg.mxu0
    %3425 = vmatpush.bf16.msra.mxu0 %v1061
    %3426 = vmatpush.bf16.msra.mxu0 %v1053
    %3427 = vmatpush.bf16.msra.mxu0 %v1045
    %3428 = vmatpush.bf16.msra.mxu0 %v1037
    %3429 = vmatpush.bf16.msra.mxu0 %v1029
    %3430 = vmatpush.bf16.msra.mxu0 %v1021
    %3431 = vmatpush.bf16.msra.mxu0 %v1013
    %3432 = vmatpush.bf16.msra.mxu0 %v1005
    %3433 = vmatmul.bf16.gmra.mxu0 %v3307
    %v3434 = vpop.f32.mrf.mxu0
    %v3435 = vadd.f32 %v3422, %v3434
    %v3436 = vpop.f32.mrf.mxu0
    %3437 = vdwg.mxu0
    %3438 = vmatpush.bf16.msra.mxu0 %v998
    %3439 = vmatpush.bf16.msra.mxu0 %v990
    %3440 = vmatpush.bf16.msra.mxu0 %v982
    %3441 = vmatpush.bf16.msra.mxu0 %v974
    %3442 = vmatpush.bf16.msra.mxu0 %v966
    %3443 = vmatpush.bf16.msra.mxu0 %v958
    %3444 = vmatpush.bf16.msra.mxu0 %v950
    %3445 = vmatpush.bf16.msra.mxu0 %v942
    %3446 = vmatmul.bf16.gmra.mxu0 %v3306
    %v3447 = vpop.f32.mrf.mxu0
    %v3448 = vadd.f32 0.0, %v3447
    %v3449 = vpop.f32.mrf.mxu0
    %3450 = vdwg.mxu0
    %3451 = vmatpush.bf16.msra.mxu0 %v1062
    %3452 = vmatpush.bf16.msra.mxu0 %v1054
    %3453 = vmatpush.bf16.msra.mxu0 %v1046
    %3454 = vmatpush.bf16.msra.mxu0 %v1038
    %3455 = vmatpush.bf16.msra.mxu0 %v1030
    %3456 = vmatpush.bf16.msra.mxu0 %v1022
    %3457 = vmatpush.bf16.msra.mxu0 %v1014
    %3458 = vmatpush.bf16.msra.mxu0 %v1006
    %3459 = vmatmul.bf16.gmra.mxu0 %v3307
    %v3460 = vpop.f32.mrf.mxu0
    %v3461 = vadd.f32 %v3448, %v3460
    %v3462 = vpop.f32.mrf.mxu0
    %3463 = vdwg.mxu0
    %3464 = vmatpush.bf16.msra.mxu0 %v999
    %3465 = vmatpush.bf16.msra.mxu0 %v991
    %3466 = vmatpush.bf16.msra.mxu0 %v983
    %3467 = vmatpush.bf16.msra.mxu0 %v975
    %3468 = vmatpush.bf16.msra.mxu0 %v967
    %3469 = vmatpush.bf16.msra.mxu0 %v959
    %3470 = vmatpush.bf16.msra.mxu0 %v951
    %3471 = vmatpush.bf16.msra.mxu0 %v943
    %3472 = vmatmul.bf16.gmra.mxu0 %v3306
    %v3473 = vpop.f32.mrf.mxu0
    %v3474 = vadd.f32 0.0, %v3473
    %v3475 = vpop.f32.mrf.mxu0
    %3476 = vdwg.mxu0
    %3477 = vmatpush.bf16.msra.mxu0 %v1063
    %3478 = vmatpush.bf16.msra.mxu0 %v1055
    %3479 = vmatpush.bf16.msra.mxu0 %v1047
    %3480 = vmatpush.bf16.msra.mxu0 %v1039
    %3481 = vmatpush.bf16.msra.mxu0 %v1031
    %3482 = vmatpush.bf16.msra.mxu0 %v1023
    %3483 = vmatpush.bf16.msra.mxu0 %v1015
    %3484 = vmatpush.bf16.msra.mxu0 %v1007
    %3485 = vmatmul.bf16.gmra.mxu0 %v3307
    %v3486 = vpop.f32.mrf.mxu0
    %v3487 = vadd.f32 %v3474, %v3486
    %v3488 = vpop.f32.mrf.mxu0
    %3489 = vdwg.mxu0
    %3490 = vmatpush.bf16.msra.mxu0 %v1000
    %3491 = vmatpush.bf16.msra.mxu0 %v992
    %3492 = vmatpush.bf16.msra.mxu0 %v984
    %3493 = vmatpush.bf16.msra.mxu0 %v976
    %3494 = vmatpush.bf16.msra.mxu0 %v968
    %3495 = vmatpush.bf16.msra.mxu0 %v960
    %3496 = vmatpush.bf16.msra.mxu0 %v952
    %3497 = vmatpush.bf16.msra.mxu0 %v944
    %3498 = vmatmul.bf16.gmra.mxu0 %v3306
    %v3499 = vpop.f32.mrf.mxu0
    %v3500 = vadd.f32 0.0, %v3499
    %v3501 = vpop.f32.mrf.mxu0
    %3502 = vdwg.mxu0
    %3503 = vmatpush.bf16.msra.mxu0 %v1064
    %3504 = vmatpush.bf16.msra.mxu0 %v1056
    %3505 = vmatpush.bf16.msra.mxu0 %v1048
    %3506 = vmatpush.bf16.msra.mxu0 %v1040
    %3507 = vmatpush.bf16.msra.mxu0 %v1032
    %3508 = vmatpush.bf16.msra.mxu0 %v1024
    %3509 = vmatpush.bf16.msra.mxu0 %v1016
    %3510 = vmatpush.bf16.msra.mxu0 %v1008
    %3511 = vmatmul.bf16.gmra.mxu0 %v3307
    %v3512 = vpop.f32.mrf.mxu0
    %v3513 = vadd.f32 %v3500, %v3512
    %v3514 = vpop.f32.mrf.mxu0
    %3515 = vdwg.mxu0
    %s3516 = smul.u32 7, 4
    %s3517 = smul.addr %s3516, 8
    %s3518 = scalar_lea.vmem [#allocation2], %s3517
    %v3519 = vld [vmem:[%s3518] sm:$0xff]
    %v3520 = vld [vmem:[%s3518 + $0x8] sm:$0xff]
    %v3521 = vld [vmem:[%s3518 + $0x10] sm:$0xff]
    %v3522 = vld [vmem:[%s3518 + $0x18] sm:$0xff]
    %v3523 = vadd.f32 %v3519, %v3331
    %v3524 = vadd.f32 %v3520, %v3357
    %v3525 = vadd.f32 %v3521, %v3383
    %v3526 = vadd.f32 %v3522, %v3409
    %v3527 = vadd.f32 %v3435, %v1413
    %v3528 = vadd.f32 %v3461, %v1414
    %v3529 = vadd.f32 %v3487, %v1415
    %v3530 = vadd.f32 %v3513, %v1416
    %v3531 = vxor.u32 %v3523, 2147483648
    %v3532 = vmul.f32 %v3531, 1.442695
    %v3533 = vpow.pop %v3532
    %v3534 = vadd.f32 %v3533, 1.0
    %v3535 = vrcp.pop %v3534
    %v3536 = vmul.f32 %v3534, %v3535
    %v3537 = vsub.f32 1.0, %v3536
    %v3538 = vmul.f32 %v3535, %v3537
    %v3539 = vadd.f32 %v3535, %v3538
    %vm3540 = vweird.f32 %v3534
    %vm3541 = vweird.f32 %v3535
    %vm3542 = vmor %vm3540, %vm3541
    %v3543 = vsel %vm3542, %v3535, %v3539
    %v3544 = vand.u32 2147483647, %v3534
    %vm3545 = vcmp.eq.f32.partialorder %v3544, 8.507059e+37
    %v3546 = vand.u32 %v3534, 2147483648
    %v3547 = vor.u32 1.1754944e-38, %v3546
    %v3548 = vsel %vm3545, %v3547, %v3543
    %v3549 = vmul.f32 1.0, %v3548
    %v3550 = vxor.u32 %v3524, 2147483648
    %v3551 = vmul.f32 %v3550, 1.442695
    %v3552 = vpow.pop %v3551
    %v3553 = vadd.f32 %v3552, 1.0
    %v3554 = vrcp.pop %v3553
    %v3555 = vmul.f32 %v3553, %v3554
    %v3556 = vsub.f32 1.0, %v3555
    %v3557 = vmul.f32 %v3554, %v3556
    %v3558 = vadd.f32 %v3554, %v3557
    %vm3559 = vweird.f32 %v3553
    %vm3560 = vweird.f32 %v3554
    %vm3561 = vmor %vm3559, %vm3560
    %v3562 = vsel %vm3561, %v3554, %v3558
    %v3563 = vand.u32 2147483647, %v3553
    %vm3564 = vcmp.eq.f32.partialorder %v3563, 8.507059e+37
    %v3565 = vand.u32 %v3553, 2147483648
    %v3566 = vor.u32 1.1754944e-38, %v3565
    %v3567 = vsel %vm3564, %v3566, %v3562
    %v3568 = vmul.f32 1.0, %v3567
    %v3569 = vtanh.pop %v3525
    %v3570 = vxor.u32 %v3526, 2147483648
    %v3571 = vmul.f32 %v3570, 1.442695
    %v3572 = vpow.pop %v3571
    %v3573 = vadd.f32 %v3572, 1.0
    %v3574 = vrcp.pop %v3573
    %v3575 = vmul.f32 %v3573, %v3574
    %v3576 = vsub.f32 1.0, %v3575
    %v3577 = vmul.f32 %v3574, %v3576
    %v3578 = vadd.f32 %v3574, %v3577
    %vm3579 = vweird.f32 %v3573
    %vm3580 = vweird.f32 %v3574
    %vm3581 = vmor %vm3579, %vm3580
    %v3582 = vsel %vm3581, %v3574, %v3578
    %v3583 = vand.u32 2147483647, %v3573
    %vm3584 = vcmp.eq.f32.partialorder %v3583, 8.507059e+37
    %v3585 = vand.u32 %v3573, 2147483648
    %v3586 = vor.u32 1.1754944e-38, %v3585
    %v3587 = vsel %vm3584, %v3586, %v3582
    %v3588 = vmul.f32 1.0, %v3587
    %v3589 = vmul.f32 %v3568, %v3240
    %v3590 = vmul.f32 %v3549, %v3569
    %v3591 = vadd.f32 %v3589, %v3590
    %v3592 = vtanh.pop %v3591
    %v3593 = vmul.f32 %v3588, %v3592
    %v3594 = vxor.u32 %v3527, 2147483648
    %v3595 = vmul.f32 %v3594, 1.442695
    %v3596 = vpow.pop %v3595
    %v3597 = vadd.f32 %v3596, 1.0
    %v3598 = vrcp.pop %v3597
    %v3599 = vmul.f32 %v3597, %v3598
    %v3600 = vsub.f32 1.0, %v3599
    %v3601 = vmul.f32 %v3598, %v3600
    %v3602 = vadd.f32 %v3598, %v3601
    %vm3603 = vweird.f32 %v3597
    %vm3604 = vweird.f32 %v3598
    %vm3605 = vmor %vm3603, %vm3604
    %v3606 = vsel %vm3605, %v3598, %v3602
    %v3607 = vand.u32 2147483647, %v3597
    %vm3608 = vcmp.eq.f32.partialorder %v3607, 8.507059e+37
    %v3609 = vand.u32 %v3597, 2147483648
    %v3610 = vor.u32 1.1754944e-38, %v3609
    %v3611 = vsel %vm3608, %v3610, %v3606
    %v3612 = vmul.f32 1.0, %v3611
    %v3613 = vxor.u32 %v3528, 2147483648
    %v3614 = vmul.f32 %v3613, 1.442695
    %v3615 = vpow.pop %v3614
    %v3616 = vadd.f32 %v3615, 1.0
    %v3617 = vrcp.pop %v3616
    %v3618 = vmul.f32 %v3616, %v3617
    %v3619 = vsub.f32 1.0, %v3618
    %v3620 = vmul.f32 %v3617, %v3619
    %v3621 = vadd.f32 %v3617, %v3620
    %vm3622 = vweird.f32 %v3616
    %vm3623 = vweird.f32 %v3617
    %vm3624 = vmor %vm3622, %vm3623
    %v3625 = vsel %vm3624, %v3617, %v3621
    %v3626 = vand.u32 2147483647, %v3616
    %vm3627 = vcmp.eq.f32.partialorder %v3626, 8.507059e+37
    %v3628 = vand.u32 %v3616, 2147483648
    %v3629 = vor.u32 1.1754944e-38, %v3628
    %v3630 = vsel %vm3627, %v3629, %v3625
    %v3631 = vmul.f32 1.0, %v3630
    %v3632 = vtanh.pop %v3529
    %v3633 = vxor.u32 %v3530, 2147483648
    %v3634 = vmul.f32 %v3633, 1.442695
    %v3635 = vpow.pop %v3634
    %v3636 = vadd.f32 %v3635, 1.0
    %v3637 = vrcp.pop %v3636
    %v3638 = vmul.f32 %v3636, %v3637
    %v3639 = vsub.f32 1.0, %v3638
    %v3640 = vmul.f32 %v3637, %v3639
    %v3641 = vadd.f32 %v3637, %v3640
    %vm3642 = vweird.f32 %v3636
    %vm3643 = vweird.f32 %v3637
    %vm3644 = vmor %vm3642, %vm3643
    %v3645 = vsel %vm3644, %v3637, %v3641
    %v3646 = vand.u32 2147483647, %v3636
    %vm3647 = vcmp.eq.f32.partialorder %v3646, 8.507059e+37
    %v3648 = vand.u32 %v3636, 2147483648
    %v3649 = vor.u32 1.1754944e-38, %v3648
    %v3650 = vsel %vm3647, %v3649, %v3645
    %v3651 = vmul.f32 1.0, %v3650
    %v3652 = vmul.f32 %v3631, %v3303
    %v3653 = vmul.f32 %v3612, %v3632
    %v3654 = vadd.f32 %v3652, %v3653
    %v3655 = vtanh.pop %v3654
    %v3656 = vmul.f32 %v3651, %v3655
    %v3657 = vpack.c.bf16 %v3593, %v3593
    %v3658 = vpack.c.bf16 %v3656, %v3656
    %3659 = vmatpush.bf16.msra.mxu0 %v997
    %3660 = vmatpush.bf16.msra.mxu0 %v989
    %3661 = vmatpush.bf16.msra.mxu0 %v981
    %3662 = vmatpush.bf16.msra.mxu0 %v973
    %3663 = vmatpush.bf16.msra.mxu0 %v965
    %3664 = vmatpush.bf16.msra.mxu0 %v957
    %3665 = vmatpush.bf16.msra.mxu0 %v949
    %3666 = vmatpush.bf16.msra.mxu0 %v941
    %3667 = vmatmul.bf16.gmra.mxu0 %v3657
    %v3668 = vpop.f32.mrf.mxu0
    %v3669 = vadd.f32 %v1413, %v3668
    %v3670 = vpop.f32.mrf.mxu0
    %3671 = vdwg.mxu0
    %3672 = vmatpush.bf16.msra.mxu0 %v1061
    %3673 = vmatpush.bf16.msra.mxu0 %v1053
    %3674 = vmatpush.bf16.msra.mxu0 %v1045
    %3675 = vmatpush.bf16.msra.mxu0 %v1037
    %3676 = vmatpush.bf16.msra.mxu0 %v1029
    %3677 = vmatpush.bf16.msra.mxu0 %v1021
    %3678 = vmatpush.bf16.msra.mxu0 %v1013
    %3679 = vmatpush.bf16.msra.mxu0 %v1005
    %3680 = vmatmul.bf16.gmra.mxu0 %v3658
    %v3681 = vpop.f32.mrf.mxu0
    %v3682 = vadd.f32 %v3669, %v3681
    %v3683 = vpop.f32.mrf.mxu0
    %3684 = vdwg.mxu0
    %3685 = vmatpush.bf16.msra.mxu0 %v998
    %3686 = vmatpush.bf16.msra.mxu0 %v990
    %3687 = vmatpush.bf16.msra.mxu0 %v982
    %3688 = vmatpush.bf16.msra.mxu0 %v974
    %3689 = vmatpush.bf16.msra.mxu0 %v966
    %3690 = vmatpush.bf16.msra.mxu0 %v958
    %3691 = vmatpush.bf16.msra.mxu0 %v950
    %3692 = vmatpush.bf16.msra.mxu0 %v942
    %3693 = vmatmul.bf16.gmra.mxu0 %v3657
    %v3694 = vpop.f32.mrf.mxu0
    %v3695 = vadd.f32 %v1414, %v3694
    %v3696 = vpop.f32.mrf.mxu0
    %3697 = vdwg.mxu0
    %3698 = vmatpush.bf16.msra.mxu0 %v1062
    %3699 = vmatpush.bf16.msra.mxu0 %v1054
    %3700 = vmatpush.bf16.msra.mxu0 %v1046
    %3701 = vmatpush.bf16.msra.mxu0 %v1038
    %3702 = vmatpush.bf16.msra.mxu0 %v1030
    %3703 = vmatpush.bf16.msra.mxu0 %v1022
    %3704 = vmatpush.bf16.msra.mxu0 %v1014
    %3705 = vmatpush.bf16.msra.mxu0 %v1006
    %3706 = vmatmul.bf16.gmra.mxu0 %v3658
    %v3707 = vpop.f32.mrf.mxu0
    %v3708 = vadd.f32 %v3695, %v3707
    %v3709 = vpop.f32.mrf.mxu0
    %3710 = vdwg.mxu0
    %3711 = vmatpush.bf16.msra.mxu0 %v999
    %3712 = vmatpush.bf16.msra.mxu0 %v991
    %3713 = vmatpush.bf16.msra.mxu0 %v983
    %3714 = vmatpush.bf16.msra.mxu0 %v975
    %3715 = vmatpush.bf16.msra.mxu0 %v967
    %3716 = vmatpush.bf16.msra.mxu0 %v959
    %3717 = vmatpush.bf16.msra.mxu0 %v951
    %3718 = vmatpush.bf16.msra.mxu0 %v943
    %3719 = vmatmul.bf16.gmra.mxu0 %v3657
    %v3720 = vpop.f32.mrf.mxu0
    %v3721 = vadd.f32 %v1415, %v3720
    %v3722 = vpop.f32.mrf.mxu0
    %3723 = vdwg.mxu0
    %3724 = vmatpush.bf16.msra.mxu0 %v1063
    %3725 = vmatpush.bf16.msra.mxu0 %v1055
    %3726 = vmatpush.bf16.msra.mxu0 %v1047
    %3727 = vmatpush.bf16.msra.mxu0 %v1039
    %3728 = vmatpush.bf16.msra.mxu0 %v1031
    %3729 = vmatpush.bf16.msra.mxu0 %v1023
    %3730 = vmatpush.bf16.msra.mxu0 %v1015
    %3731 = vmatpush.bf16.msra.mxu0 %v1007
    %3732 = vmatmul.bf16.gmra.mxu0 %v3658
    %v3733 = vpop.f32.mrf.mxu0
    %v3734 = vadd.f32 %v3721, %v3733
    %v3735 = vpop.f32.mrf.mxu0
    %3736 = vdwg.mxu0
    %3737 = vmatpush.bf16.msra.mxu0 %v1000
    %3738 = vmatpush.bf16.msra.mxu0 %v992
    %3739 = vmatpush.bf16.msra.mxu0 %v984
    %3740 = vmatpush.bf16.msra.mxu0 %v976
    %3741 = vmatpush.bf16.msra.mxu0 %v968
    %3742 = vmatpush.bf16.msra.mxu0 %v960
    %3743 = vmatpush.bf16.msra.mxu0 %v952
    %3744 = vmatpush.bf16.msra.mxu0 %v944
    %3745 = vmatmul.bf16.gmra.mxu0 %v3657
    %v3746 = vpop.f32.mrf.mxu0
    %v3747 = vadd.f32 %v1416, %v3746
    %v3748 = vpop.f32.mrf.mxu0
    %3749 = vdwg.mxu0
    %3750 = vmatpush.bf16.msra.mxu0 %v1064
    %3751 = vmatpush.bf16.msra.mxu0 %v1056
    %3752 = vmatpush.bf16.msra.mxu0 %v1048
    %3753 = vmatpush.bf16.msra.mxu0 %v1040
    %3754 = vmatpush.bf16.msra.mxu0 %v1032
    %3755 = vmatpush.bf16.msra.mxu0 %v1024
    %3756 = vmatpush.bf16.msra.mxu0 %v1016
    %3757 = vmatpush.bf16.msra.mxu0 %v1008
    %3758 = vmatmul.bf16.gmra.mxu0 %v3658
    %v3759 = vpop.f32.mrf.mxu0
    %v3760 = vadd.f32 %v3747, %v3759
    %v3761 = vpop.f32.mrf.mxu0
    %3762 = vdwg.mxu0
    %v3763 = vxor.u32 %v3682, 2147483648
    %v3764 = vmul.f32 %v3763, 1.442695
    %v3765 = vpow.pop %v3764
    %v3766 = vadd.f32 %v3765, 1.0
    %v3767 = vrcp.pop %v3766
    %v3768 = vmul.f32 %v3766, %v3767
    %v3769 = vsub.f32 1.0, %v3768
    %v3770 = vmul.f32 %v3767, %v3769
    %v3771 = vadd.f32 %v3767, %v3770
    %vm3772 = vweird.f32 %v3766
    %vm3773 = vweird.f32 %v3767
    %vm3774 = vmor %vm3772, %vm3773
    %v3775 = vsel %vm3774, %v3767, %v3771
    %v3776 = vand.u32 2147483647, %v3766
    %vm3777 = vcmp.eq.f32.partialorder %v3776, 8.507059e+37
    %v3778 = vand.u32 %v3766, 2147483648
    %v3779 = vor.u32 1.1754944e-38, %v3778
    %v3780 = vsel %vm3777, %v3779, %v3775
    %v3781 = vmul.f32 1.0, %v3780
    %v3782 = vxor.u32 %v3708, 2147483648
    %v3783 = vmul.f32 %v3782, 1.442695
    %v3784 = vpow.pop %v3783
    %v3785 = vadd.f32 %v3784, 1.0
    %v3786 = vrcp.pop %v3785
    %v3787 = vmul.f32 %v3785, %v3786
    %v3788 = vsub.f32 1.0, %v3787
    %v3789 = vmul.f32 %v3786, %v3788
    %v3790 = vadd.f32 %v3786, %v3789
    %vm3791 = vweird.f32 %v3785
    %vm3792 = vweird.f32 %v3786
    %vm3793 = vmor %vm3791, %vm3792
    %v3794 = vsel %vm3793, %v3786, %v3790
    %v3795 = vand.u32 2147483647, %v3785
    %vm3796 = vcmp.eq.f32.partialorder %v3795, 8.507059e+37
    %v3797 = vand.u32 %v3785, 2147483648
    %v3798 = vor.u32 1.1754944e-38, %v3797
    %v3799 = vsel %vm3796, %v3798, %v3794
    %v3800 = vmul.f32 1.0, %v3799
    %v3801 = vtanh.pop %v3734
    %v3802 = vxor.u32 %v3760, 2147483648
    %v3803 = vmul.f32 %v3802, 1.442695
    %v3804 = vpow.pop %v3803
    %v3805 = vadd.f32 %v3804, 1.0
    %v3806 = vrcp.pop %v3805
    %v3807 = vmul.f32 %v3805, %v3806
    %v3808 = vsub.f32 1.0, %v3807
    %v3809 = vmul.f32 %v3806, %v3808
    %v3810 = vadd.f32 %v3806, %v3809
    %vm3811 = vweird.f32 %v3805
    %vm3812 = vweird.f32 %v3806
    %vm3813 = vmor %vm3811, %vm3812
    %v3814 = vsel %vm3813, %v3806, %v3810
    %v3815 = vand.u32 2147483647, %v3805
    %vm3816 = vcmp.eq.f32.partialorder %v3815, 8.507059e+37
    %v3817 = vand.u32 %v3805, 2147483648
    %v3818 = vor.u32 1.1754944e-38, %v3817
    %v3819 = vsel %vm3816, %v3818, %v3814
    %v3820 = vmul.f32 1.0, %v3819
    %v3821 = vmul.f32 %v3800, %v3654
    %v3822 = vmul.f32 %v3781, %v3801
    %v3823 = vadd.f32 %v3821, %v3822
    %v3824 = vtanh.pop %v3823
    %v3825 = vmul.f32 %v3820, %v3824
    %v3826 = vpack.c.bf16 %v3825, %v3825
    %v3827 = vld [vmem:[%s5] sm:$0xf]
    %v3828 = vld [vmem:[%s5 + $0x4] sm:$0xf]
    %v3829 = vld [vmem:[%s5 + $0x8] sm:$0xf]
    %v3830 = vld [vmem:[%s5 + $0xc] sm:$0xf]
    %v3831 = vld [vmem:[%s5 + $0x10] sm:$0xf]
    %v3832 = vld [vmem:[%s5 + $0x14] sm:$0xf]
    %v3833 = vld [vmem:[%s5 + $0x18] sm:$0xf]
    %v3834 = vld [vmem:[%s5 + $0x1c] sm:$0xf]
    %v3835 = vld [vmem:[%s5 + $0x20] sm:$0xf]
    %v3836 = vld [vmem:[%s5 + $0x24] sm:$0xf]
    %v3837 = vld [vmem:[%s5 + $0x28] sm:$0xf]
    %v3838 = vld [vmem:[%s5 + $0x2c] sm:$0xf]
    %v3839 = vld [vmem:[%s5 + $0x30] sm:$0xf]
    %v3840 = vld [vmem:[%s5 + $0x34] sm:$0xf]
    %v3841 = vld [vmem:[%s5 + $0x38] sm:$0xf]
    %v3842 = vld [vmem:[%s5 + $0x3c] sm:$0xf]
    %v3843 = vld [vmem:[%s6] sm:$0x1]
    %v3845 = vperm.slane %v3843, 0
    %v3863 = vunpack.c.l.b16 %v3827
    %v3864 = vunpack.c.l.b16 %v3828
    %v3865 = vunpack.c.l.b16 %v3829
    %v3866 = vunpack.c.l.b16 %v3830
    %v3867 = vunpack.c.l.b16 %v3831
    %v3868 = vunpack.c.l.b16 %v3832
    %v3869 = vunpack.c.l.b16 %v3833
    %v3870 = vunpack.c.l.b16 %v3834
    %v3871 = vunpack.c.l.b16 %v3835
    %v3872 = vunpack.c.l.b16 %v3836
    %v3873 = vunpack.c.l.b16 %v3837
    %v3874 = vunpack.c.l.b16 %v3838
    %v3875 = vunpack.c.l.b16 %v3839
    %v3876 = vunpack.c.l.b16 %v3840
    %v3877 = vunpack.c.l.b16 %v3841
    %v3878 = vunpack.c.l.b16 %v3842
    %v3879 = vpack.c.b16 %v3864, %v3863
    %v3880 = vpack.c.b16 %v3866, %v3865
    %v3881 = vpack.c.b16 %v3868, %v3867
    %v3882 = vpack.c.b16 %v3870, %v3869
    %v3883 = vpack.c.b16 %v3872, %v3871
    %v3884 = vpack.c.b16 %v3874, %v3873
    %v3885 = vpack.c.b16 %v3876, %v3875
    %v3886 = vpack.c.b16 %v3878, %v3877
    %3895 = vmatpush.bf16.msra.mxu0 %v3886
    %3896 = vmatpush.bf16.msra.mxu0 %v3885
    %3897 = vmatpush.bf16.msra.mxu0 %v3884
    %3898 = vmatpush.bf16.msra.mxu0 %v3883
    %3899 = vmatpush.bf16.msra.mxu0 %v3882
    %3900 = vmatpush.bf16.msra.mxu0 %v3881
    %3901 = vmatpush.bf16.msra.mxu0 %v3880
    %3902 = vmatpush.bf16.msra.mxu0 %v3879
    %3903 = vmatmul.bf16.gmra.mxu0 %v3826
    %v3904 = vpop.f32.mrf.mxu0
    %v3905 = vadd.f32 %v3845, %v3904
    %v3906 = vpop.f32.mrf.mxu0
    %3907 = vdwg.mxu0
    %vm3908 = vcmask 39936
    %3909 = vst.msk [vmem:[#allocation8] sm:$0xff] %vm3908, %v3905
    // Predicated region
    $region38: #{tpu_custom_call.1} parent=1 // pred_check
      _
    $region39: #{tpu_custom_call.1} parent=1 // pred_check_branch
      %3911 = sbr.rel (0) target = $region41
    $region40: #{tpu_custom_call.1} parent=1 // pred_region
      %3913 = vsyncadd [#allocation5], 0
      %s3915 = sshll.u32 [#allocation8], 4
      %s3916 = int_to_ptr.vmem [resolvable:$true] %s3915
      %s3917 = sshll.u32 %s7, 4
      %s3918 = int_to_ptr.hbm [resolvable:$true] %s3917
      %3920 = dma.vmem_to_hbm [thread:$0]  %s3916, 128, %s3918, [#allocation5]
    $region41: #{tpu_custom_call.1} parent=1 // pred_fallthru
      _
    // Predicated region
    $region42: #{tpu_custom_call.1} parent=1 // pred_check
      _
    $region43: #{tpu_custom_call.1} parent=1 // pred_check_branch
      %3922 = sbr.rel (0) target = $region45
    $region44: #{tpu_custom_call.1} parent=1 // pred_region
      %3924 = dma.done [#allocation5], 128
    $region45: #{tpu_custom_call.1} parent=1 // pred_fallthru
      _
    %3925 = vsyncpa [#allocation4], 1
    %3926 = vsyncpa [#allocation7], 1
    %3927 = vsyncpa [#allocation5], 1

</llo_original>
